<compile_context>
chip_gen: v5e
topology: v5e:2x2
jax: 0.10.0
libtpu: 0.0.40
codegen_flags: <defaults>
</compile_context>

<pallas_src>
import jax
import jax.numpy as jnp
from jax.experimental import pallas as pl
from jax.experimental.pallas import tpu as pltpu


def _encoder_kernel(im1_ref, w1_ref, w2_ref, b2_ref, w3_ref, b3_ref,
                    out_ref, h1pp_ref):
    B = out_ref.shape[0]
    rows = 8 * B                                            # rows per (phase, u)

    # ---- Conv1 (1->16, 3x3, s=2, p=1) + ReLU : one MXU matmul ---------------
    # im1 rows are ordered (phase q, u, v, b) over the padded phase-split 8x8
    # grid of conv1 outputs; the bias rides in the ones-column of the im2col,
    # and border rows are all-zero -> relu(0) = 0 (no explicit zero-fill).
    h1 = jnp.maximum(
        jnp.dot(im1_ref[...], w1_ref[...], preferred_element_type=jnp.float32),
        0.0)                                                # (256*B, 16)

    # ---- Write conv1 output into the phase-split padded scratch -------------
    # h1pp[q, u, v*B + b, c] = h1pad[b, 2u+qy, 2v+qx, c].  Every store is a
    # tile-aligned (8B, 16) 2-D slice (source row start is a multiple of 8B).
    for q in range(4):
        for u in range(8):
            r0 = (q * 8 + u) * rows
            h1pp_ref[q, u, :, :] = h1[r0:r0 + rows, :]

    # ---- Conv2 (16->8, 3x3, s=2, p=1) + ReLU + flatten-folded Linear --------
    b2 = b2_ref[...]                                        # (1, 8)
    acc = jnp.zeros((B, 128), jnp.float32)
    for y in range(7):
        # Stride-2 taps of the padded conv1 output are contiguous static
        # slices of the phase-split scratch; 9 of them form the 144-wide
        # im2col rows for this output row.
        taps = []
        for ky in range(3):
            for kx in range(3):
                q = (ky & 1) * 2 + (kx & 1)
                dy, dx = ky // 2, kx // 2
                taps.append(h1pp_ref[q, y + dy, dx * B:(dx + 7) * B, :])
        p2 = jnp.concatenate(taps, axis=-1)                 # (7B, 144)
        h2 = jnp.maximum(
            jnp.dot(p2, w2_ref[...], preferred_element_type=jnp.float32) + b2,
            0.0)                                            # (7B, 8), rows=(x,b)
        # Linear with the PyTorch NCHW flatten folded into w3 (49, 8, 128):
        # accumulate one tiny MXU dot per output pixel (no lane concatenate).
        for x in range(7):
            acc = acc + jnp.dot(h2[x * B:(x + 1) * B, :], w3_ref[y * 7 + x],
                                preferred_element_type=jnp.float32)

    out_ref[...] = acc + b3_ref[...]                        # lane-dense (B, 128)


def init_params(key):
    """Deterministic synthetic parameters matching the PyTorch module shapes."""
    k = jax.random.split(key, 6)
    w1 = jax.random.normal(k[0], (16, 1, 3, 3), jnp.float32) * 0.1    # Conv2d(1,16,3)
    b1 = jax.random.normal(k[1], (16,), jnp.float32) * 0.1
    w2 = jax.random.normal(k[2], (8, 16, 3, 3), jnp.float32) * 0.05   # Conv2d(16,8,3)
    b2 = jax.random.normal(k[3], (8,), jnp.float32) * 0.05
    w3 = jax.random.normal(k[4], (10, 8 * 7 * 7), jnp.float32) * 0.05 # Linear(392,10)
    b3 = jax.random.normal(k[5], (10,), jnp.float32) * 0.05
    return dict(w1=w1, b1=b1, w2=w2, b2=b2, w3=w3, b3=b3)


def pack_params(params):
    """One-time weight preprocessing, hoisted out of the forward pass."""
    # conv1: (O=16,I=1,KH,KW) -> (9,16), row ky*3+kx; append bias row (ones-col trick)
    w1 = jnp.transpose(params["w1"], (2, 3, 1, 0)).reshape(9, 16)
    w1aug = jnp.concatenate([w1, params["b1"].reshape(1, 16)], axis=0)     # (10, 16)
    # conv2: (O=8,I=16,KH,KW) -> (144,8), row (ky*3+kx)*16 + ci
    w2 = jnp.transpose(params["w2"], (2, 3, 1, 0)).reshape(144, 8)
    # linear: fold PyTorch NCHW flatten (c*49 + y*7 + x) into per-pixel blocks
    # w3p[y*7+x, c, n] = w3[n, c*49 + y*7 + x]; lane-pad 10 -> 128 outputs.
    w3 = jnp.transpose(params["w3"].reshape(10, 8, 7, 7), (2, 3, 1, 0))    # (7,7,8,10)
    w3 = jnp.pad(w3.reshape(49, 8, 10), ((0, 0), (0, 0), (0, 118)))        # (49,8,128)
    return dict(
        w1aug=w1aug.astype(jnp.float32),
        w2=w2.astype(jnp.float32),
        b2=params["b2"].reshape(1, 8).astype(jnp.float32),
        w3=w3.astype(jnp.float32),
        b3=jnp.pad(params["b3"], (0, 118)).reshape(1, 128).astype(jnp.float32),
    )


@jax.jit
def encoder_forward(packed, x_nchw):
    """x_nchw: (B, 1, 28, 28) float32 -> (B, 10) float32."""
    B = x_nchw.shape[0]
    assert x_nchw.shape[1:] == (1, 28, 28)
    x = x_nchw.reshape(B, 28, 28).astype(jnp.float32)
    xpad = jnp.pad(x, ((0, 0), (1, 1), (1, 1)))                        # (B,30,30)
    # Conv1 im2col: 3x3 stride-2 patches + a ones column carrying the bias.
    patches = jnp.stack(
        [xpad[:, ky:ky + 28:2, kx:kx + 28:2]
         for ky in range(3) for kx in range(3)], axis=-1)              # (B,14,14,9)
    patches = jnp.concatenate(
        [patches, jnp.ones((B, 14, 14, 1), jnp.float32)], axis=-1)     # (B,14,14,10)
    # Phase-split of the zero-padded 16x16 conv1-output grid; padding border
    # positions get all-zero rows (including the ones column).
    ppad = jnp.pad(patches, ((0, 0), (1, 1), (1, 1), (0, 0)))          # (B,16,16,10)
    im1 = (ppad.reshape(B, 8, 2, 8, 2, 10)
               .transpose(2, 4, 1, 3, 0, 5)                            # (2,2,8,8,B,10)
               .reshape(4 * 8 * 8 * B, 10))                            # dense 2-D

    out = pl.pallas_call(
        _encoder_kernel,
        out_shape=jax.ShapeDtypeStruct((B, 128), jnp.float32),
        in_specs=[pl.BlockSpec(memory_space=pltpu.MemorySpace.VMEM)] * 6,
        out_specs=pl.BlockSpec(memory_space=pltpu.MemorySpace.VMEM),
        scratch_shapes=[
            pltpu.VMEM((4, 8, 8 * B, 16), jnp.float32),   # phase-split padded h1
        ],
    )(im1, packed["w1aug"], packed["w2"], packed["b2"],
      packed["w3"], packed["b3"])
    # Kernel stores a lane-dense (B, 128) result; slice to the 10 logits here.
    return out[:, :10]


def encoder_reference(params, x_nchw):
    """Pure-JAX reference with lax convolutions (NCHW), for validation."""
    dn1 = jax.lax.conv_dimension_numbers(x_nchw.shape, params["w1"].shape,
                                         ("NCHW", "OIHW", "NCHW"))
    h = jax.lax.conv_general_dilated(x_nchw, params["w1"], (2, 2), ((1, 1), (1, 1)),
                                     dimension_numbers=dn1)
    h = jax.nn.relu(h + params["b1"][None, :, None, None])
    dn2 = jax.lax.conv_dimension_numbers(h.shape, params["w2"].shape,
                                         ("NCHW", "OIHW", "NCHW"))
    h = jax.lax.conv_general_dilated(h, params["w2"], (2, 2), ((1, 1), (1, 1)),
                                     dimension_numbers=dn2)
    h = jax.nn.relu(h + params["b2"][None, :, None, None])
    h = h.reshape(h.shape[0], -1)
    return h @ params["w3"].T + params["b3"]


if __name__ == "__main__":
    key = jax.random.PRNGKey(0)
    kx_, kp = jax.random.split(key)
    # Input must be 28x28 so that the flatten feeds Linear(8*7*7, 10).
    x = jax.random.normal(kx_, (2, 1, 28, 28), jnp.float32)
    params = init_params(kp)
    packed = pack_params(params)

    out = jax.block_until_ready(encoder_forward(packed, x))
    assert out.shape == (2, 10) and out.dtype == jnp.float32

    ref = jax.block_until_ready(encoder_reference(params, x))
    assert jnp.allclose(out, ref, atol=1e-4, rtol=1e-4), \
        float(jnp.max(jnp.abs(out - ref)))

    print("KERNEL_OK")
</pallas_src>

<mosaic_0001>
module attributes {stable_mosaic.version = 11 : i64} {
  func.func @_encoder_kernel(%arg0: memref<512x10xf32, #tpu.memory_space<vmem>>, %arg1: memref<10x16xf32, #tpu.memory_space<vmem>>, %arg2: memref<144x8xf32, #tpu.memory_space<vmem>>, %arg3: memref<1x8xf32, #tpu.memory_space<vmem>>, %arg4: memref<49x8x128xf32, #tpu.memory_space<vmem>>, %arg5: memref<1x128xf32, #tpu.memory_space<vmem>>, %arg6: memref<2x128xf32, #tpu.memory_space<vmem>>, %arg7: memref<4x8x16x16xf32, #tpu.memory_space<vmem>>) attributes {dimension_semantics = [], scalar_prefetch = 0 : i64, scratch_operands = 1 : i64, tpu.core_type = #tpu.core_type<tc>} {
    %c0 = arith.constant 0 : index
    %c0_0 = arith.constant 0 : index
    %0 = vector.load %arg0[%c0, %c0_0] : memref<512x10xf32, #tpu.memory_space<vmem>>, vector<512x10xf32>
    %c0_1 = arith.constant 0 : index
    %c0_2 = arith.constant 0 : index
    %1 = vector.load %arg1[%c0_1, %c0_2] : memref<10x16xf32, #tpu.memory_space<vmem>>, vector<10x16xf32>
    %cst = arith.constant dense<0.000000e+00> : vector<512x16xf32>
    %2 = tpu.matmul %0, %1, %cst {dimension_numbers = #tpu.dot_dimension_numbers<[1], [0], [0], [1], [0, 0, 1, 1], [], []>} : vector<512x10xf32>, vector<10x16xf32>, vector<512x16xf32> -> vector<512x16xf32>
    %cst_3 = arith.constant 0.000000e+00 : f32
    %3 = vector.broadcast %cst_3 : f32 to vector<512x16xf32>
    %4 = arith.maximumf %2, %3 : vector<512x16xf32>
    %5 = vector.extract_strided_slice %4 {offsets = [0, 0], sizes = [16, 16], strides = [1, 1]} : vector<512x16xf32> to vector<16x16xf32>
    %c0_4 = arith.constant 0 : index
    %c0_5 = arith.constant 0 : index
    %c0_6 = arith.constant 0 : index
    %c0_7 = arith.constant 0 : index
    %6 = vector.load %arg7[%c0_4, %c0_5, %c0_6, %c0_7] : memref<4x8x16x16xf32, #tpu.memory_space<vmem>>, vector<1x1x16x16xf32>
    %7 = vector.shape_cast %6 : vector<1x1x16x16xf32> to vector<16x16xf32>
    %8 = vector.shape_cast %5 : vector<16x16xf32> to vector<1x1x16x16xf32>
    tpu.vector_store %arg7[%c0_4, %c0_5, %c0_6, %c0_7], %8 {strides = array<i32>} : memref<4x8x16x16xf32, #tpu.memory_space<vmem>>, vector<1x1x16x16xf32>,
    %9 = vector.extract_strided_slice %4 {offsets = [16, 0], sizes = [16, 16], strides = [1, 1]} : vector<512x16xf32> to vector<16x16xf32>
    %c0_8 = arith.constant 0 : index
    %c1 = arith.constant 1 : index
    %c0_9 = arith.constant 0 : index
    %c0_10 = arith.constant 0 : index
    %10 = vector.load %arg7[%c0_8, %c1, %c0_9, %c0_10] : memref<4x8x16x16xf32, #tpu.memory_space<vmem>>, vector<1x1x16x16xf32>
    %11 = vector.shape_cast %10 : vector<1x1x16x16xf32> to vector<16x16xf32>
    %12 = vector.shape_cast %9 : vector<16x16xf32> to vector<1x1x16x16xf32>
    tpu.vector_store %arg7[%c0_8, %c1, %c0_9, %c0_10], %12 {strides = array<i32>} : memref<4x8x16x16xf32, #tpu.memory_space<vmem>>, vector<1x1x16x16xf32>,
    %13 = vector.extract_strided_slice %4 {offsets = [32, 0], sizes = [16, 16], strides = [1, 1]} : vector<512x16xf32> to vector<16x16xf32>
    %c0_11 = arith.constant 0 : index
    %c2 = arith.constant 2 : index
    %c0_12 = arith.constant 0 : index
    %c0_13 = arith.constant 0 : index
    %14 = vector.load %arg7[%c0_11, %c2, %c0_12, %c0_13] : memref<4x8x16x16xf32, #tpu.memory_space<vmem>>, vector<1x1x16x16xf32>
    %15 = vector.shape_cast %14 : vector<1x1x16x16xf32> to vector<16x16xf32>
    %16 = vector.shape_cast %13 : vector<16x16xf32> to vector<1x1x16x16xf32>
    tpu.vector_store %arg7[%c0_11, %c2, %c0_12, %c0_13], %16 {strides = array<i32>} : memref<4x8x16x16xf32, #tpu.memory_space<vmem>>, vector<1x1x16x16xf32>,
    %17 = vector.extract_strided_slice %4 {offsets = [48, 0], sizes = [16, 16], strides = [1, 1]} : vector<512x16xf32> to vector<16x16xf32>
    %c0_14 = arith.constant 0 : index
    %c3 = arith.constant 3 : index
    %c0_15 = arith.constant 0 : index
    %c0_16 = arith.constant 0 : index
    %18 = vector.load %arg7[%c0_14, %c3, %c0_15, %c0_16] : memref<4x8x16x16xf32, #tpu.memory_space<vmem>>, vector<1x1x16x16xf32>
    %19 = vector.shape_cast %18 : vector<1x1x16x16xf32> to vector<16x16xf32>
    %20 = vector.shape_cast %17 : vector<16x16xf32> to vector<1x1x16x16xf32>
    tpu.vector_store %arg7[%c0_14, %c3, %c0_15, %c0_16], %20 {strides = array<i32>} : memref<4x8x16x16xf32, #tpu.memory_space<vmem>>, vector<1x1x16x16xf32>,
    %21 = vector.extract_strided_slice %4 {offsets = [64, 0], sizes = [16, 16], strides = [1, 1]} : vector<512x16xf32> to vector<16x16xf32>
    %c0_17 = arith.constant 0 : index
    %c4 = arith.constant 4 : index
    %c0_18 = arith.constant 0 : index
    %c0_19 = arith.constant 0 : index
    %22 = vector.load %arg7[%c0_17, %c4, %c0_18, %c0_19] : memref<4x8x16x16xf32, #tpu.memory_space<vmem>>, vector<1x1x16x16xf32>
    %23 = vector.shape_cast %22 : vector<1x1x16x16xf32> to vector<16x16xf32>
    %24 = vector.shape_cast %21 : vector<16x16xf32> to vector<1x1x16x16xf32>
    tpu.vector_store %arg7[%c0_17, %c4, %c0_18, %c0_19], %24 {strides = array<i32>} : memref<4x8x16x16xf32, #tpu.memory_space<vmem>>, vector<1x1x16x16xf32>,
    %25 = vector.extract_strided_slice %4 {offsets = [80, 0], sizes = [16, 16], strides = [1, 1]} : vector<512x16xf32> to vector<16x16xf32>
    %c0_20 = arith.constant 0 : index
    %c5 = arith.constant 5 : index
    %c0_21 = arith.constant 0 : index
    %c0_22 = arith.constant 0 : index
    %26 = vector.load %arg7[%c0_20, %c5, %c0_21, %c0_22] : memref<4x8x16x16xf32, #tpu.memory_space<vmem>>, vector<1x1x16x16xf32>
    %27 = vector.shape_cast %26 : vector<1x1x16x16xf32> to vector<16x16xf32>
    %28 = vector.shape_cast %25 : vector<16x16xf32> to vector<1x1x16x16xf32>
    tpu.vector_store %arg7[%c0_20, %c5, %c0_21, %c0_22], %28 {strides = array<i32>} : memref<4x8x16x16xf32, #tpu.memory_space<vmem>>, vector<1x1x16x16xf32>,
    %29 = vector.extract_strided_slice %4 {offsets = [96, 0], sizes = [16, 16], strides = [1, 1]} : vector<512x16xf32> to vector<16x16xf32>
    %c0_23 = arith.constant 0 : index
    %c6 = arith.constant 6 : index
    %c0_24 = arith.constant 0 : index
    %c0_25 = arith.constant 0 : index
    %30 = vector.load %arg7[%c0_23, %c6, %c0_24, %c0_25] : memref<4x8x16x16xf32, #tpu.memory_space<vmem>>, vector<1x1x16x16xf32>
    %31 = vector.shape_cast %30 : vector<1x1x16x16xf32> to vector<16x16xf32>
    %32 = vector.shape_cast %29 : vector<16x16xf32> to vector<1x1x16x16xf32>
    tpu.vector_store %arg7[%c0_23, %c6, %c0_24, %c0_25], %32 {strides = array<i32>} : memref<4x8x16x16xf32, #tpu.memory_space<vmem>>, vector<1x1x16x16xf32>,
    %33 = vector.extract_strided_slice %4 {offsets = [112, 0], sizes = [16, 16], strides = [1, 1]} : vector<512x16xf32> to vector<16x16xf32>
    %c0_26 = arith.constant 0 : index
    %c7 = arith.constant 7 : index
    %c0_27 = arith.constant 0 : index
    %c0_28 = arith.constant 0 : index
    %34 = vector.load %arg7[%c0_26, %c7, %c0_27, %c0_28] : memref<4x8x16x16xf32, #tpu.memory_space<vmem>>, vector<1x1x16x16xf32>
    %35 = vector.shape_cast %34 : vector<1x1x16x16xf32> to vector<16x16xf32>
    %36 = vector.shape_cast %33 : vector<16x16xf32> to vector<1x1x16x16xf32>
    tpu.vector_store %arg7[%c0_26, %c7, %c0_27, %c0_28], %36 {strides = array<i32>} : memref<4x8x16x16xf32, #tpu.memory_space<vmem>>, vector<1x1x16x16xf32>,
    %37 = vector.extract_strided_slice %4 {offsets = [128, 0], sizes = [16, 16], strides = [1, 1]} : vector<512x16xf32> to vector<16x16xf32>
    %c1_29 = arith.constant 1 : index
    %c0_30 = arith.constant 0 : index
    %c0_31 = arith.constant 0 : index
    %c0_32 = arith.constant 0 : index
    %38 = vector.load %arg7[%c1_29, %c0_30, %c0_31, %c0_32] : memref<4x8x16x16xf32, #tpu.memory_space<vmem>>, vector<1x1x16x16xf32>
    %39 = vector.shape_cast %38 : vector<1x1x16x16xf32> to vector<16x16xf32>
    %40 = vector.shape_cast %37 : vector<16x16xf32> to vector<1x1x16x16xf32>
    tpu.vector_store %arg7[%c1_29, %c0_30, %c0_31, %c0_32], %40 {strides = array<i32>} : memref<4x8x16x16xf32, #tpu.memory_space<vmem>>, vector<1x1x16x16xf32>,
    %41 = vector.extract_strided_slice %4 {offsets = [144, 0], sizes = [16, 16], strides = [1, 1]} : vector<512x16xf32> to vector<16x16xf32>
    %c1_33 = arith.constant 1 : index
    %c1_34 = arith.constant 1 : index
    %c0_35 = arith.constant 0 : index
    %c0_36 = arith.constant 0 : index
    %42 = vector.load %arg7[%c1_33, %c1_34, %c0_35, %c0_36] : memref<4x8x16x16xf32, #tpu.memory_space<vmem>>, vector<1x1x16x16xf32>
    %43 = vector.shape_cast %42 : vector<1x1x16x16xf32> to vector<16x16xf32>
    %44 = vector.shape_cast %41 : vector<16x16xf32> to vector<1x1x16x16xf32>
    tpu.vector_store %arg7[%c1_33, %c1_34, %c0_35, %c0_36], %44 {strides = array<i32>} : memref<4x8x16x16xf32, #tpu.memory_space<vmem>>, vector<1x1x16x16xf32>,
    %45 = vector.extract_strided_slice %4 {offsets = [160, 0], sizes = [16, 16], strides = [1, 1]} : vector<512x16xf32> to vector<16x16xf32>
    %c1_37 = arith.constant 1 : index
    %c2_38 = arith.constant 2 : index
    %c0_39 = arith.constant 0 : index
    %c0_40 = arith.constant 0 : index
    %46 = vector.load %arg7[%c1_37, %c2_38, %c0_39, %c0_40] : memref<4x8x16x16xf32, #tpu.memory_space<vmem>>, vector<1x1x16x16xf32>
    %47 = vector.shape_cast %46 : vector<1x1x16x16xf32> to vector<16x16xf32>
    %48 = vector.shape_cast %45 : vector<16x16xf32> to vector<1x1x16x16xf32>
    tpu.vector_store %arg7[%c1_37, %c2_38, %c0_39, %c0_40], %48 {strides = array<i32>} : memref<4x8x16x16xf32, #tpu.memory_space<vmem>>, vector<1x1x16x16xf32>,
    %49 = vector.extract_strided_slice %4 {offsets = [176, 0], sizes = [16, 16], strides = [1, 1]} : vector<512x16xf32> to vector<16x16xf32>
    %c1_41 = arith.constant 1 : index
    %c3_42 = arith.constant 3 : index
    %c0_43 = arith.constant 0 : index
    %c0_44 = arith.constant 0 : index
    %50 = vector.load %arg7[%c1_41, %c3_42, %c0_43, %c0_44] : memref<4x8x16x16xf32, #tpu.memory_space<vmem>>, vector<1x1x16x16xf32>
    %51 = vector.shape_cast %50 : vector<1x1x16x16xf32> to vector<16x16xf32>
    %52 = vector.shape_cast %49 : vector<16x16xf32> to vector<1x1x16x16xf32>
    tpu.vector_store %arg7[%c1_41, %c3_42, %c0_43, %c0_44], %52 {strides = array<i32>} : memref<4x8x16x16xf32, #tpu.memory_space<vmem>>, vector<1x1x16x16xf32>,
    %53 = vector.extract_strided_slice %4 {offsets = [192, 0], sizes = [16, 16], strides = [1, 1]} : vector<512x16xf32> to vector<16x16xf32>
    %c1_45 = arith.constant 1 : index
    %c4_46 = arith.constant 4 : index
    %c0_47 = arith.constant 0 : index
    %c0_48 = arith.constant 0 : index
    %54 = vector.load %arg7[%c1_45, %c4_46, %c0_47, %c0_48] : memref<4x8x16x16xf32, #tpu.memory_space<vmem>>, vector<1x1x16x16xf32>
    %55 = vector.shape_cast %54 : vector<1x1x16x16xf32> to vector<16x16xf32>
    %56 = vector.shape_cast %53 : vector<16x16xf32> to vector<1x1x16x16xf32>
    tpu.vector_store %arg7[%c1_45, %c4_46, %c0_47, %c0_48], %56 {strides = array<i32>} : memref<4x8x16x16xf32, #tpu.memory_space<vmem>>, vector<1x1x16x16xf32>,
    %57 = vector.extract_strided_slice %4 {offsets = [208, 0], sizes = [16, 16], strides = [1, 1]} : vector<512x16xf32> to vector<16x16xf32>
    %c1_49 = arith.constant 1 : index
    %c5_50 = arith.constant 5 : index
    %c0_51 = arith.constant 0 : index
    %c0_52 = arith.constant 0 : index
    %58 = vector.load %arg7[%c1_49, %c5_50, %c0_51, %c0_52] : memref<4x8x16x16xf32, #tpu.memory_space<vmem>>, vector<1x1x16x16xf32>
    %59 = vector.shape_cast %58 : vector<1x1x16x16xf32> to vector<16x16xf32>
    %60 = vector.shape_cast %57 : vector<16x16xf32> to vector<1x1x16x16xf32>
    tpu.vector_store %arg7[%c1_49, %c5_50, %c0_51, %c0_52], %60 {strides = array<i32>} : memref<4x8x16x16xf32, #tpu.memory_space<vmem>>, vector<1x1x16x16xf32>,
    %61 = vector.extract_strided_slice %4 {offsets = [224, 0], sizes = [16, 16], strides = [1, 1]} : vector<512x16xf32> to vector<16x16xf32>
    %c1_53 = arith.constant 1 : index
    %c6_54 = arith.constant 6 : index
    %c0_55 = arith.constant 0 : index
    %c0_56 = arith.constant 0 : index
    %62 = vector.load %arg7[%c1_53, %c6_54, %c0_55, %c0_56] : memref<4x8x16x16xf32, #tpu.memory_space<vmem>>, vector<1x1x16x16xf32>
    %63 = vector.shape_cast %62 : vector<1x1x16x16xf32> to vector<16x16xf32>
    %64 = vector.shape_cast %61 : vector<16x16xf32> to vector<1x1x16x16xf32>
    tpu.vector_store %arg7[%c1_53, %c6_54, %c0_55, %c0_56], %64 {strides = array<i32>} : memref<4x8x16x16xf32, #tpu.memory_space<vmem>>, vector<1x1x16x16xf32>,
    %65 = vector.extract_strided_slice %4 {offsets = [240, 0], sizes = [16, 16], strides = [1, 1]} : vector<512x16xf32> to vector<16x16xf32>
    %c1_57 = arith.constant 1 : index
    %c7_58 = arith.constant 7 : index
    %c0_59 = arith.constant 0 : index
    %c0_60 = arith.constant 0 : index
    %66 = vector.load %arg7[%c1_57, %c7_58, %c0_59, %c0_60] : memref<4x8x16x16xf32, #tpu.memory_space<vmem>>, vector<1x1x16x16xf32>
    %67 = vector.shape_cast %66 : vector<1x1x16x16xf32> to vector<16x16xf32>
    %68 = vector.shape_cast %65 : vector<16x16xf32> to vector<1x1x16x16xf32>
    tpu.vector_store %arg7[%c1_57, %c7_58, %c0_59, %c0_60], %68 {strides = array<i32>} : memref<4x8x16x16xf32, #tpu.memory_space<vmem>>, vector<1x1x16x16xf32>,
    %69 = vector.extract_strided_slice %4 {offsets = [256, 0], sizes = [16, 16], strides = [1, 1]} : vector<512x16xf32> to vector<16x16xf32>
    %c2_61 = arith.constant 2 : index
    %c0_62 = arith.constant 0 : index
    %c0_63 = arith.constant 0 : index
    %c0_64 = arith.constant 0 : index
    %70 = vector.load %arg7[%c2_61, %c0_62, %c0_63, %c0_64] : memref<4x8x16x16xf32, #tpu.memory_space<vmem>>, vector<1x1x16x16xf32>
    %71 = vector.shape_cast %70 : vector<1x1x16x16xf32> to vector<16x16xf32>
    %72 = vector.shape_cast %69 : vector<16x16xf32> to vector<1x1x16x16xf32>
    tpu.vector_store %arg7[%c2_61, %c0_62, %c0_63, %c0_64], %72 {strides = array<i32>} : memref<4x8x16x16xf32, #tpu.memory_space<vmem>>, vector<1x1x16x16xf32>,
    %73 = vector.extract_strided_slice %4 {offsets = [272, 0], sizes = [16, 16], strides = [1, 1]} : vector<512x16xf32> to vector<16x16xf32>
    %c2_65 = arith.constant 2 : index
    %c1_66 = arith.constant 1 : index
    %c0_67 = arith.constant 0 : index
    %c0_68 = arith.constant 0 : index
    %74 = vector.load %arg7[%c2_65, %c1_66, %c0_67, %c0_68] : memref<4x8x16x16xf32, #tpu.memory_space<vmem>>, vector<1x1x16x16xf32>
    %75 = vector.shape_cast %74 : vector<1x1x16x16xf32> to vector<16x16xf32>
    %76 = vector.shape_cast %73 : vector<16x16xf32> to vector<1x1x16x16xf32>
    tpu.vector_store %arg7[%c2_65, %c1_66, %c0_67, %c0_68], %76 {strides = array<i32>} : memref<4x8x16x16xf32, #tpu.memory_space<vmem>>, vector<1x1x16x16xf32>,
    %77 = vector.extract_strided_slice %4 {offsets = [288, 0], sizes = [16, 16], strides = [1, 1]} : vector<512x16xf32> to vector<16x16xf32>
    %c2_69 = arith.constant 2 : index
    %c2_70 = arith.constant 2 : index
    %c0_71 = arith.constant 0 : index
    %c0_72 = arith.constant 0 : index
    %78 = vector.load %arg7[%c2_69, %c2_70, %c0_71, %c0_72] : memref<4x8x16x16xf32, #tpu.memory_space<vmem>>, vector<1x1x16x16xf32>
    %79 = vector.shape_cast %78 : vector<1x1x16x16xf32> to vector<16x16xf32>
    %80 = vector.shape_cast %77 : vector<16x16xf32> to vector<1x1x16x16xf32>
    tpu.vector_store %arg7[%c2_69, %c2_70, %c0_71, %c0_72], %80 {strides = array<i32>} : memref<4x8x16x16xf32, #tpu.memory_space<vmem>>, vector<1x1x16x16xf32>,
    %81 = vector.extract_strided_slice %4 {offsets = [304, 0], sizes = [16, 16], strides = [1, 1]} : vector<512x16xf32> to vector<16x16xf32>
    %c2_73 = arith.constant 2 : index
    %c3_74 = arith.constant 3 : index
    %c0_75 = arith.constant 0 : index
    %c0_76 = arith.constant 0 : index
    %82 = vector.load %arg7[%c2_73, %c3_74, %c0_75, %c0_76] : memref<4x8x16x16xf32, #tpu.memory_space<vmem>>, vector<1x1x16x16xf32>
    %83 = vector.shape_cast %82 : vector<1x1x16x16xf32> to vector<16x16xf32>
    %84 = vector.shape_cast %81 : vector<16x16xf32> to vector<1x1x16x16xf32>
    tpu.vector_store %arg7[%c2_73, %c3_74, %c0_75, %c0_76], %84 {strides = array<i32>} : memref<4x8x16x16xf32, #tpu.memory_space<vmem>>, vector<1x1x16x16xf32>,
    %85 = vector.extract_strided_slice %4 {offsets = [320, 0], sizes = [16, 16], strides = [1, 1]} : vector<512x16xf32> to vector<16x16xf32>
    %c2_77 = arith.constant 2 : index
    %c4_78 = arith.constant 4 : index
    %c0_79 = arith.constant 0 : index
    %c0_80 = arith.constant 0 : index
    %86 = vector.load %arg7[%c2_77, %c4_78, %c0_79, %c0_80] : memref<4x8x16x16xf32, #tpu.memory_space<vmem>>, vector<1x1x16x16xf32>
    %87 = vector.shape_cast %86 : vector<1x1x16x16xf32> to vector<16x16xf32>
    %88 = vector.shape_cast %85 : vector<16x16xf32> to vector<1x1x16x16xf32>
    tpu.vector_store %arg7[%c2_77, %c4_78, %c0_79, %c0_80], %88 {strides = array<i32>} : memref<4x8x16x16xf32, #tpu.memory_space<vmem>>, vector<1x1x16x16xf32>,
    %89 = vector.extract_strided_slice %4 {offsets = [336, 0], sizes = [16, 16], strides = [1, 1]} : vector<512x16xf32> to vector<16x16xf32>
    %c2_81 = arith.constant 2 : index
    %c5_82 = arith.constant 5 : index
    %c0_83 = arith.constant 0 : index
    %c0_84 = arith.constant 0 : index
    %90 = vector.load %arg7[%c2_81, %c5_82, %c0_83, %c0_84] : memref<4x8x16x16xf32, #tpu.memory_space<vmem>>, vector<1x1x16x16xf32>
    %91 = vector.shape_cast %90 : vector<1x1x16x16xf32> to vector<16x16xf32>
    %92 = vector.shape_cast %89 : vector<16x16xf32> to vector<1x1x16x16xf32>
    tpu.vector_store %arg7[%c2_81, %c5_82, %c0_83, %c0_84], %92 {strides = array<i32>} : memref<4x8x16x16xf32, #tpu.memory_space<vmem>>, vector<1x1x16x16xf32>,
    %93 = vector.extract_strided_slice %4 {offsets = [352, 0], sizes = [16, 16], strides = [1, 1]} : vector<512x16xf32> to vector<16x16xf32>
    %c2_85 = arith.constant 2 : index
    %c6_86 = arith.constant 6 : index
    %c0_87 = arith.constant 0 : index
    %c0_88 = arith.constant 0 : index
    %94 = vector.load %arg7[%c2_85, %c6_86, %c0_87, %c0_88] : memref<4x8x16x16xf32, #tpu.memory_space<vmem>>, vector<1x1x16x16xf32>
    %95 = vector.shape_cast %94 : vector<1x1x16x16xf32> to vector<16x16xf32>
    %96 = vector.shape_cast %93 : vector<16x16xf32> to vector<1x1x16x16xf32>
    tpu.vector_store %arg7[%c2_85, %c6_86, %c0_87, %c0_88], %96 {strides = array<i32>} : memref<4x8x16x16xf32, #tpu.memory_space<vmem>>, vector<1x1x16x16xf32>,
    %97 = vector.extract_strided_slice %4 {offsets = [368, 0], sizes = [16, 16], strides = [1, 1]} : vector<512x16xf32> to vector<16x16xf32>
    %c2_89 = arith.constant 2 : index
    %c7_90 = arith.constant 7 : index
    %c0_91 = arith.constant 0 : index
    %c0_92 = arith.constant 0 : index
    %98 = vector.load %arg7[%c2_89, %c7_90, %c0_91, %c0_92] : memref<4x8x16x16xf32, #tpu.memory_space<vmem>>, vector<1x1x16x16xf32>
    %99 = vector.shape_cast %98 : vector<1x1x16x16xf32> to vector<16x16xf32>
    %100 = vector.shape_cast %97 : vector<16x16xf32> to vector<1x1x16x16xf32>
    tpu.vector_store %arg7[%c2_89, %c7_90, %c0_91, %c0_92], %100 {strides = array<i32>} : memref<4x8x16x16xf32, #tpu.memory_space<vmem>>, vector<1x1x16x16xf32>,
    %101 = vector.extract_strided_slice %4 {offsets = [384, 0], sizes = [16, 16], strides = [1, 1]} : vector<512x16xf32> to vector<16x16xf32>
    %c3_93 = arith.constant 3 : index
    %c0_94 = arith.constant 0 : index
    %c0_95 = arith.constant 0 : index
    %c0_96 = arith.constant 0 : index
    %102 = vector.load %arg7[%c3_93, %c0_94, %c0_95, %c0_96] : memref<4x8x16x16xf32, #tpu.memory_space<vmem>>, vector<1x1x16x16xf32>
    %103 = vector.shape_cast %102 : vector<1x1x16x16xf32> to vector<16x16xf32>
    %104 = vector.shape_cast %101 : vector<16x16xf32> to vector<1x1x16x16xf32>
    tpu.vector_store %arg7[%c3_93, %c0_94, %c0_95, %c0_96], %104 {strides = array<i32>} : memref<4x8x16x16xf32, #tpu.memory_space<vmem>>, vector<1x1x16x16xf32>,
    %105 = vector.extract_strided_slice %4 {offsets = [400, 0], sizes = [16, 16], strides = [1, 1]} : vector<512x16xf32> to vector<16x16xf32>
    %c3_97 = arith.constant 3 : index
    %c1_98 = arith.constant 1 : index
    %c0_99 = arith.constant 0 : index
    %c0_100 = arith.constant 0 : index
    %106 = vector.load %arg7[%c3_97, %c1_98, %c0_99, %c0_100] : memref<4x8x16x16xf32, #tpu.memory_space<vmem>>, vector<1x1x16x16xf32>
    %107 = vector.shape_cast %106 : vector<1x1x16x16xf32> to vector<16x16xf32>
    %108 = vector.shape_cast %105 : vector<16x16xf32> to vector<1x1x16x16xf32>
    tpu.vector_store %arg7[%c3_97, %c1_98, %c0_99, %c0_100], %108 {strides = array<i32>} : memref<4x8x16x16xf32, #tpu.memory_space<vmem>>, vector<1x1x16x16xf32>,
    %109 = vector.extract_strided_slice %4 {offsets = [416, 0], sizes = [16, 16], strides = [1, 1]} : vector<512x16xf32> to vector<16x16xf32>
    %c3_101 = arith.constant 3 : index
    %c2_102 = arith.constant 2 : index
    %c0_103 = arith.constant 0 : index
    %c0_104 = arith.constant 0 : index
    %110 = vector.load %arg7[%c3_101, %c2_102, %c0_103, %c0_104] : memref<4x8x16x16xf32, #tpu.memory_space<vmem>>, vector<1x1x16x16xf32>
    %111 = vector.shape_cast %110 : vector<1x1x16x16xf32> to vector<16x16xf32>
    %112 = vector.shape_cast %109 : vector<16x16xf32> to vector<1x1x16x16xf32>
    tpu.vector_store %arg7[%c3_101, %c2_102, %c0_103, %c0_104], %112 {strides = array<i32>} : memref<4x8x16x16xf32, #tpu.memory_space<vmem>>, vector<1x1x16x16xf32>,
    %113 = vector.extract_strided_slice %4 {offsets = [432, 0], sizes = [16, 16], strides = [1, 1]} : vector<512x16xf32> to vector<16x16xf32>
    %c3_105 = arith.constant 3 : index
    %c3_106 = arith.constant 3 : index
    %c0_107 = arith.constant 0 : index
    %c0_108 = arith.constant 0 : index
    %114 = vector.load %arg7[%c3_105, %c3_106, %c0_107, %c0_108] : memref<4x8x16x16xf32, #tpu.memory_space<vmem>>, vector<1x1x16x16xf32>
    %115 = vector.shape_cast %114 : vector<1x1x16x16xf32> to vector<16x16xf32>
    %116 = vector.shape_cast %113 : vector<16x16xf32> to vector<1x1x16x16xf32>
    tpu.vector_store %arg7[%c3_105, %c3_106, %c0_107, %c0_108], %116 {strides = array<i32>} : memref<4x8x16x16xf32, #tpu.memory_space<vmem>>, vector<1x1x16x16xf32>,
    %117 = vector.extract_strided_slice %4 {offsets = [448, 0], sizes = [16, 16], strides = [1, 1]} : vector<512x16xf32> to vector<16x16xf32>
    %c3_109 = arith.constant 3 : index
    %c4_110 = arith.constant 4 : index
    %c0_111 = arith.constant 0 : index
    %c0_112 = arith.constant 0 : index
    %118 = vector.load %arg7[%c3_109, %c4_110, %c0_111, %c0_112] : memref<4x8x16x16xf32, #tpu.memory_space<vmem>>, vector<1x1x16x16xf32>
    %119 = vector.shape_cast %118 : vector<1x1x16x16xf32> to vector<16x16xf32>
    %120 = vector.shape_cast %117 : vector<16x16xf32> to vector<1x1x16x16xf32>
    tpu.vector_store %arg7[%c3_109, %c4_110, %c0_111, %c0_112], %120 {strides = array<i32>} : memref<4x8x16x16xf32, #tpu.memory_space<vmem>>, vector<1x1x16x16xf32>,
    %121 = vector.extract_strided_slice %4 {offsets = [464, 0], sizes = [16, 16], strides = [1, 1]} : vector<512x16xf32> to vector<16x16xf32>
    %c3_113 = arith.constant 3 : index
    %c5_114 = arith.constant 5 : index
    %c0_115 = arith.constant 0 : index
    %c0_116 = arith.constant 0 : index
    %122 = vector.load %arg7[%c3_113, %c5_114, %c0_115, %c0_116] : memref<4x8x16x16xf32, #tpu.memory_space<vmem>>, vector<1x1x16x16xf32>
    %123 = vector.shape_cast %122 : vector<1x1x16x16xf32> to vector<16x16xf32>
    %124 = vector.shape_cast %121 : vector<16x16xf32> to vector<1x1x16x16xf32>
    tpu.vector_store %arg7[%c3_113, %c5_114, %c0_115, %c0_116], %124 {strides = array<i32>} : memref<4x8x16x16xf32, #tpu.memory_space<vmem>>, vector<1x1x16x16xf32>,
    %125 = vector.extract_strided_slice %4 {offsets = [480, 0], sizes = [16, 16], strides = [1, 1]} : vector<512x16xf32> to vector<16x16xf32>
    %c3_117 = arith.constant 3 : index
    %c6_118 = arith.constant 6 : index
    %c0_119 = arith.constant 0 : index
    %c0_120 = arith.constant 0 : index
    %126 = vector.load %arg7[%c3_117, %c6_118, %c0_119, %c0_120] : memref<4x8x16x16xf32, #tpu.memory_space<vmem>>, vector<1x1x16x16xf32>
    %127 = vector.shape_cast %126 : vector<1x1x16x16xf32> to vector<16x16xf32>
    %128 = vector.shape_cast %125 : vector<16x16xf32> to vector<1x1x16x16xf32>
    tpu.vector_store %arg7[%c3_117, %c6_118, %c0_119, %c0_120], %128 {strides = array<i32>} : memref<4x8x16x16xf32, #tpu.memory_space<vmem>>, vector<1x1x16x16xf32>,
    %129 = vector.extract_strided_slice %4 {offsets = [496, 0], sizes = [16, 16], strides = [1, 1]} : vector<512x16xf32> to vector<16x16xf32>
    %c3_121 = arith.constant 3 : index
    %c7_122 = arith.constant 7 : index
    %c0_123 = arith.constant 0 : index
    %c0_124 = arith.constant 0 : index
    %130 = vector.load %arg7[%c3_121, %c7_122, %c0_123, %c0_124] : memref<4x8x16x16xf32, #tpu.memory_space<vmem>>, vector<1x1x16x16xf32>
    %131 = vector.shape_cast %130 : vector<1x1x16x16xf32> to vector<16x16xf32>
    %132 = vector.shape_cast %129 : vector<16x16xf32> to vector<1x1x16x16xf32>
    tpu.vector_store %arg7[%c3_121, %c7_122, %c0_123, %c0_124], %132 {strides = array<i32>} : memref<4x8x16x16xf32, #tpu.memory_space<vmem>>, vector<1x1x16x16xf32>,
    %c0_125 = arith.constant 0 : index
    %c0_126 = arith.constant 0 : index
    %133 = vector.load %arg3[%c0_125, %c0_126] : memref<1x8xf32, #tpu.memory_space<vmem>>, vector<1x8xf32>
    %cst_127 = arith.constant 0.000000e+00 : f32
    %134 = vector.broadcast %cst_127 : f32 to vector<2x128xf32>
    %c0_128 = arith.constant 0 : index
    %c0_129 = arith.constant 0 : index
    %c0_130 = arith.constant 0 : index
    %c0_131 = arith.constant 0 : index
    %135 = vector.load %arg7[%c0_128, %c0_129, %c0_130, %c0_131] : memref<4x8x16x16xf32, #tpu.memory_space<vmem>>, vector<1x1x14x16xf32>
    %136 = vector.shape_cast %135 : vector<1x1x14x16xf32> to vector<14x16xf32>
    %c1_132 = arith.constant 1 : index
    %c0_133 = arith.constant 0 : index
    %c0_134 = arith.constant 0 : index
    %c0_135 = arith.constant 0 : index
    %137 = vector.load %arg7[%c1_132, %c0_133, %c0_134, %c0_135] : memref<4x8x16x16xf32, #tpu.memory_space<vmem>>, vector<1x1x14x16xf32>
    %138 = vector.shape_cast %137 : vector<1x1x14x16xf32> to vector<14x16xf32>
    %c0_136 = arith.constant 0 : index
    %c0_137 = arith.constant 0 : index
    %c2_138 = arith.constant 2 : index
    %c0_139 = arith.constant 0 : index
    %139 = vector.load %arg7[%c0_136, %c0_137, %c2_138, %c0_139] : memref<4x8x16x16xf32, #tpu.memory_space<vmem>>, vector<1x1x14x16xf32>
    %140 = vector.shape_cast %139 : vector<1x1x14x16xf32> to vector<14x16xf32>
    %c2_140 = arith.constant 2 : index
    %c0_141 = arith.constant 0 : index
    %c0_142 = arith.constant 0 : index
    %c0_143 = arith.constant 0 : index
    %141 = vector.load %arg7[%c2_140, %c0_141, %c0_142, %c0_143] : memref<4x8x16x16xf32, #tpu.memory_space<vmem>>, vector<1x1x14x16xf32>
    %142 = vector.shape_cast %141 : vector<1x1x14x16xf32> to vector<14x16xf32>
    %c3_144 = arith.constant 3 : index
    %c0_145 = arith.constant 0 : index
    %c0_146 = arith.constant 0 : index
    %c0_147 = arith.constant 0 : index
    %143 = vector.load %arg7[%c3_144, %c0_145, %c0_146, %c0_147] : memref<4x8x16x16xf32, #tpu.memory_space<vmem>>, vector<1x1x14x16xf32>
    %144 = vector.shape_cast %143 : vector<1x1x14x16xf32> to vector<14x16xf32>
    %c2_148 = arith.constant 2 : index
    %c0_149 = arith.constant 0 : index
    %c2_150 = arith.constant 2 : index
    %c0_151 = arith.constant 0 : index
    %145 = vector.load %arg7[%c2_148, %c0_149, %c2_150, %c0_151] : memref<4x8x16x16xf32, #tpu.memory_space<vmem>>, vector<1x1x14x16xf32>
    %146 = vector.shape_cast %145 : vector<1x1x14x16xf32> to vector<14x16xf32>
    %c0_152 = arith.constant 0 : index
    %c1_153 = arith.constant 1 : index
    %c0_154 = arith.constant 0 : index
    %c0_155 = arith.constant 0 : index
    %147 = vector.load %arg7[%c0_152, %c1_153, %c0_154, %c0_155] : memref<4x8x16x16xf32, #tpu.memory_space<vmem>>, vector<1x1x14x16xf32>
    %148 = vector.shape_cast %147 : vector<1x1x14x16xf32> to vector<14x16xf32>
    %c1_156 = arith.constant 1 : index
    %c1_157 = arith.constant 1 : index
    %c0_158 = arith.constant 0 : index
    %c0_159 = arith.constant 0 : index
    %149 = vector.load %arg7[%c1_156, %c1_157, %c0_158, %c0_159] : memref<4x8x16x16xf32, #tpu.memory_space<vmem>>, vector<1x1x14x16xf32>
    %150 = vector.shape_cast %149 : vector<1x1x14x16xf32> to vector<14x16xf32>
    %c0_160 = arith.constant 0 : index
    %c1_161 = arith.constant 1 : index
    %c2_162 = arith.constant 2 : index
    %c0_163 = arith.constant 0 : index
    %151 = vector.load %arg7[%c0_160, %c1_161, %c2_162, %c0_163] : memref<4x8x16x16xf32, #tpu.memory_space<vmem>>, vector<1x1x14x16xf32>
    %152 = vector.shape_cast %151 : vector<1x1x14x16xf32> to vector<14x16xf32>
    %153 = tpu.concatenate %136, %138, %140, %142, %144, %146, %148, %150, %152 in 1 : vector<14x16xf32>, vector<14x16xf32>, vector<14x16xf32>, vector<14x16xf32>, vector<14x16xf32>, vector<14x16xf32>, vector<14x16xf32>, vector<14x16xf32>, vector<14x16xf32> -> vector<14x144xf32>
    %c0_164 = arith.constant 0 : index
    %c0_165 = arith.constant 0 : index
    %154 = vector.load %arg2[%c0_164, %c0_165] : memref<144x8xf32, #tpu.memory_space<vmem>>, vector<144x8xf32>
    %cst_166 = arith.constant dense<0.000000e+00> : vector<14x8xf32>
    %155 = tpu.matmul %153, %154, %cst_166 {dimension_numbers = #tpu.dot_dimension_numbers<[1], [0], [0], [1], [0, 0, 1, 1], [], []>} : vector<14x144xf32>, vector<144x8xf32>, vector<14x8xf32> -> vector<14x8xf32>
    %156 = vector.broadcast %133 : vector<1x8xf32> to vector<14x8xf32>
    %157 = arith.addf %155, %156 : vector<14x8xf32>
    %cst_167 = arith.constant 0.000000e+00 : f32
    %158 = vector.broadcast %cst_167 : f32 to vector<14x8xf32>
    %159 = arith.maximumf %157, %158 : vector<14x8xf32>
    %160 = vector.extract_strided_slice %159 {offsets = [0, 0], sizes = [2, 8], strides = [1, 1]} : vector<14x8xf32> to vector<2x8xf32>
    %c0_168 = arith.constant 0 : index
    %c0_169 = arith.constant 0 : index
    %c0_170 = arith.constant 0 : index
    %161 = vector.load %arg4[%c0_168, %c0_169, %c0_170] : memref<49x8x128xf32, #tpu.memory_space<vmem>>, vector<1x8x128xf32>
    %162 = vector.shape_cast %161 : vector<1x8x128xf32> to vector<8x128xf32>
    %cst_171 = arith.constant dense<0.000000e+00> : vector<2x128xf32>
    %163 = tpu.matmul %160, %162, %cst_171 {dimension_numbers = #tpu.dot_dimension_numbers<[1], [0], [0], [1], [0, 0, 1, 1], [], []>} : vector<2x8xf32>, vector<8x128xf32>, vector<2x128xf32> -> vector<2x128xf32>
    %164 = arith.addf %134, %163 : vector<2x128xf32>
    %165 = vector.extract_strided_slice %159 {offsets = [2, 0], sizes = [2, 8], strides = [1, 1]} : vector<14x8xf32> to vector<2x8xf32>
    %c1_172 = arith.constant 1 : index
    %c0_173 = arith.constant 0 : index
    %c0_174 = arith.constant 0 : index
    %166 = vector.load %arg4[%c1_172, %c0_173, %c0_174] : memref<49x8x128xf32, #tpu.memory_space<vmem>>, vector<1x8x128xf32>
    %167 = vector.shape_cast %166 : vector<1x8x128xf32> to vector<8x128xf32>
    %cst_175 = arith.constant dense<0.000000e+00> : vector<2x128xf32>
    %168 = tpu.matmul %165, %167, %cst_175 {dimension_numbers = #tpu.dot_dimension_numbers<[1], [0], [0], [1], [0, 0, 1, 1], [], []>} : vector<2x8xf32>, vector<8x128xf32>, vector<2x128xf32> -> vector<2x128xf32>
    %169 = arith.addf %164, %168 : vector<2x128xf32>
    %170 = vector.extract_strided_slice %159 {offsets = [4, 0], sizes = [2, 8], strides = [1, 1]} : vector<14x8xf32> to vector<2x8xf32>
    %c2_176 = arith.constant 2 : index
    %c0_177 = arith.constant 0 : index
    %c0_178 = arith.constant 0 : index
    %171 = vector.load %arg4[%c2_176, %c0_177, %c0_178] : memref<49x8x128xf32, #tpu.memory_space<vmem>>, vector<1x8x128xf32>
    %172 = vector.shape_cast %171 : vector<1x8x128xf32> to vector<8x128xf32>
    %cst_179 = arith.constant dense<0.000000e+00> : vector<2x128xf32>
    %173 = tpu.matmul %170, %172, %cst_179 {dimension_numbers = #tpu.dot_dimension_numbers<[1], [0], [0], [1], [0, 0, 1, 1], [], []>} : vector<2x8xf32>, vector<8x128xf32>, vector<2x128xf32> -> vector<2x128xf32>
    %174 = arith.addf %169, %173 : vector<2x128xf32>
    %175 = vector.extract_strided_slice %159 {offsets = [6, 0], sizes = [2, 8], strides = [1, 1]} : vector<14x8xf32> to vector<2x8xf32>
    %c3_180 = arith.constant 3 : index
    %c0_181 = arith.constant 0 : index
    %c0_182 = arith.constant 0 : index
    %176 = vector.load %arg4[%c3_180, %c0_181, %c0_182] : memref<49x8x128xf32, #tpu.memory_space<vmem>>, vector<1x8x128xf32>
    %177 = vector.shape_cast %176 : vector<1x8x128xf32> to vector<8x128xf32>
    %cst_183 = arith.constant dense<0.000000e+00> : vector<2x128xf32>
    %178 = tpu.matmul %175, %177, %cst_183 {dimension_numbers = #tpu.dot_dimension_numbers<[1], [0], [0], [1], [0, 0, 1, 1], [], []>} : vector<2x8xf32>, vector<8x128xf32>, vector<2x128xf32> -> vector<2x128xf32>
    %179 = arith.addf %174, %178 : vector<2x128xf32>
    %180 = vector.extract_strided_slice %159 {offsets = [8, 0], sizes = [2, 8], strides = [1, 1]} : vector<14x8xf32> to vector<2x8xf32>
    %c4_184 = arith.constant 4 : index
    %c0_185 = arith.constant 0 : index
    %c0_186 = arith.constant 0 : index
    %181 = vector.load %arg4[%c4_184, %c0_185, %c0_186] : memref<49x8x128xf32, #tpu.memory_space<vmem>>, vector<1x8x128xf32>
    %182 = vector.shape_cast %181 : vector<1x8x128xf32> to vector<8x128xf32>
    %cst_187 = arith.constant dense<0.000000e+00> : vector<2x128xf32>
    %183 = tpu.matmul %180, %182, %cst_187 {dimension_numbers = #tpu.dot_dimension_numbers<[1], [0], [0], [1], [0, 0, 1, 1], [], []>} : vector<2x8xf32>, vector<8x128xf32>, vector<2x128xf32> -> vector<2x128xf32>
    %184 = arith.addf %179, %183 : vector<2x128xf32>
    %185 = vector.extract_strided_slice %159 {offsets = [10, 0], sizes = [2, 8], strides = [1, 1]} : vector<14x8xf32> to vector<2x8xf32>
    %c5_188 = arith.constant 5 : index
    %c0_189 = arith.constant 0 : index
    %c0_190 = arith.constant 0 : index
    %186 = vector.load %arg4[%c5_188, %c0_189, %c0_190] : memref<49x8x128xf32, #tpu.memory_space<vmem>>, vector<1x8x128xf32>
    %187 = vector.shape_cast %186 : vector<1x8x128xf32> to vector<8x128xf32>
    %cst_191 = arith.constant dense<0.000000e+00> : vector<2x128xf32>
    %188 = tpu.matmul %185, %187, %cst_191 {dimension_numbers = #tpu.dot_dimension_numbers<[1], [0], [0], [1], [0, 0, 1, 1], [], []>} : vector<2x8xf32>, vector<8x128xf32>, vector<2x128xf32> -> vector<2x128xf32>
    %189 = arith.addf %184, %188 : vector<2x128xf32>
    %190 = vector.extract_strided_slice %159 {offsets = [12, 0], sizes = [2, 8], strides = [1, 1]} : vector<14x8xf32> to vector<2x8xf32>
    %c6_192 = arith.constant 6 : index
    %c0_193 = arith.constant 0 : index
    %c0_194 = arith.constant 0 : index
    %191 = vector.load %arg4[%c6_192, %c0_193, %c0_194] : memref<49x8x128xf32, #tpu.memory_space<vmem>>, vector<1x8x128xf32>
    %192 = vector.shape_cast %191 : vector<1x8x128xf32> to vector<8x128xf32>
    %cst_195 = arith.constant dense<0.000000e+00> : vector<2x128xf32>
    %193 = tpu.matmul %190, %192, %cst_195 {dimension_numbers = #tpu.dot_dimension_numbers<[1], [0], [0], [1], [0, 0, 1, 1], [], []>} : vector<2x8xf32>, vector<8x128xf32>, vector<2x128xf32> -> vector<2x128xf32>
    %194 = arith.addf %189, %193 : vector<2x128xf32>
    %c0_196 = arith.constant 0 : index
    %c1_197 = arith.constant 1 : index
    %c0_198 = arith.constant 0 : index
    %c0_199 = arith.constant 0 : index
    %195 = vector.load %arg7[%c0_196, %c1_197, %c0_198, %c0_199] : memref<4x8x16x16xf32, #tpu.memory_space<vmem>>, vector<1x1x14x16xf32>
    %196 = vector.shape_cast %195 : vector<1x1x14x16xf32> to vector<14x16xf32>
    %c1_200 = arith.constant 1 : index
    %c1_201 = arith.constant 1 : index
    %c0_202 = arith.constant 0 : index
    %c0_203 = arith.constant 0 : index
    %197 = vector.load %arg7[%c1_200, %c1_201, %c0_202, %c0_203] : memref<4x8x16x16xf32, #tpu.memory_space<vmem>>, vector<1x1x14x16xf32>
    %198 = vector.shape_cast %197 : vector<1x1x14x16xf32> to vector<14x16xf32>
    %c0_204 = arith.constant 0 : index
    %c1_205 = arith.constant 1 : index
    %c2_206 = arith.constant 2 : index
    %c0_207 = arith.constant 0 : index
    %199 = vector.load %arg7[%c0_204, %c1_205, %c2_206, %c0_207] : memref<4x8x16x16xf32, #tpu.memory_space<vmem>>, vector<1x1x14x16xf32>
    %200 = vector.shape_cast %199 : vector<1x1x14x16xf32> to vector<14x16xf32>
    %c2_208 = arith.constant 2 : index
    %c1_209 = arith.constant 1 : index
    %c0_210 = arith.constant 0 : index
    %c0_211 = arith.constant 0 : index
    %201 = vector.load %arg7[%c2_208, %c1_209, %c0_210, %c0_211] : memref<4x8x16x16xf32, #tpu.memory_space<vmem>>, vector<1x1x14x16xf32>
    %202 = vector.shape_cast %201 : vector<1x1x14x16xf32> to vector<14x16xf32>
    %c3_212 = arith.constant 3 : index
    %c1_213 = arith.constant 1 : index
    %c0_214 = arith.constant 0 : index
    %c0_215 = arith.constant 0 : index
    %203 = vector.load %arg7[%c3_212, %c1_213, %c0_214, %c0_215] : memref<4x8x16x16xf32, #tpu.memory_space<vmem>>, vector<1x1x14x16xf32>
    %204 = vector.shape_cast %203 : vector<1x1x14x16xf32> to vector<14x16xf32>
    %c2_216 = arith.constant 2 : index
    %c1_217 = arith.constant 1 : index
    %c2_218 = arith.constant 2 : index
    %c0_219 = arith.constant 0 : index
    %205 = vector.load %arg7[%c2_216, %c1_217, %c2_218, %c0_219] : memref<4x8x16x16xf32, #tpu.memory_space<vmem>>, vector<1x1x14x16xf32>
    %206 = vector.shape_cast %205 : vector<1x1x14x16xf32> to vector<14x16xf32>
    %c0_220 = arith.constant 0 : index
    %c2_221 = arith.constant 2 : index
    %c0_222 = arith.constant 0 : index
    %c0_223 = arith.constant 0 : index
    %207 = vector.load %arg7[%c0_220, %c2_221, %c0_222, %c0_223] : memref<4x8x16x16xf32, #tpu.memory_space<vmem>>, vector<1x1x14x16xf32>
    %208 = vector.shape_cast %207 : vector<1x1x14x16xf32> to vector<14x16xf32>
    %c1_224 = arith.constant 1 : index
    %c2_225 = arith.constant 2 : index
    %c0_226 = arith.constant 0 : index
    %c0_227 = arith.constant 0 : index
    %209 = vector.load %arg7[%c1_224, %c2_225, %c0_226, %c0_227] : memref<4x8x16x16xf32, #tpu.memory_space<vmem>>, vector<1x1x14x16xf32>
    %210 = vector.shape_cast %209 : vector<1x1x14x16xf32> to vector<14x16xf32>
    %c0_228 = arith.constant 0 : index
    %c2_229 = arith.constant 2 : index
    %c2_230 = arith.constant 2 : index
    %c0_231 = arith.constant 0 : index
    %211 = vector.load %arg7[%c0_228, %c2_229, %c2_230, %c0_231] : memref<4x8x16x16xf32, #tpu.memory_space<vmem>>, vector<1x1x14x16xf32>
    %212 = vector.shape_cast %211 : vector<1x1x14x16xf32> to vector<14x16xf32>
    %213 = tpu.concatenate %196, %198, %200, %202, %204, %206, %208, %210, %212 in 1 : vector<14x16xf32>, vector<14x16xf32>, vector<14x16xf32>, vector<14x16xf32>, vector<14x16xf32>, vector<14x16xf32>, vector<14x16xf32>, vector<14x16xf32>, vector<14x16xf32> -> vector<14x144xf32>
    %c0_232 = arith.constant 0 : index
    %c0_233 = arith.constant 0 : index
    %214 = vector.load %arg2[%c0_232, %c0_233] : memref<144x8xf32, #tpu.memory_space<vmem>>, vector<144x8xf32>
    %cst_234 = arith.constant dense<0.000000e+00> : vector<14x8xf32>
    %215 = tpu.matmul %213, %214, %cst_234 {dimension_numbers = #tpu.dot_dimension_numbers<[1], [0], [0], [1], [0, 0, 1, 1], [], []>} : vector<14x144xf32>, vector<144x8xf32>, vector<14x8xf32> -> vector<14x8xf32>
    %216 = vector.broadcast %133 : vector<1x8xf32> to vector<14x8xf32>
    %217 = arith.addf %215, %216 : vector<14x8xf32>
    %cst_235 = arith.constant 0.000000e+00 : f32
    %218 = vector.broadcast %cst_235 : f32 to vector<14x8xf32>
    %219 = arith.maximumf %217, %218 : vector<14x8xf32>
    %220 = vector.extract_strided_slice %219 {offsets = [0, 0], sizes = [2, 8], strides = [1, 1]} : vector<14x8xf32> to vector<2x8xf32>
    %c7_236 = arith.constant 7 : index
    %c0_237 = arith.constant 0 : index
    %c0_238 = arith.constant 0 : index
    %221 = vector.load %arg4[%c7_236, %c0_237, %c0_238] : memref<49x8x128xf32, #tpu.memory_space<vmem>>, vector<1x8x128xf32>
    %222 = vector.shape_cast %221 : vector<1x8x128xf32> to vector<8x128xf32>
    %cst_239 = arith.constant dense<0.000000e+00> : vector<2x128xf32>
    %223 = tpu.matmul %220, %222, %cst_239 {dimension_numbers = #tpu.dot_dimension_numbers<[1], [0], [0], [1], [0, 0, 1, 1], [], []>} : vector<2x8xf32>, vector<8x128xf32>, vector<2x128xf32> -> vector<2x128xf32>
    %224 = arith.addf %194, %223 : vector<2x128xf32>
    %225 = vector.extract_strided_slice %219 {offsets = [2, 0], sizes = [2, 8], strides = [1, 1]} : vector<14x8xf32> to vector<2x8xf32>
    %c8 = arith.constant 8 : index
    %c0_240 = arith.constant 0 : index
    %c0_241 = arith.constant 0 : index
    %226 = vector.load %arg4[%c8, %c0_240, %c0_241] : memref<49x8x128xf32, #tpu.memory_space<vmem>>, vector<1x8x128xf32>
    %227 = vector.shape_cast %226 : vector<1x8x128xf32> to vector<8x128xf32>
    %cst_242 = arith.constant dense<0.000000e+00> : vector<2x128xf32>
    %228 = tpu.matmul %225, %227, %cst_242 {dimension_numbers = #tpu.dot_dimension_numbers<[1], [0], [0], [1], [0, 0, 1, 1], [], []>} : vector<2x8xf32>, vector<8x128xf32>, vector<2x128xf32> -> vector<2x128xf32>
    %229 = arith.addf %224, %228 : vector<2x128xf32>
    %230 = vector.extract_strided_slice %219 {offsets = [4, 0], sizes = [2, 8], strides = [1, 1]} : vector<14x8xf32> to vector<2x8xf32>
    %c9 = arith.constant 9 : index
    %c0_243 = arith.constant 0 : index
    %c0_244 = arith.constant 0 : index
    %231 = vector.load %arg4[%c9, %c0_243, %c0_244] : memref<49x8x128xf32, #tpu.memory_space<vmem>>, vector<1x8x128xf32>
    %232 = vector.shape_cast %231 : vector<1x8x128xf32> to vector<8x128xf32>
    %cst_245 = arith.constant dense<0.000000e+00> : vector<2x128xf32>
    %233 = tpu.matmul %230, %232, %cst_245 {dimension_numbers = #tpu.dot_dimension_numbers<[1], [0], [0], [1], [0, 0, 1, 1], [], []>} : vector<2x8xf32>, vector<8x128xf32>, vector<2x128xf32> -> vector<2x128xf32>
    %234 = arith.addf %229, %233 : vector<2x128xf32>
    %235 = vector.extract_strided_slice %219 {offsets = [6, 0], sizes = [2, 8], strides = [1, 1]} : vector<14x8xf32> to vector<2x8xf32>
    %c10 = arith.constant 10 : index
    %c0_246 = arith.constant 0 : index
    %c0_247 = arith.constant 0 : index
    %236 = vector.load %arg4[%c10, %c0_246, %c0_247] : memref<49x8x128xf32, #tpu.memory_space<vmem>>, vector<1x8x128xf32>
    %237 = vector.shape_cast %236 : vector<1x8x128xf32> to vector<8x128xf32>
    %cst_248 = arith.constant dense<0.000000e+00> : vector<2x128xf32>
    %238 = tpu.matmul %235, %237, %cst_248 {dimension_numbers = #tpu.dot_dimension_numbers<[1], [0], [0], [1], [0, 0, 1, 1], [], []>} : vector<2x8xf32>, vector<8x128xf32>, vector<2x128xf32> -> vector<2x128xf32>
    %239 = arith.addf %234, %238 : vector<2x128xf32>
    %240 = vector.extract_strided_slice %219 {offsets = [8, 0], sizes = [2, 8], strides = [1, 1]} : vector<14x8xf32> to vector<2x8xf32>
    %c11 = arith.constant 11 : index
    %c0_249 = arith.constant 0 : index
    %c0_250 = arith.constant 0 : index
    %241 = vector.load %arg4[%c11, %c0_249, %c0_250] : memref<49x8x128xf32, #tpu.memory_space<vmem>>, vector<1x8x128xf32>
    %242 = vector.shape_cast %241 : vector<1x8x128xf32> to vector<8x128xf32>
    %cst_251 = arith.constant dense<0.000000e+00> : vector<2x128xf32>
    %243 = tpu.matmul %240, %242, %cst_251 {dimension_numbers = #tpu.dot_dimension_numbers<[1], [0], [0], [1], [0, 0, 1, 1], [], []>} : vector<2x8xf32>, vector<8x128xf32>, vector<2x128xf32> -> vector<2x128xf32>
    %244 = arith.addf %239, %243 : vector<2x128xf32>
    %245 = vector.extract_strided_slice %219 {offsets = [10, 0], sizes = [2, 8], strides = [1, 1]} : vector<14x8xf32> to vector<2x8xf32>
    %c12 = arith.constant 12 : index
    %c0_252 = arith.constant 0 : index
    %c0_253 = arith.constant 0 : index
    %246 = vector.load %arg4[%c12, %c0_252, %c0_253] : memref<49x8x128xf32, #tpu.memory_space<vmem>>, vector<1x8x128xf32>
    %247 = vector.shape_cast %246 : vector<1x8x128xf32> to vector<8x128xf32>
    %cst_254 = arith.constant dense<0.000000e+00> : vector<2x128xf32>
    %248 = tpu.matmul %245, %247, %cst_254 {dimension_numbers = #tpu.dot_dimension_numbers<[1], [0], [0], [1], [0, 0, 1, 1], [], []>} : vector<2x8xf32>, vector<8x128xf32>, vector<2x128xf32> -> vector<2x128xf32>
    %249 = arith.addf %244, %248 : vector<2x128xf32>
    %250 = vector.extract_strided_slice %219 {offsets = [12, 0], sizes = [2, 8], strides = [1, 1]} : vector<14x8xf32> to vector<2x8xf32>
    %c13 = arith.constant 13 : index
    %c0_255 = arith.constant 0 : index
    %c0_256 = arith.constant 0 : index
    %251 = vector.load %arg4[%c13, %c0_255, %c0_256] : memref<49x8x128xf32, #tpu.memory_space<vmem>>, vector<1x8x128xf32>
    %252 = vector.shape_cast %251 : vector<1x8x128xf32> to vector<8x128xf32>
    %cst_257 = arith.constant dense<0.000000e+00> : vector<2x128xf32>
    %253 = tpu.matmul %250, %252, %cst_257 {dimension_numbers = #tpu.dot_dimension_numbers<[1], [0], [0], [1], [0, 0, 1, 1], [], []>} : vector<2x8xf32>, vector<8x128xf32>, vector<2x128xf32> -> vector<2x128xf32>
    %254 = arith.addf %249, %253 : vector<2x128xf32>
    %c0_258 = arith.constant 0 : index
    %c2_259 = arith.constant 2 : index
    %c0_260 = arith.constant 0 : index
    %c0_261 = arith.constant 0 : index
    %255 = vector.load %arg7[%c0_258, %c2_259, %c0_260, %c0_261] : memref<4x8x16x16xf32, #tpu.memory_space<vmem>>, vector<1x1x14x16xf32>
    %256 = vector.shape_cast %255 : vector<1x1x14x16xf32> to vector<14x16xf32>
    %c1_262 = arith.constant 1 : index
    %c2_263 = arith.constant 2 : index
    %c0_264 = arith.constant 0 : index
    %c0_265 = arith.constant 0 : index
    %257 = vector.load %arg7[%c1_262, %c2_263, %c0_264, %c0_265] : memref<4x8x16x16xf32, #tpu.memory_space<vmem>>, vector<1x1x14x16xf32>
    %258 = vector.shape_cast %257 : vector<1x1x14x16xf32> to vector<14x16xf32>
    %c0_266 = arith.constant 0 : index
    %c2_267 = arith.constant 2 : index
    %c2_268 = arith.constant 2 : index
    %c0_269 = arith.constant 0 : index
    %259 = vector.load %arg7[%c0_266, %c2_267, %c2_268, %c0_269] : memref<4x8x16x16xf32, #tpu.memory_space<vmem>>, vector<1x1x14x16xf32>
    %260 = vector.shape_cast %259 : vector<1x1x14x16xf32> to vector<14x16xf32>
    %c2_270 = arith.constant 2 : index
    %c2_271 = arith.constant 2 : index
    %c0_272 = arith.constant 0 : index
    %c0_273 = arith.constant 0 : index
    %261 = vector.load %arg7[%c2_270, %c2_271, %c0_272, %c0_273] : memref<4x8x16x16xf32, #tpu.memory_space<vmem>>, vector<1x1x14x16xf32>
    %262 = vector.shape_cast %261 : vector<1x1x14x16xf32> to vector<14x16xf32>
    %c3_274 = arith.constant 3 : index
    %c2_275 = arith.constant 2 : index
    %c0_276 = arith.constant 0 : index
    %c0_277 = arith.constant 0 : index
    %263 = vector.load %arg7[%c3_274, %c2_275, %c0_276, %c0_277] : memref<4x8x16x16xf32, #tpu.memory_space<vmem>>, vector<1x1x14x16xf32>
    %264 = vector.shape_cast %263 : vector<1x1x14x16xf32> to vector<14x16xf32>
    %c2_278 = arith.constant 2 : index
    %c2_279 = arith.constant 2 : index
    %c2_280 = arith.constant 2 : index
    %c0_281 = arith.constant 0 : index
    %265 = vector.load %arg7[%c2_278, %c2_279, %c2_280, %c0_281] : memref<4x8x16x16xf32, #tpu.memory_space<vmem>>, vector<1x1x14x16xf32>
    %266 = vector.shape_cast %265 : vector<1x1x14x16xf32> to vector<14x16xf32>
    %c0_282 = arith.constant 0 : index
    %c3_283 = arith.constant 3 : index
    %c0_284 = arith.constant 0 : index
    %c0_285 = arith.constant 0 : index
    %267 = vector.load %arg7[%c0_282, %c3_283, %c0_284, %c0_285] : memref<4x8x16x16xf32, #tpu.memory_space<vmem>>, vector<1x1x14x16xf32>
    %268 = vector.shape_cast %267 : vector<1x1x14x16xf32> to vector<14x16xf32>
    %c1_286 = arith.constant 1 : index
    %c3_287 = arith.constant 3 : index
    %c0_288 = arith.constant 0 : index
    %c0_289 = arith.constant 0 : index
    %269 = vector.load %arg7[%c1_286, %c3_287, %c0_288, %c0_289] : memref<4x8x16x16xf32, #tpu.memory_space<vmem>>, vector<1x1x14x16xf32>
    %270 = vector.shape_cast %269 : vector<1x1x14x16xf32> to vector<14x16xf32>
    %c0_290 = arith.constant 0 : index
    %c3_291 = arith.constant 3 : index
    %c2_292 = arith.constant 2 : index
    %c0_293 = arith.constant 0 : index
    %271 = vector.load %arg7[%c0_290, %c3_291, %c2_292, %c0_293] : memref<4x8x16x16xf32, #tpu.memory_space<vmem>>, vector<1x1x14x16xf32>
    %272 = vector.shape_cast %271 : vector<1x1x14x16xf32> to vector<14x16xf32>
    %273 = tpu.concatenate %256, %258, %260, %262, %264, %266, %268, %270, %272 in 1 : vector<14x16xf32>, vector<14x16xf32>, vector<14x16xf32>, vector<14x16xf32>, vector<14x16xf32>, vector<14x16xf32>, vector<14x16xf32>, vector<14x16xf32>, vector<14x16xf32> -> vector<14x144xf32>
    %c0_294 = arith.constant 0 : index
    %c0_295 = arith.constant 0 : index
    %274 = vector.load %arg2[%c0_294, %c0_295] : memref<144x8xf32, #tpu.memory_space<vmem>>, vector<144x8xf32>
    %cst_296 = arith.constant dense<0.000000e+00> : vector<14x8xf32>
    %275 = tpu.matmul %273, %274, %cst_296 {dimension_numbers = #tpu.dot_dimension_numbers<[1], [0], [0], [1], [0, 0, 1, 1], [], []>} : vector<14x144xf32>, vector<144x8xf32>, vector<14x8xf32> -> vector<14x8xf32>
    %276 = vector.broadcast %133 : vector<1x8xf32> to vector<14x8xf32>
    %277 = arith.addf %275, %276 : vector<14x8xf32>
    %cst_297 = arith.constant 0.000000e+00 : f32
    %278 = vector.broadcast %cst_297 : f32 to vector<14x8xf32>
    %279 = arith.maximumf %277, %278 : vector<14x8xf32>
    %280 = vector.extract_strided_slice %279 {offsets = [0, 0], sizes = [2, 8], strides = [1, 1]} : vector<14x8xf32> to vector<2x8xf32>
    %c14 = arith.constant 14 : index
    %c0_298 = arith.constant 0 : index
    %c0_299 = arith.constant 0 : index
    %281 = vector.load %arg4[%c14, %c0_298, %c0_299] : memref<49x8x128xf32, #tpu.memory_space<vmem>>, vector<1x8x128xf32>
    %282 = vector.shape_cast %281 : vector<1x8x128xf32> to vector<8x128xf32>
    %cst_300 = arith.constant dense<0.000000e+00> : vector<2x128xf32>
    %283 = tpu.matmul %280, %282, %cst_300 {dimension_numbers = #tpu.dot_dimension_numbers<[1], [0], [0], [1], [0, 0, 1, 1], [], []>} : vector<2x8xf32>, vector<8x128xf32>, vector<2x128xf32> -> vector<2x128xf32>
    %284 = arith.addf %254, %283 : vector<2x128xf32>
    %285 = vector.extract_strided_slice %279 {offsets = [2, 0], sizes = [2, 8], strides = [1, 1]} : vector<14x8xf32> to vector<2x8xf32>
    %c15 = arith.constant 15 : index
    %c0_301 = arith.constant 0 : index
    %c0_302 = arith.constant 0 : index
    %286 = vector.load %arg4[%c15, %c0_301, %c0_302] : memref<49x8x128xf32, #tpu.memory_space<vmem>>, vector<1x8x128xf32>
    %287 = vector.shape_cast %286 : vector<1x8x128xf32> to vector<8x128xf32>
    %cst_303 = arith.constant dense<0.000000e+00> : vector<2x128xf32>
    %288 = tpu.matmul %285, %287, %cst_303 {dimension_numbers = #tpu.dot_dimension_numbers<[1], [0], [0], [1], [0, 0, 1, 1], [], []>} : vector<2x8xf32>, vector<8x128xf32>, vector<2x128xf32> -> vector<2x128xf32>
    %289 = arith.addf %284, %288 : vector<2x128xf32>
    %290 = vector.extract_strided_slice %279 {offsets = [4, 0], sizes = [2, 8], strides = [1, 1]} : vector<14x8xf32> to vector<2x8xf32>
    %c16 = arith.constant 16 : index
    %c0_304 = arith.constant 0 : index
    %c0_305 = arith.constant 0 : index
    %291 = vector.load %arg4[%c16, %c0_304, %c0_305] : memref<49x8x128xf32, #tpu.memory_space<vmem>>, vector<1x8x128xf32>
    %292 = vector.shape_cast %291 : vector<1x8x128xf32> to vector<8x128xf32>
    %cst_306 = arith.constant dense<0.000000e+00> : vector<2x128xf32>
    %293 = tpu.matmul %290, %292, %cst_306 {dimension_numbers = #tpu.dot_dimension_numbers<[1], [0], [0], [1], [0, 0, 1, 1], [], []>} : vector<2x8xf32>, vector<8x128xf32>, vector<2x128xf32> -> vector<2x128xf32>
    %294 = arith.addf %289, %293 : vector<2x128xf32>
    %295 = vector.extract_strided_slice %279 {offsets = [6, 0], sizes = [2, 8], strides = [1, 1]} : vector<14x8xf32> to vector<2x8xf32>
    %c17 = arith.constant 17 : index
    %c0_307 = arith.constant 0 : index
    %c0_308 = arith.constant 0 : index
    %296 = vector.load %arg4[%c17, %c0_307, %c0_308] : memref<49x8x128xf32, #tpu.memory_space<vmem>>, vector<1x8x128xf32>
    %297 = vector.shape_cast %296 : vector<1x8x128xf32> to vector<8x128xf32>
    %cst_309 = arith.constant dense<0.000000e+00> : vector<2x128xf32>
    %298 = tpu.matmul %295, %297, %cst_309 {dimension_numbers = #tpu.dot_dimension_numbers<[1], [0], [0], [1], [0, 0, 1, 1], [], []>} : vector<2x8xf32>, vector<8x128xf32>, vector<2x128xf32> -> vector<2x128xf32>
    %299 = arith.addf %294, %298 : vector<2x128xf32>
    %300 = vector.extract_strided_slice %279 {offsets = [8, 0], sizes = [2, 8], strides = [1, 1]} : vector<14x8xf32> to vector<2x8xf32>
    %c18 = arith.constant 18 : index
    %c0_310 = arith.constant 0 : index
    %c0_311 = arith.constant 0 : index
    %301 = vector.load %arg4[%c18, %c0_310, %c0_311] : memref<49x8x128xf32, #tpu.memory_space<vmem>>, vector<1x8x128xf32>
    %302 = vector.shape_cast %301 : vector<1x8x128xf32> to vector<8x128xf32>
    %cst_312 = arith.constant dense<0.000000e+00> : vector<2x128xf32>
    %303 = tpu.matmul %300, %302, %cst_312 {dimension_numbers = #tpu.dot_dimension_numbers<[1], [0], [0], [1], [0, 0, 1, 1], [], []>} : vector<2x8xf32>, vector<8x128xf32>, vector<2x128xf32> -> vector<2x128xf32>
    %304 = arith.addf %299, %303 : vector<2x128xf32>
    %305 = vector.extract_strided_slice %279 {offsets = [10, 0], sizes = [2, 8], strides = [1, 1]} : vector<14x8xf32> to vector<2x8xf32>
    %c19 = arith.constant 19 : index
    %c0_313 = arith.constant 0 : index
    %c0_314 = arith.constant 0 : index
    %306 = vector.load %arg4[%c19, %c0_313, %c0_314] : memref<49x8x128xf32, #tpu.memory_space<vmem>>, vector<1x8x128xf32>
    %307 = vector.shape_cast %306 : vector<1x8x128xf32> to vector<8x128xf32>
    %cst_315 = arith.constant dense<0.000000e+00> : vector<2x128xf32>
    %308 = tpu.matmul %305, %307, %cst_315 {dimension_numbers = #tpu.dot_dimension_numbers<[1], [0], [0], [1], [0, 0, 1, 1], [], []>} : vector<2x8xf32>, vector<8x128xf32>, vector<2x128xf32> -> vector<2x128xf32>
    %309 = arith.addf %304, %308 : vector<2x128xf32>
    %310 = vector.extract_strided_slice %279 {offsets = [12, 0], sizes = [2, 8], strides = [1, 1]} : vector<14x8xf32> to vector<2x8xf32>
    %c20 = arith.constant 20 : index
    %c0_316 = arith.constant 0 : index
    %c0_317 = arith.constant 0 : index
    %311 = vector.load %arg4[%c20, %c0_316, %c0_317] : memref<49x8x128xf32, #tpu.memory_space<vmem>>, vector<1x8x128xf32>
    %312 = vector.shape_cast %311 : vector<1x8x128xf32> to vector<8x128xf32>
    %cst_318 = arith.constant dense<0.000000e+00> : vector<2x128xf32>
    %313 = tpu.matmul %310, %312, %cst_318 {dimension_numbers = #tpu.dot_dimension_numbers<[1], [0], [0], [1], [0, 0, 1, 1], [], []>} : vector<2x8xf32>, vector<8x128xf32>, vector<2x128xf32> -> vector<2x128xf32>
    %314 = arith.addf %309, %313 : vector<2x128xf32>
    %c0_319 = arith.constant 0 : index
    %c3_320 = arith.constant 3 : index
    %c0_321 = arith.constant 0 : index
    %c0_322 = arith.constant 0 : index
    %315 = vector.load %arg7[%c0_319, %c3_320, %c0_321, %c0_322] : memref<4x8x16x16xf32, #tpu.memory_space<vmem>>, vector<1x1x14x16xf32>
    %316 = vector.shape_cast %315 : vector<1x1x14x16xf32> to vector<14x16xf32>
    %c1_323 = arith.constant 1 : index
    %c3_324 = arith.constant 3 : index
    %c0_325 = arith.constant 0 : index
    %c0_326 = arith.constant 0 : index
    %317 = vector.load %arg7[%c1_323, %c3_324, %c0_325, %c0_326] : memref<4x8x16x16xf32, #tpu.memory_space<vmem>>, vector<1x1x14x16xf32>
    %318 = vector.shape_cast %317 : vector<1x1x14x16xf32> to vector<14x16xf32>
    %c0_327 = arith.constant 0 : index
    %c3_328 = arith.constant 3 : index
    %c2_329 = arith.constant 2 : index
    %c0_330 = arith.constant 0 : index
    %319 = vector.load %arg7[%c0_327, %c3_328, %c2_329, %c0_330] : memref<4x8x16x16xf32, #tpu.memory_space<vmem>>, vector<1x1x14x16xf32>
    %320 = vector.shape_cast %319 : vector<1x1x14x16xf32> to vector<14x16xf32>
    %c2_331 = arith.constant 2 : index
    %c3_332 = arith.constant 3 : index
    %c0_333 = arith.constant 0 : index
    %c0_334 = arith.constant 0 : index
    %321 = vector.load %arg7[%c2_331, %c3_332, %c0_333, %c0_334] : memref<4x8x16x16xf32, #tpu.memory_space<vmem>>, vector<1x1x14x16xf32>
    %322 = vector.shape_cast %321 : vector<1x1x14x16xf32> to vector<14x16xf32>
    %c3_335 = arith.constant 3 : index
    %c3_336 = arith.constant 3 : index
    %c0_337 = arith.constant 0 : index
    %c0_338 = arith.constant 0 : index
    %323 = vector.load %arg7[%c3_335, %c3_336, %c0_337, %c0_338] : memref<4x8x16x16xf32, #tpu.memory_space<vmem>>, vector<1x1x14x16xf32>
    %324 = vector.shape_cast %323 : vector<1x1x14x16xf32> to vector<14x16xf32>
    %c2_339 = arith.constant 2 : index
    %c3_340 = arith.constant 3 : index
    %c2_341 = arith.constant 2 : index
    %c0_342 = arith.constant 0 : index
    %325 = vector.load %arg7[%c2_339, %c3_340, %c2_341, %c0_342] : memref<4x8x16x16xf32, #tpu.memory_space<vmem>>, vector<1x1x14x16xf32>
    %326 = vector.shape_cast %325 : vector<1x1x14x16xf32> to vector<14x16xf32>
    %c0_343 = arith.constant 0 : index
    %c4_344 = arith.constant 4 : index
    %c0_345 = arith.constant 0 : index
    %c0_346 = arith.constant 0 : index
    %327 = vector.load %arg7[%c0_343, %c4_344, %c0_345, %c0_346] : memref<4x8x16x16xf32, #tpu.memory_space<vmem>>, vector<1x1x14x16xf32>
    %328 = vector.shape_cast %327 : vector<1x1x14x16xf32> to vector<14x16xf32>
    %c1_347 = arith.constant 1 : index
    %c4_348 = arith.constant 4 : index
    %c0_349 = arith.constant 0 : index
    %c0_350 = arith.constant 0 : index
    %329 = vector.load %arg7[%c1_347, %c4_348, %c0_349, %c0_350] : memref<4x8x16x16xf32, #tpu.memory_space<vmem>>, vector<1x1x14x16xf32>
    %330 = vector.shape_cast %329 : vector<1x1x14x16xf32> to vector<14x16xf32>
    %c0_351 = arith.constant 0 : index
    %c4_352 = arith.constant 4 : index
    %c2_353 = arith.constant 2 : index
    %c0_354 = arith.constant 0 : index
    %331 = vector.load %arg7[%c0_351, %c4_352, %c2_353, %c0_354] : memref<4x8x16x16xf32, #tpu.memory_space<vmem>>, vector<1x1x14x16xf32>
    %332 = vector.shape_cast %331 : vector<1x1x14x16xf32> to vector<14x16xf32>
    %333 = tpu.concatenate %316, %318, %320, %322, %324, %326, %328, %330, %332 in 1 : vector<14x16xf32>, vector<14x16xf32>, vector<14x16xf32>, vector<14x16xf32>, vector<14x16xf32>, vector<14x16xf32>, vector<14x16xf32>, vector<14x16xf32>, vector<14x16xf32> -> vector<14x144xf32>
    %c0_355 = arith.constant 0 : index
    %c0_356 = arith.constant 0 : index
    %334 = vector.load %arg2[%c0_355, %c0_356] : memref<144x8xf32, #tpu.memory_space<vmem>>, vector<144x8xf32>
    %cst_357 = arith.constant dense<0.000000e+00> : vector<14x8xf32>
    %335 = tpu.matmul %333, %334, %cst_357 {dimension_numbers = #tpu.dot_dimension_numbers<[1], [0], [0], [1], [0, 0, 1, 1], [], []>} : vector<14x144xf32>, vector<144x8xf32>, vector<14x8xf32> -> vector<14x8xf32>
    %336 = vector.broadcast %133 : vector<1x8xf32> to vector<14x8xf32>
    %337 = arith.addf %335, %336 : vector<14x8xf32>
    %cst_358 = arith.constant 0.000000e+00 : f32
    %338 = vector.broadcast %cst_358 : f32 to vector<14x8xf32>
    %339 = arith.maximumf %337, %338 : vector<14x8xf32>
    %340 = vector.extract_strided_slice %339 {offsets = [0, 0], sizes = [2, 8], strides = [1, 1]} : vector<14x8xf32> to vector<2x8xf32>
    %c21 = arith.constant 21 : index
    %c0_359 = arith.constant 0 : index
    %c0_360 = arith.constant 0 : index
    %341 = vector.load %arg4[%c21, %c0_359, %c0_360] : memref<49x8x128xf32, #tpu.memory_space<vmem>>, vector<1x8x128xf32>
    %342 = vector.shape_cast %341 : vector<1x8x128xf32> to vector<8x128xf32>
    %cst_361 = arith.constant dense<0.000000e+00> : vector<2x128xf32>
    %343 = tpu.matmul %340, %342, %cst_361 {dimension_numbers = #tpu.dot_dimension_numbers<[1], [0], [0], [1], [0, 0, 1, 1], [], []>} : vector<2x8xf32>, vector<8x128xf32>, vector<2x128xf32> -> vector<2x128xf32>
    %344 = arith.addf %314, %343 : vector<2x128xf32>
    %345 = vector.extract_strided_slice %339 {offsets = [2, 0], sizes = [2, 8], strides = [1, 1]} : vector<14x8xf32> to vector<2x8xf32>
    %c22 = arith.constant 22 : index
    %c0_362 = arith.constant 0 : index
    %c0_363 = arith.constant 0 : index
    %346 = vector.load %arg4[%c22, %c0_362, %c0_363] : memref<49x8x128xf32, #tpu.memory_space<vmem>>, vector<1x8x128xf32>
    %347 = vector.shape_cast %346 : vector<1x8x128xf32> to vector<8x128xf32>
    %cst_364 = arith.constant dense<0.000000e+00> : vector<2x128xf32>
    %348 = tpu.matmul %345, %347, %cst_364 {dimension_numbers = #tpu.dot_dimension_numbers<[1], [0], [0], [1], [0, 0, 1, 1], [], []>} : vector<2x8xf32>, vector<8x128xf32>, vector<2x128xf32> -> vector<2x128xf32>
    %349 = arith.addf %344, %348 : vector<2x128xf32>
    %350 = vector.extract_strided_slice %339 {offsets = [4, 0], sizes = [2, 8], strides = [1, 1]} : vector<14x8xf32> to vector<2x8xf32>
    %c23 = arith.constant 23 : index
    %c0_365 = arith.constant 0 : index
    %c0_366 = arith.constant 0 : index
    %351 = vector.load %arg4[%c23, %c0_365, %c0_366] : memref<49x8x128xf32, #tpu.memory_space<vmem>>, vector<1x8x128xf32>
    %352 = vector.shape_cast %351 : vector<1x8x128xf32> to vector<8x128xf32>
    %cst_367 = arith.constant dense<0.000000e+00> : vector<2x128xf32>
    %353 = tpu.matmul %350, %352, %cst_367 {dimension_numbers = #tpu.dot_dimension_numbers<[1], [0], [0], [1], [0, 0, 1, 1], [], []>} : vector<2x8xf32>, vector<8x128xf32>, vector<2x128xf32> -> vector<2x128xf32>
    %354 = arith.addf %349, %353 : vector<2x128xf32>
    %355 = vector.extract_strided_slice %339 {offsets = [6, 0], sizes = [2, 8], strides = [1, 1]} : vector<14x8xf32> to vector<2x8xf32>
    %c24 = arith.constant 24 : index
    %c0_368 = arith.constant 0 : index
    %c0_369 = arith.constant 0 : index
    %356 = vector.load %arg4[%c24, %c0_368, %c0_369] : memref<49x8x128xf32, #tpu.memory_space<vmem>>, vector<1x8x128xf32>
    %357 = vector.shape_cast %356 : vector<1x8x128xf32> to vector<8x128xf32>
    %cst_370 = arith.constant dense<0.000000e+00> : vector<2x128xf32>
    %358 = tpu.matmul %355, %357, %cst_370 {dimension_numbers = #tpu.dot_dimension_numbers<[1], [0], [0], [1], [0, 0, 1, 1], [], []>} : vector<2x8xf32>, vector<8x128xf32>, vector<2x128xf32> -> vector<2x128xf32>
    %359 = arith.addf %354, %358 : vector<2x128xf32>
    %360 = vector.extract_strided_slice %339 {offsets = [8, 0], sizes = [2, 8], strides = [1, 1]} : vector<14x8xf32> to vector<2x8xf32>
    %c25 = arith.constant 25 : index
    %c0_371 = arith.constant 0 : index
    %c0_372 = arith.constant 0 : index
    %361 = vector.load %arg4[%c25, %c0_371, %c0_372] : memref<49x8x128xf32, #tpu.memory_space<vmem>>, vector<1x8x128xf32>
    %362 = vector.shape_cast %361 : vector<1x8x128xf32> to vector<8x128xf32>
    %cst_373 = arith.constant dense<0.000000e+00> : vector<2x128xf32>
    %363 = tpu.matmul %360, %362, %cst_373 {dimension_numbers = #tpu.dot_dimension_numbers<[1], [0], [0], [1], [0, 0, 1, 1], [], []>} : vector<2x8xf32>, vector<8x128xf32>, vector<2x128xf32> -> vector<2x128xf32>
    %364 = arith.addf %359, %363 : vector<2x128xf32>
    %365 = vector.extract_strided_slice %339 {offsets = [10, 0], sizes = [2, 8], strides = [1, 1]} : vector<14x8xf32> to vector<2x8xf32>
    %c26 = arith.constant 26 : index
    %c0_374 = arith.constant 0 : index
    %c0_375 = arith.constant 0 : index
    %366 = vector.load %arg4[%c26, %c0_374, %c0_375] : memref<49x8x128xf32, #tpu.memory_space<vmem>>, vector<1x8x128xf32>
    %367 = vector.shape_cast %366 : vector<1x8x128xf32> to vector<8x128xf32>
    %cst_376 = arith.constant dense<0.000000e+00> : vector<2x128xf32>
    %368 = tpu.matmul %365, %367, %cst_376 {dimension_numbers = #tpu.dot_dimension_numbers<[1], [0], [0], [1], [0, 0, 1, 1], [], []>} : vector<2x8xf32>, vector<8x128xf32>, vector<2x128xf32> -> vector<2x128xf32>
    %369 = arith.addf %364, %368 : vector<2x128xf32>
    %370 = vector.extract_strided_slice %339 {offsets = [12, 0], sizes = [2, 8], strides = [1, 1]} : vector<14x8xf32> to vector<2x8xf32>
    %c27 = arith.constant 27 : index
    %c0_377 = arith.constant 0 : index
    %c0_378 = arith.constant 0 : index
    %371 = vector.load %arg4[%c27, %c0_377, %c0_378] : memref<49x8x128xf32, #tpu.memory_space<vmem>>, vector<1x8x128xf32>
    %372 = vector.shape_cast %371 : vector<1x8x128xf32> to vector<8x128xf32>
    %cst_379 = arith.constant dense<0.000000e+00> : vector<2x128xf32>
    %373 = tpu.matmul %370, %372, %cst_379 {dimension_numbers = #tpu.dot_dimension_numbers<[1], [0], [0], [1], [0, 0, 1, 1], [], []>} : vector<2x8xf32>, vector<8x128xf32>, vector<2x128xf32> -> vector<2x128xf32>
    %374 = arith.addf %369, %373 : vector<2x128xf32>
    %c0_380 = arith.constant 0 : index
    %c4_381 = arith.constant 4 : index
    %c0_382 = arith.constant 0 : index
    %c0_383 = arith.constant 0 : index
    %375 = vector.load %arg7[%c0_380, %c4_381, %c0_382, %c0_383] : memref<4x8x16x16xf32, #tpu.memory_space<vmem>>, vector<1x1x14x16xf32>
    %376 = vector.shape_cast %375 : vector<1x1x14x16xf32> to vector<14x16xf32>
    %c1_384 = arith.constant 1 : index
    %c4_385 = arith.constant 4 : index
    %c0_386 = arith.constant 0 : index
    %c0_387 = arith.constant 0 : index
    %377 = vector.load %arg7[%c1_384, %c4_385, %c0_386, %c0_387] : memref<4x8x16x16xf32, #tpu.memory_space<vmem>>, vector<1x1x14x16xf32>
    %378 = vector.shape_cast %377 : vector<1x1x14x16xf32> to vector<14x16xf32>
    %c0_388 = arith.constant 0 : index
    %c4_389 = arith.constant 4 : index
    %c2_390 = arith.constant 2 : index
    %c0_391 = arith.constant 0 : index
    %379 = vector.load %arg7[%c0_388, %c4_389, %c2_390, %c0_391] : memref<4x8x16x16xf32, #tpu.memory_space<vmem>>, vector<1x1x14x16xf32>
    %380 = vector.shape_cast %379 : vector<1x1x14x16xf32> to vector<14x16xf32>
    %c2_392 = arith.constant 2 : index
    %c4_393 = arith.constant 4 : index
    %c0_394 = arith.constant 0 : index
    %c0_395 = arith.constant 0 : index
    %381 = vector.load %arg7[%c2_392, %c4_393, %c0_394, %c0_395] : memref<4x8x16x16xf32, #tpu.memory_space<vmem>>, vector<1x1x14x16xf32>
    %382 = vector.shape_cast %381 : vector<1x1x14x16xf32> to vector<14x16xf32>
    %c3_396 = arith.constant 3 : index
    %c4_397 = arith.constant 4 : index
    %c0_398 = arith.constant 0 : index
    %c0_399 = arith.constant 0 : index
    %383 = vector.load %arg7[%c3_396, %c4_397, %c0_398, %c0_399] : memref<4x8x16x16xf32, #tpu.memory_space<vmem>>, vector<1x1x14x16xf32>
    %384 = vector.shape_cast %383 : vector<1x1x14x16xf32> to vector<14x16xf32>
    %c2_400 = arith.constant 2 : index
    %c4_401 = arith.constant 4 : index
    %c2_402 = arith.constant 2 : index
    %c0_403 = arith.constant 0 : index
    %385 = vector.load %arg7[%c2_400, %c4_401, %c2_402, %c0_403] : memref<4x8x16x16xf32, #tpu.memory_space<vmem>>, vector<1x1x14x16xf32>
    %386 = vector.shape_cast %385 : vector<1x1x14x16xf32> to vector<14x16xf32>
    %c0_404 = arith.constant 0 : index
    %c5_405 = arith.constant 5 : index
    %c0_406 = arith.constant 0 : index
    %c0_407 = arith.constant 0 : index
    %387 = vector.load %arg7[%c0_404, %c5_405, %c0_406, %c0_407] : memref<4x8x16x16xf32, #tpu.memory_space<vmem>>, vector<1x1x14x16xf32>
    %388 = vector.shape_cast %387 : vector<1x1x14x16xf32> to vector<14x16xf32>
    %c1_408 = arith.constant 1 : index
    %c5_409 = arith.constant 5 : index
    %c0_410 = arith.constant 0 : index
    %c0_411 = arith.constant 0 : index
    %389 = vector.load %arg7[%c1_408, %c5_409, %c0_410, %c0_411] : memref<4x8x16x16xf32, #tpu.memory_space<vmem>>, vector<1x1x14x16xf32>
    %390 = vector.shape_cast %389 : vector<1x1x14x16xf32> to vector<14x16xf32>
    %c0_412 = arith.constant 0 : index
    %c5_413 = arith.constant 5 : index
    %c2_414 = arith.constant 2 : index
    %c0_415 = arith.constant 0 : index
    %391 = vector.load %arg7[%c0_412, %c5_413, %c2_414, %c0_415] : memref<4x8x16x16xf32, #tpu.memory_space<vmem>>, vector<1x1x14x16xf32>
    %392 = vector.shape_cast %391 : vector<1x1x14x16xf32> to vector<14x16xf32>
    %393 = tpu.concatenate %376, %378, %380, %382, %384, %386, %388, %390, %392 in 1 : vector<14x16xf32>, vector<14x16xf32>, vector<14x16xf32>, vector<14x16xf32>, vector<14x16xf32>, vector<14x16xf32>, vector<14x16xf32>, vector<14x16xf32>, vector<14x16xf32> -> vector<14x144xf32>
    %c0_416 = arith.constant 0 : index
    %c0_417 = arith.constant 0 : index
    %394 = vector.load %arg2[%c0_416, %c0_417] : memref<144x8xf32, #tpu.memory_space<vmem>>, vector<144x8xf32>
    %cst_418 = arith.constant dense<0.000000e+00> : vector<14x8xf32>
    %395 = tpu.matmul %393, %394, %cst_418 {dimension_numbers = #tpu.dot_dimension_numbers<[1], [0], [0], [1], [0, 0, 1, 1], [], []>} : vector<14x144xf32>, vector<144x8xf32>, vector<14x8xf32> -> vector<14x8xf32>
    %396 = vector.broadcast %133 : vector<1x8xf32> to vector<14x8xf32>
    %397 = arith.addf %395, %396 : vector<14x8xf32>
    %cst_419 = arith.constant 0.000000e+00 : f32
    %398 = vector.broadcast %cst_419 : f32 to vector<14x8xf32>
    %399 = arith.maximumf %397, %398 : vector<14x8xf32>
    %400 = vector.extract_strided_slice %399 {offsets = [0, 0], sizes = [2, 8], strides = [1, 1]} : vector<14x8xf32> to vector<2x8xf32>
    %c28 = arith.constant 28 : index
    %c0_420 = arith.constant 0 : index
    %c0_421 = arith.constant 0 : index
    %401 = vector.load %arg4[%c28, %c0_420, %c0_421] : memref<49x8x128xf32, #tpu.memory_space<vmem>>, vector<1x8x128xf32>
    %402 = vector.shape_cast %401 : vector<1x8x128xf32> to vector<8x128xf32>
    %cst_422 = arith.constant dense<0.000000e+00> : vector<2x128xf32>
    %403 = tpu.matmul %400, %402, %cst_422 {dimension_numbers = #tpu.dot_dimension_numbers<[1], [0], [0], [1], [0, 0, 1, 1], [], []>} : vector<2x8xf32>, vector<8x128xf32>, vector<2x128xf32> -> vector<2x128xf32>
    %404 = arith.addf %374, %403 : vector<2x128xf32>
    %405 = vector.extract_strided_slice %399 {offsets = [2, 0], sizes = [2, 8], strides = [1, 1]} : vector<14x8xf32> to vector<2x8xf32>
    %c29 = arith.constant 29 : index
    %c0_423 = arith.constant 0 : index
    %c0_424 = arith.constant 0 : index
    %406 = vector.load %arg4[%c29, %c0_423, %c0_424] : memref<49x8x128xf32, #tpu.memory_space<vmem>>, vector<1x8x128xf32>
    %407 = vector.shape_cast %406 : vector<1x8x128xf32> to vector<8x128xf32>
    %cst_425 = arith.constant dense<0.000000e+00> : vector<2x128xf32>
    %408 = tpu.matmul %405, %407, %cst_425 {dimension_numbers = #tpu.dot_dimension_numbers<[1], [0], [0], [1], [0, 0, 1, 1], [], []>} : vector<2x8xf32>, vector<8x128xf32>, vector<2x128xf32> -> vector<2x128xf32>
    %409 = arith.addf %404, %408 : vector<2x128xf32>
    %410 = vector.extract_strided_slice %399 {offsets = [4, 0], sizes = [2, 8], strides = [1, 1]} : vector<14x8xf32> to vector<2x8xf32>
    %c30 = arith.constant 30 : index
    %c0_426 = arith.constant 0 : index
    %c0_427 = arith.constant 0 : index
    %411 = vector.load %arg4[%c30, %c0_426, %c0_427] : memref<49x8x128xf32, #tpu.memory_space<vmem>>, vector<1x8x128xf32>
    %412 = vector.shape_cast %411 : vector<1x8x128xf32> to vector<8x128xf32>
    %cst_428 = arith.constant dense<0.000000e+00> : vector<2x128xf32>
    %413 = tpu.matmul %410, %412, %cst_428 {dimension_numbers = #tpu.dot_dimension_numbers<[1], [0], [0], [1], [0, 0, 1, 1], [], []>} : vector<2x8xf32>, vector<8x128xf32>, vector<2x128xf32> -> vector<2x128xf32>
    %414 = arith.addf %409, %413 : vector<2x128xf32>
    %415 = vector.extract_strided_slice %399 {offsets = [6, 0], sizes = [2, 8], strides = [1, 1]} : vector<14x8xf32> to vector<2x8xf32>
    %c31 = arith.constant 31 : index
    %c0_429 = arith.constant 0 : index
    %c0_430 = arith.constant 0 : index
    %416 = vector.load %arg4[%c31, %c0_429, %c0_430] : memref<49x8x128xf32, #tpu.memory_space<vmem>>, vector<1x8x128xf32>
    %417 = vector.shape_cast %416 : vector<1x8x128xf32> to vector<8x128xf32>
    %cst_431 = arith.constant dense<0.000000e+00> : vector<2x128xf32>
    %418 = tpu.matmul %415, %417, %cst_431 {dimension_numbers = #tpu.dot_dimension_numbers<[1], [0], [0], [1], [0, 0, 1, 1], [], []>} : vector<2x8xf32>, vector<8x128xf32>, vector<2x128xf32> -> vector<2x128xf32>
    %419 = arith.addf %414, %418 : vector<2x128xf32>
    %420 = vector.extract_strided_slice %399 {offsets = [8, 0], sizes = [2, 8], strides = [1, 1]} : vector<14x8xf32> to vector<2x8xf32>
    %c32 = arith.constant 32 : index
    %c0_432 = arith.constant 0 : index
    %c0_433 = arith.constant 0 : index
    %421 = vector.load %arg4[%c32, %c0_432, %c0_433] : memref<49x8x128xf32, #tpu.memory_space<vmem>>, vector<1x8x128xf32>
    %422 = vector.shape_cast %421 : vector<1x8x128xf32> to vector<8x128xf32>
    %cst_434 = arith.constant dense<0.000000e+00> : vector<2x128xf32>
    %423 = tpu.matmul %420, %422, %cst_434 {dimension_numbers = #tpu.dot_dimension_numbers<[1], [0], [0], [1], [0, 0, 1, 1], [], []>} : vector<2x8xf32>, vector<8x128xf32>, vector<2x128xf32> -> vector<2x128xf32>
    %424 = arith.addf %419, %423 : vector<2x128xf32>
    %425 = vector.extract_strided_slice %399 {offsets = [10, 0], sizes = [2, 8], strides = [1, 1]} : vector<14x8xf32> to vector<2x8xf32>
    %c33 = arith.constant 33 : index
    %c0_435 = arith.constant 0 : index
    %c0_436 = arith.constant 0 : index
    %426 = vector.load %arg4[%c33, %c0_435, %c0_436] : memref<49x8x128xf32, #tpu.memory_space<vmem>>, vector<1x8x128xf32>
    %427 = vector.shape_cast %426 : vector<1x8x128xf32> to vector<8x128xf32>
    %cst_437 = arith.constant dense<0.000000e+00> : vector<2x128xf32>
    %428 = tpu.matmul %425, %427, %cst_437 {dimension_numbers = #tpu.dot_dimension_numbers<[1], [0], [0], [1], [0, 0, 1, 1], [], []>} : vector<2x8xf32>, vector<8x128xf32>, vector<2x128xf32> -> vector<2x128xf32>
    %429 = arith.addf %424, %428 : vector<2x128xf32>
    %430 = vector.extract_strided_slice %399 {offsets = [12, 0], sizes = [2, 8], strides = [1, 1]} : vector<14x8xf32> to vector<2x8xf32>
    %c34 = arith.constant 34 : index
    %c0_438 = arith.constant 0 : index
    %c0_439 = arith.constant 0 : index
    %431 = vector.load %arg4[%c34, %c0_438, %c0_439] : memref<49x8x128xf32, #tpu.memory_space<vmem>>, vector<1x8x128xf32>
    %432 = vector.shape_cast %431 : vector<1x8x128xf32> to vector<8x128xf32>
    %cst_440 = arith.constant dense<0.000000e+00> : vector<2x128xf32>
    %433 = tpu.matmul %430, %432, %cst_440 {dimension_numbers = #tpu.dot_dimension_numbers<[1], [0], [0], [1], [0, 0, 1, 1], [], []>} : vector<2x8xf32>, vector<8x128xf32>, vector<2x128xf32> -> vector<2x128xf32>
    %434 = arith.addf %429, %433 : vector<2x128xf32>
    %c0_441 = arith.constant 0 : index
    %c5_442 = arith.constant 5 : index
    %c0_443 = arith.constant 0 : index
    %c0_444 = arith.constant 0 : index
    %435 = vector.load %arg7[%c0_441, %c5_442, %c0_443, %c0_444] : memref<4x8x16x16xf32, #tpu.memory_space<vmem>>, vector<1x1x14x16xf32>
    %436 = vector.shape_cast %435 : vector<1x1x14x16xf32> to vector<14x16xf32>
    %c1_445 = arith.constant 1 : index
    %c5_446 = arith.constant 5 : index
    %c0_447 = arith.constant 0 : index
    %c0_448 = arith.constant 0 : index
    %437 = vector.load %arg7[%c1_445, %c5_446, %c0_447, %c0_448] : memref<4x8x16x16xf32, #tpu.memory_space<vmem>>, vector<1x1x14x16xf32>
    %438 = vector.shape_cast %437 : vector<1x1x14x16xf32> to vector<14x16xf32>
    %c0_449 = arith.constant 0 : index
    %c5_450 = arith.constant 5 : index
    %c2_451 = arith.constant 2 : index
    %c0_452 = arith.constant 0 : index
    %439 = vector.load %arg7[%c0_449, %c5_450, %c2_451, %c0_452] : memref<4x8x16x16xf32, #tpu.memory_space<vmem>>, vector<1x1x14x16xf32>
    %440 = vector.shape_cast %439 : vector<1x1x14x16xf32> to vector<14x16xf32>
    %c2_453 = arith.constant 2 : index
    %c5_454 = arith.constant 5 : index
    %c0_455 = arith.constant 0 : index
    %c0_456 = arith.constant 0 : index
    %441 = vector.load %arg7[%c2_453, %c5_454, %c0_455, %c0_456] : memref<4x8x16x16xf32, #tpu.memory_space<vmem>>, vector<1x1x14x16xf32>
    %442 = vector.shape_cast %441 : vector<1x1x14x16xf32> to vector<14x16xf32>
    %c3_457 = arith.constant 3 : index
    %c5_458 = arith.constant 5 : index
    %c0_459 = arith.constant 0 : index
    %c0_460 = arith.constant 0 : index
    %443 = vector.load %arg7[%c3_457, %c5_458, %c0_459, %c0_460] : memref<4x8x16x16xf32, #tpu.memory_space<vmem>>, vector<1x1x14x16xf32>
    %444 = vector.shape_cast %443 : vector<1x1x14x16xf32> to vector<14x16xf32>
    %c2_461 = arith.constant 2 : index
    %c5_462 = arith.constant 5 : index
    %c2_463 = arith.constant 2 : index
    %c0_464 = arith.constant 0 : index
    %445 = vector.load %arg7[%c2_461, %c5_462, %c2_463, %c0_464] : memref<4x8x16x16xf32, #tpu.memory_space<vmem>>, vector<1x1x14x16xf32>
    %446 = vector.shape_cast %445 : vector<1x1x14x16xf32> to vector<14x16xf32>
    %c0_465 = arith.constant 0 : index
    %c6_466 = arith.constant 6 : index
    %c0_467 = arith.constant 0 : index
    %c0_468 = arith.constant 0 : index
    %447 = vector.load %arg7[%c0_465, %c6_466, %c0_467, %c0_468] : memref<4x8x16x16xf32, #tpu.memory_space<vmem>>, vector<1x1x14x16xf32>
    %448 = vector.shape_cast %447 : vector<1x1x14x16xf32> to vector<14x16xf32>
    %c1_469 = arith.constant 1 : index
    %c6_470 = arith.constant 6 : index
    %c0_471 = arith.constant 0 : index
    %c0_472 = arith.constant 0 : index
    %449 = vector.load %arg7[%c1_469, %c6_470, %c0_471, %c0_472] : memref<4x8x16x16xf32, #tpu.memory_space<vmem>>, vector<1x1x14x16xf32>
    %450 = vector.shape_cast %449 : vector<1x1x14x16xf32> to vector<14x16xf32>
    %c0_473 = arith.constant 0 : index
    %c6_474 = arith.constant 6 : index
    %c2_475 = arith.constant 2 : index
    %c0_476 = arith.constant 0 : index
    %451 = vector.load %arg7[%c0_473, %c6_474, %c2_475, %c0_476] : memref<4x8x16x16xf32, #tpu.memory_space<vmem>>, vector<1x1x14x16xf32>
    %452 = vector.shape_cast %451 : vector<1x1x14x16xf32> to vector<14x16xf32>
    %453 = tpu.concatenate %436, %438, %440, %442, %444, %446, %448, %450, %452 in 1 : vector<14x16xf32>, vector<14x16xf32>, vector<14x16xf32>, vector<14x16xf32>, vector<14x16xf32>, vector<14x16xf32>, vector<14x16xf32>, vector<14x16xf32>, vector<14x16xf32> -> vector<14x144xf32>
    %c0_477 = arith.constant 0 : index
    %c0_478 = arith.constant 0 : index
    %454 = vector.load %arg2[%c0_477, %c0_478] : memref<144x8xf32, #tpu.memory_space<vmem>>, vector<144x8xf32>
    %cst_479 = arith.constant dense<0.000000e+00> : vector<14x8xf32>
    %455 = tpu.matmul %453, %454, %cst_479 {dimension_numbers = #tpu.dot_dimension_numbers<[1], [0], [0], [1], [0, 0, 1, 1], [], []>} : vector<14x144xf32>, vector<144x8xf32>, vector<14x8xf32> -> vector<14x8xf32>
    %456 = vector.broadcast %133 : vector<1x8xf32> to vector<14x8xf32>
    %457 = arith.addf %455, %456 : vector<14x8xf32>
    %cst_480 = arith.constant 0.000000e+00 : f32
    %458 = vector.broadcast %cst_480 : f32 to vector<14x8xf32>
    %459 = arith.maximumf %457, %458 : vector<14x8xf32>
    %460 = vector.extract_strided_slice %459 {offsets = [0, 0], sizes = [2, 8], strides = [1, 1]} : vector<14x8xf32> to vector<2x8xf32>
    %c35 = arith.constant 35 : index
    %c0_481 = arith.constant 0 : index
    %c0_482 = arith.constant 0 : index
    %461 = vector.load %arg4[%c35, %c0_481, %c0_482] : memref<49x8x128xf32, #tpu.memory_space<vmem>>, vector<1x8x128xf32>
    %462 = vector.shape_cast %461 : vector<1x8x128xf32> to vector<8x128xf32>
    %cst_483 = arith.constant dense<0.000000e+00> : vector<2x128xf32>
    %463 = tpu.matmul %460, %462, %cst_483 {dimension_numbers = #tpu.dot_dimension_numbers<[1], [0], [0], [1], [0, 0, 1, 1], [], []>} : vector<2x8xf32>, vector<8x128xf32>, vector<2x128xf32> -> vector<2x128xf32>
    %464 = arith.addf %434, %463 : vector<2x128xf32>
    %465 = vector.extract_strided_slice %459 {offsets = [2, 0], sizes = [2, 8], strides = [1, 1]} : vector<14x8xf32> to vector<2x8xf32>
    %c36 = arith.constant 36 : index
    %c0_484 = arith.constant 0 : index
    %c0_485 = arith.constant 0 : index
    %466 = vector.load %arg4[%c36, %c0_484, %c0_485] : memref<49x8x128xf32, #tpu.memory_space<vmem>>, vector<1x8x128xf32>
    %467 = vector.shape_cast %466 : vector<1x8x128xf32> to vector<8x128xf32>
    %cst_486 = arith.constant dense<0.000000e+00> : vector<2x128xf32>
    %468 = tpu.matmul %465, %467, %cst_486 {dimension_numbers = #tpu.dot_dimension_numbers<[1], [0], [0], [1], [0, 0, 1, 1], [], []>} : vector<2x8xf32>, vector<8x128xf32>, vector<2x128xf32> -> vector<2x128xf32>
    %469 = arith.addf %464, %468 : vector<2x128xf32>
    %470 = vector.extract_strided_slice %459 {offsets = [4, 0], sizes = [2, 8], strides = [1, 1]} : vector<14x8xf32> to vector<2x8xf32>
    %c37 = arith.constant 37 : index
    %c0_487 = arith.constant 0 : index
    %c0_488 = arith.constant 0 : index
    %471 = vector.load %arg4[%c37, %c0_487, %c0_488] : memref<49x8x128xf32, #tpu.memory_space<vmem>>, vector<1x8x128xf32>
    %472 = vector.shape_cast %471 : vector<1x8x128xf32> to vector<8x128xf32>
    %cst_489 = arith.constant dense<0.000000e+00> : vector<2x128xf32>
    %473 = tpu.matmul %470, %472, %cst_489 {dimension_numbers = #tpu.dot_dimension_numbers<[1], [0], [0], [1], [0, 0, 1, 1], [], []>} : vector<2x8xf32>, vector<8x128xf32>, vector<2x128xf32> -> vector<2x128xf32>
    %474 = arith.addf %469, %473 : vector<2x128xf32>
    %475 = vector.extract_strided_slice %459 {offsets = [6, 0], sizes = [2, 8], strides = [1, 1]} : vector<14x8xf32> to vector<2x8xf32>
    %c38 = arith.constant 38 : index
    %c0_490 = arith.constant 0 : index
    %c0_491 = arith.constant 0 : index
    %476 = vector.load %arg4[%c38, %c0_490, %c0_491] : memref<49x8x128xf32, #tpu.memory_space<vmem>>, vector<1x8x128xf32>
    %477 = vector.shape_cast %476 : vector<1x8x128xf32> to vector<8x128xf32>
    %cst_492 = arith.constant dense<0.000000e+00> : vector<2x128xf32>
    %478 = tpu.matmul %475, %477, %cst_492 {dimension_numbers = #tpu.dot_dimension_numbers<[1], [0], [0], [1], [0, 0, 1, 1], [], []>} : vector<2x8xf32>, vector<8x128xf32>, vector<2x128xf32> -> vector<2x128xf32>
    %479 = arith.addf %474, %478 : vector<2x128xf32>
    %480 = vector.extract_strided_slice %459 {offsets = [8, 0], sizes = [2, 8], strides = [1, 1]} : vector<14x8xf32> to vector<2x8xf32>
    %c39 = arith.constant 39 : index
    %c0_493 = arith.constant 0 : index
    %c0_494 = arith.constant 0 : index
    %481 = vector.load %arg4[%c39, %c0_493, %c0_494] : memref<49x8x128xf32, #tpu.memory_space<vmem>>, vector<1x8x128xf32>
    %482 = vector.shape_cast %481 : vector<1x8x128xf32> to vector<8x128xf32>
    %cst_495 = arith.constant dense<0.000000e+00> : vector<2x128xf32>
    %483 = tpu.matmul %480, %482, %cst_495 {dimension_numbers = #tpu.dot_dimension_numbers<[1], [0], [0], [1], [0, 0, 1, 1], [], []>} : vector<2x8xf32>, vector<8x128xf32>, vector<2x128xf32> -> vector<2x128xf32>
    %484 = arith.addf %479, %483 : vector<2x128xf32>
    %485 = vector.extract_strided_slice %459 {offsets = [10, 0], sizes = [2, 8], strides = [1, 1]} : vector<14x8xf32> to vector<2x8xf32>
    %c40 = arith.constant 40 : index
    %c0_496 = arith.constant 0 : index
    %c0_497 = arith.constant 0 : index
    %486 = vector.load %arg4[%c40, %c0_496, %c0_497] : memref<49x8x128xf32, #tpu.memory_space<vmem>>, vector<1x8x128xf32>
    %487 = vector.shape_cast %486 : vector<1x8x128xf32> to vector<8x128xf32>
    %cst_498 = arith.constant dense<0.000000e+00> : vector<2x128xf32>
    %488 = tpu.matmul %485, %487, %cst_498 {dimension_numbers = #tpu.dot_dimension_numbers<[1], [0], [0], [1], [0, 0, 1, 1], [], []>} : vector<2x8xf32>, vector<8x128xf32>, vector<2x128xf32> -> vector<2x128xf32>
    %489 = arith.addf %484, %488 : vector<2x128xf32>
    %490 = vector.extract_strided_slice %459 {offsets = [12, 0], sizes = [2, 8], strides = [1, 1]} : vector<14x8xf32> to vector<2x8xf32>
    %c41 = arith.constant 41 : index
    %c0_499 = arith.constant 0 : index
    %c0_500 = arith.constant 0 : index
    %491 = vector.load %arg4[%c41, %c0_499, %c0_500] : memref<49x8x128xf32, #tpu.memory_space<vmem>>, vector<1x8x128xf32>
    %492 = vector.shape_cast %491 : vector<1x8x128xf32> to vector<8x128xf32>
    %cst_501 = arith.constant dense<0.000000e+00> : vector<2x128xf32>
    %493 = tpu.matmul %490, %492, %cst_501 {dimension_numbers = #tpu.dot_dimension_numbers<[1], [0], [0], [1], [0, 0, 1, 1], [], []>} : vector<2x8xf32>, vector<8x128xf32>, vector<2x128xf32> -> vector<2x128xf32>
    %494 = arith.addf %489, %493 : vector<2x128xf32>
    %c0_502 = arith.constant 0 : index
    %c6_503 = arith.constant 6 : index
    %c0_504 = arith.constant 0 : index
    %c0_505 = arith.constant 0 : index
    %495 = vector.load %arg7[%c0_502, %c6_503, %c0_504, %c0_505] : memref<4x8x16x16xf32, #tpu.memory_space<vmem>>, vector<1x1x14x16xf32>
    %496 = vector.shape_cast %495 : vector<1x1x14x16xf32> to vector<14x16xf32>
    %c1_506 = arith.constant 1 : index
    %c6_507 = arith.constant 6 : index
    %c0_508 = arith.constant 0 : index
    %c0_509 = arith.constant 0 : index
    %497 = vector.load %arg7[%c1_506, %c6_507, %c0_508, %c0_509] : memref<4x8x16x16xf32, #tpu.memory_space<vmem>>, vector<1x1x14x16xf32>
    %498 = vector.shape_cast %497 : vector<1x1x14x16xf32> to vector<14x16xf32>
    %c0_510 = arith.constant 0 : index
    %c6_511 = arith.constant 6 : index
    %c2_512 = arith.constant 2 : index
    %c0_513 = arith.constant 0 : index
    %499 = vector.load %arg7[%c0_510, %c6_511, %c2_512, %c0_513] : memref<4x8x16x16xf32, #tpu.memory_space<vmem>>, vector<1x1x14x16xf32>
    %500 = vector.shape_cast %499 : vector<1x1x14x16xf32> to vector<14x16xf32>
    %c2_514 = arith.constant 2 : index
    %c6_515 = arith.constant 6 : index
    %c0_516 = arith.constant 0 : index
    %c0_517 = arith.constant 0 : index
    %501 = vector.load %arg7[%c2_514, %c6_515, %c0_516, %c0_517] : memref<4x8x16x16xf32, #tpu.memory_space<vmem>>, vector<1x1x14x16xf32>
    %502 = vector.shape_cast %501 : vector<1x1x14x16xf32> to vector<14x16xf32>
    %c3_518 = arith.constant 3 : index
    %c6_519 = arith.constant 6 : index
    %c0_520 = arith.constant 0 : index
    %c0_521 = arith.constant 0 : index
    %503 = vector.load %arg7[%c3_518, %c6_519, %c0_520, %c0_521] : memref<4x8x16x16xf32, #tpu.memory_space<vmem>>, vector<1x1x14x16xf32>
    %504 = vector.shape_cast %503 : vector<1x1x14x16xf32> to vector<14x16xf32>
    %c2_522 = arith.constant 2 : index
    %c6_523 = arith.constant 6 : index
    %c2_524 = arith.constant 2 : index
    %c0_525 = arith.constant 0 : index
    %505 = vector.load %arg7[%c2_522, %c6_523, %c2_524, %c0_525] : memref<4x8x16x16xf32, #tpu.memory_space<vmem>>, vector<1x1x14x16xf32>
    %506 = vector.shape_cast %505 : vector<1x1x14x16xf32> to vector<14x16xf32>
    %c0_526 = arith.constant 0 : index
    %c7_527 = arith.constant 7 : index
    %c0_528 = arith.constant 0 : index
    %c0_529 = arith.constant 0 : index
    %507 = vector.load %arg7[%c0_526, %c7_527, %c0_528, %c0_529] : memref<4x8x16x16xf32, #tpu.memory_space<vmem>>, vector<1x1x14x16xf32>
    %508 = vector.shape_cast %507 : vector<1x1x14x16xf32> to vector<14x16xf32>
    %c1_530 = arith.constant 1 : index
    %c7_531 = arith.constant 7 : index
    %c0_532 = arith.constant 0 : index
    %c0_533 = arith.constant 0 : index
    %509 = vector.load %arg7[%c1_530, %c7_531, %c0_532, %c0_533] : memref<4x8x16x16xf32, #tpu.memory_space<vmem>>, vector<1x1x14x16xf32>
    %510 = vector.shape_cast %509 : vector<1x1x14x16xf32> to vector<14x16xf32>
    %c0_534 = arith.constant 0 : index
    %c7_535 = arith.constant 7 : index
    %c2_536 = arith.constant 2 : index
    %c0_537 = arith.constant 0 : index
    %511 = vector.load %arg7[%c0_534, %c7_535, %c2_536, %c0_537] : memref<4x8x16x16xf32, #tpu.memory_space<vmem>>, vector<1x1x14x16xf32>
    %512 = vector.shape_cast %511 : vector<1x1x14x16xf32> to vector<14x16xf32>
    %513 = tpu.concatenate %496, %498, %500, %502, %504, %506, %508, %510, %512 in 1 : vector<14x16xf32>, vector<14x16xf32>, vector<14x16xf32>, vector<14x16xf32>, vector<14x16xf32>, vector<14x16xf32>, vector<14x16xf32>, vector<14x16xf32>, vector<14x16xf32> -> vector<14x144xf32>
    %c0_538 = arith.constant 0 : index
    %c0_539 = arith.constant 0 : index
    %514 = vector.load %arg2[%c0_538, %c0_539] : memref<144x8xf32, #tpu.memory_space<vmem>>, vector<144x8xf32>
    %cst_540 = arith.constant dense<0.000000e+00> : vector<14x8xf32>
    %515 = tpu.matmul %513, %514, %cst_540 {dimension_numbers = #tpu.dot_dimension_numbers<[1], [0], [0], [1], [0, 0, 1, 1], [], []>} : vector<14x144xf32>, vector<144x8xf32>, vector<14x8xf32> -> vector<14x8xf32>
    %516 = vector.broadcast %133 : vector<1x8xf32> to vector<14x8xf32>
    %517 = arith.addf %515, %516 : vector<14x8xf32>
    %cst_541 = arith.constant 0.000000e+00 : f32
    %518 = vector.broadcast %cst_541 : f32 to vector<14x8xf32>
    %519 = arith.maximumf %517, %518 : vector<14x8xf32>
    %520 = vector.extract_strided_slice %519 {offsets = [0, 0], sizes = [2, 8], strides = [1, 1]} : vector<14x8xf32> to vector<2x8xf32>
    %c42 = arith.constant 42 : index
    %c0_542 = arith.constant 0 : index
    %c0_543 = arith.constant 0 : index
    %521 = vector.load %arg4[%c42, %c0_542, %c0_543] : memref<49x8x128xf32, #tpu.memory_space<vmem>>, vector<1x8x128xf32>
    %522 = vector.shape_cast %521 : vector<1x8x128xf32> to vector<8x128xf32>
    %cst_544 = arith.constant dense<0.000000e+00> : vector<2x128xf32>
    %523 = tpu.matmul %520, %522, %cst_544 {dimension_numbers = #tpu.dot_dimension_numbers<[1], [0], [0], [1], [0, 0, 1, 1], [], []>} : vector<2x8xf32>, vector<8x128xf32>, vector<2x128xf32> -> vector<2x128xf32>
    %524 = arith.addf %494, %523 : vector<2x128xf32>
    %525 = vector.extract_strided_slice %519 {offsets = [2, 0], sizes = [2, 8], strides = [1, 1]} : vector<14x8xf32> to vector<2x8xf32>
    %c43 = arith.constant 43 : index
    %c0_545 = arith.constant 0 : index
    %c0_546 = arith.constant 0 : index
    %526 = vector.load %arg4[%c43, %c0_545, %c0_546] : memref<49x8x128xf32, #tpu.memory_space<vmem>>, vector<1x8x128xf32>
    %527 = vector.shape_cast %526 : vector<1x8x128xf32> to vector<8x128xf32>
    %cst_547 = arith.constant dense<0.000000e+00> : vector<2x128xf32>
    %528 = tpu.matmul %525, %527, %cst_547 {dimension_numbers = #tpu.dot_dimension_numbers<[1], [0], [0], [1], [0, 0, 1, 1], [], []>} : vector<2x8xf32>, vector<8x128xf32>, vector<2x128xf32> -> vector<2x128xf32>
    %529 = arith.addf %524, %528 : vector<2x128xf32>
    %530 = vector.extract_strided_slice %519 {offsets = [4, 0], sizes = [2, 8], strides = [1, 1]} : vector<14x8xf32> to vector<2x8xf32>
    %c44 = arith.constant 44 : index
    %c0_548 = arith.constant 0 : index
    %c0_549 = arith.constant 0 : index
    %531 = vector.load %arg4[%c44, %c0_548, %c0_549] : memref<49x8x128xf32, #tpu.memory_space<vmem>>, vector<1x8x128xf32>
    %532 = vector.shape_cast %531 : vector<1x8x128xf32> to vector<8x128xf32>
    %cst_550 = arith.constant dense<0.000000e+00> : vector<2x128xf32>
    %533 = tpu.matmul %530, %532, %cst_550 {dimension_numbers = #tpu.dot_dimension_numbers<[1], [0], [0], [1], [0, 0, 1, 1], [], []>} : vector<2x8xf32>, vector<8x128xf32>, vector<2x128xf32> -> vector<2x128xf32>
    %534 = arith.addf %529, %533 : vector<2x128xf32>
    %535 = vector.extract_strided_slice %519 {offsets = [6, 0], sizes = [2, 8], strides = [1, 1]} : vector<14x8xf32> to vector<2x8xf32>
    %c45 = arith.constant 45 : index
    %c0_551 = arith.constant 0 : index
    %c0_552 = arith.constant 0 : index
    %536 = vector.load %arg4[%c45, %c0_551, %c0_552] : memref<49x8x128xf32, #tpu.memory_space<vmem>>, vector<1x8x128xf32>
    %537 = vector.shape_cast %536 : vector<1x8x128xf32> to vector<8x128xf32>
    %cst_553 = arith.constant dense<0.000000e+00> : vector<2x128xf32>
    %538 = tpu.matmul %535, %537, %cst_553 {dimension_numbers = #tpu.dot_dimension_numbers<[1], [0], [0], [1], [0, 0, 1, 1], [], []>} : vector<2x8xf32>, vector<8x128xf32>, vector<2x128xf32> -> vector<2x128xf32>
    %539 = arith.addf %534, %538 : vector<2x128xf32>
    %540 = vector.extract_strided_slice %519 {offsets = [8, 0], sizes = [2, 8], strides = [1, 1]} : vector<14x8xf32> to vector<2x8xf32>
    %c46 = arith.constant 46 : index
    %c0_554 = arith.constant 0 : index
    %c0_555 = arith.constant 0 : index
    %541 = vector.load %arg4[%c46, %c0_554, %c0_555] : memref<49x8x128xf32, #tpu.memory_space<vmem>>, vector<1x8x128xf32>
    %542 = vector.shape_cast %541 : vector<1x8x128xf32> to vector<8x128xf32>
    %cst_556 = arith.constant dense<0.000000e+00> : vector<2x128xf32>
    %543 = tpu.matmul %540, %542, %cst_556 {dimension_numbers = #tpu.dot_dimension_numbers<[1], [0], [0], [1], [0, 0, 1, 1], [], []>} : vector<2x8xf32>, vector<8x128xf32>, vector<2x128xf32> -> vector<2x128xf32>
    %544 = arith.addf %539, %543 : vector<2x128xf32>
    %545 = vector.extract_strided_slice %519 {offsets = [10, 0], sizes = [2, 8], strides = [1, 1]} : vector<14x8xf32> to vector<2x8xf32>
    %c47 = arith.constant 47 : index
    %c0_557 = arith.constant 0 : index
    %c0_558 = arith.constant 0 : index
    %546 = vector.load %arg4[%c47, %c0_557, %c0_558] : memref<49x8x128xf32, #tpu.memory_space<vmem>>, vector<1x8x128xf32>
    %547 = vector.shape_cast %546 : vector<1x8x128xf32> to vector<8x128xf32>
    %cst_559 = arith.constant dense<0.000000e+00> : vector<2x128xf32>
    %548 = tpu.matmul %545, %547, %cst_559 {dimension_numbers = #tpu.dot_dimension_numbers<[1], [0], [0], [1], [0, 0, 1, 1], [], []>} : vector<2x8xf32>, vector<8x128xf32>, vector<2x128xf32> -> vector<2x128xf32>
    %549 = arith.addf %544, %548 : vector<2x128xf32>
    %550 = vector.extract_strided_slice %519 {offsets = [12, 0], sizes = [2, 8], strides = [1, 1]} : vector<14x8xf32> to vector<2x8xf32>
    %c48 = arith.constant 48 : index
    %c0_560 = arith.constant 0 : index
    %c0_561 = arith.constant 0 : index
    %551 = vector.load %arg4[%c48, %c0_560, %c0_561] : memref<49x8x128xf32, #tpu.memory_space<vmem>>, vector<1x8x128xf32>
    %552 = vector.shape_cast %551 : vector<1x8x128xf32> to vector<8x128xf32>
    %cst_562 = arith.constant dense<0.000000e+00> : vector<2x128xf32>
    %553 = tpu.matmul %550, %552, %cst_562 {dimension_numbers = #tpu.dot_dimension_numbers<[1], [0], [0], [1], [0, 0, 1, 1], [], []>} : vector<2x8xf32>, vector<8x128xf32>, vector<2x128xf32> -> vector<2x128xf32>
    %554 = arith.addf %549, %553 : vector<2x128xf32>
    %c0_563 = arith.constant 0 : index
    %c0_564 = arith.constant 0 : index
    %555 = vector.load %arg5[%c0_563, %c0_564] : memref<1x128xf32, #tpu.memory_space<vmem>>, vector<1x128xf32>
    %556 = vector.broadcast %555 : vector<1x128xf32> to vector<2x128xf32>
    %557 = arith.addf %554, %556 : vector<2x128xf32>
    %c0_565 = arith.constant 0 : index
    %c0_566 = arith.constant 0 : index
    %558 = vector.load %arg6[%c0_565, %c0_566] : memref<2x128xf32, #tpu.memory_space<vmem>>, vector<2x128xf32>
    tpu.vector_store %arg6[%c0_565, %c0_566], %557 {strides = array<i32>} : memref<2x128xf32, #tpu.memory_space<vmem>>, vector<2x128xf32>,
    return
  }
}

</mosaic_0001>

<llo_original>
// kernel: encoder_forward.1
$region0: #{encoder_forward.1}
  #allocation0 [shape = 'u32[]', space=smem, size = 0x4, offset = 0x4, fixed_abs, tag = 'smem constant byte address 0x4 - core index']
  #allocation1 [shape = 'u32[72,128]{1,0:T(1,128)}', space=vmem, size = 0x9000, scoped, tag = 'internal scratch']
  #allocation2 [shape = 'f32[4,8,16,16]{3,2,1,0:T(8,128)}', space=vmem, size = 0x40000, scoped, tag = 'scratch operand']
  %s0 = inlined_call_operand.vmem [shape: f32[512,10], index: 0, kind: input, shape index: {}]
  %s1 = inlined_call_operand.vmem [shape: f32[10,16], index: 1, kind: input, shape index: {}]
  %s2 = inlined_call_operand.vmem [shape: f32[144,8], index: 2, kind: input, shape index: {}]
  %s3 = inlined_call_operand.vmem [shape: f32[1,8], index: 3, kind: input, shape index: {}]
  %s4 = inlined_call_operand.vmem [shape: f32[49,8,128], index: 4, kind: input, shape index: {}]
  %s5 = inlined_call_operand.vmem [shape: f32[1,128], index: 5, kind: input, shape index: {}]
  %s6 = inlined_call_operand.hbm [shape: f32[2,128], index: 6, kind: output, shape index: {}]
  %s7 = sld [smem:[#allocation0]]
  $region34: #{encoder_forward.1} parent=0
    _
  %s9 = ssub.s32 1, %s7
  %s10 = scalar_select 0, %s9, %s7
  $region1: #{encoder_forward.1} parent=0
    #allocation3 [shape = 'u8[1024]{0}', space=vmem, size = 0x400, scoped, tag = 'output window, operand 0, single buffered']
    #allocation4 [shape = 's32[1]{0}', space=sflag, size = 0x4, scoped, tag = 'scoped memory for encoder_forward.1']
    %11 = vsyncpa [#allocation4], 0
    // Predicated region
    $region2: #{encoder_forward.1} parent=1 // pred_check
      _
    $region3: #{encoder_forward.1} parent=1 // pred_check_branch
      %13 = sbr.rel (0) target = $region5
    $region4: #{encoder_forward.1} parent=1 // pred_region
      _
    $region5: #{encoder_forward.1} parent=1 // pred_fallthru
      _
    // Predicated region
    $region6: #{encoder_forward.1} parent=1 // pred_check
      _
    $region7: #{encoder_forward.1} parent=1 // pred_check_branch
      %15 = sbr.rel (0) target = $region9
    $region8: #{encoder_forward.1} parent=1 // pred_region
      _
    $region9: #{encoder_forward.1} parent=1 // pred_fallthru
      _
    // Predicated region
    $region10: #{encoder_forward.1} parent=1 // pred_check
      _
    $region11: #{encoder_forward.1} parent=1 // pred_check_branch
      %17 = sbr.rel (0) target = $region13
    $region12: #{encoder_forward.1} parent=1 // pred_region
      _
    $region13: #{encoder_forward.1} parent=1 // pred_fallthru
      _
    // Predicated region
    $region14: #{encoder_forward.1} parent=1 // pred_check
      _
    $region15: #{encoder_forward.1} parent=1 // pred_check_branch
      %19 = sbr.rel (0) target = $region17
    $region16: #{encoder_forward.1} parent=1 // pred_region
      _
    $region17: #{encoder_forward.1} parent=1 // pred_fallthru
      _
    // Predicated region
    $region18: #{encoder_forward.1} parent=1 // pred_check
      _
    $region19: #{encoder_forward.1} parent=1 // pred_check_branch
      %21 = sbr.rel (0) target = $region21
    $region20: #{encoder_forward.1} parent=1 // pred_region
      _
    $region21: #{encoder_forward.1} parent=1 // pred_fallthru
      _
    // Predicated region
    $region22: #{encoder_forward.1} parent=1 // pred_check
      _
    $region23: #{encoder_forward.1} parent=1 // pred_check_branch
      %23 = sbr.rel (0) target = $region25
    $region24: #{encoder_forward.1} parent=1 // pred_region
      _
    $region25: #{encoder_forward.1} parent=1 // pred_fallthru
      _
    %v24 = vld [vmem:[%s0] sm:$0xff]
    %v25 = vld [vmem:[%s0 + $0x8] sm:$0xff]
    %v26 = vld [vmem:[%s0 + $0x10] sm:$0xff]
    %v27 = vld [vmem:[%s0 + $0x18] sm:$0xff]
    %v28 = vld [vmem:[%s0 + $0x20] sm:$0xff]
    %v29 = vld [vmem:[%s0 + $0x28] sm:$0xff]
    %v30 = vld [vmem:[%s0 + $0x30] sm:$0xff]
    %v31 = vld [vmem:[%s0 + $0x38] sm:$0xff]
    %v32 = vld [vmem:[%s0 + $0x40] sm:$0xff]
    %v33 = vld [vmem:[%s0 + $0x48] sm:$0xff]
    %v34 = vld [vmem:[%s0 + $0x50] sm:$0xff]
    %v35 = vld [vmem:[%s0 + $0x58] sm:$0xff]
    %v36 = vld [vmem:[%s0 + $0x60] sm:$0xff]
    %v37 = vld [vmem:[%s0 + $0x68] sm:$0xff]
    %v38 = vld [vmem:[%s0 + $0x70] sm:$0xff]
    %v39 = vld [vmem:[%s0 + $0x78] sm:$0xff]
    %v40 = vld [vmem:[%s0 + $0x80] sm:$0xff]
    %v41 = vld [vmem:[%s0 + $0x88] sm:$0xff]
    %v42 = vld [vmem:[%s0 + $0x90] sm:$0xff]
    %v43 = vld [vmem:[%s0 + $0x98] sm:$0xff]
    %v44 = vld [vmem:[%s0 + $0xa0] sm:$0xff]
    %v45 = vld [vmem:[%s0 + $0xa8] sm:$0xff]
    %v46 = vld [vmem:[%s0 + $0xb0] sm:$0xff]
    %v47 = vld [vmem:[%s0 + $0xb8] sm:$0xff]
    %v48 = vld [vmem:[%s0 + $0xc0] sm:$0xff]
    %v49 = vld [vmem:[%s0 + $0xc8] sm:$0xff]
    %v50 = vld [vmem:[%s0 + $0xd0] sm:$0xff]
    %v51 = vld [vmem:[%s0 + $0xd8] sm:$0xff]
    %v52 = vld [vmem:[%s0 + $0xe0] sm:$0xff]
    %v53 = vld [vmem:[%s0 + $0xe8] sm:$0xff]
    %v54 = vld [vmem:[%s0 + $0xf0] sm:$0xff]
    %v55 = vld [vmem:[%s0 + $0xf8] sm:$0xff]
    %v56 = vld [vmem:[%s0 + $0x100] sm:$0xff]
    %v57 = vld [vmem:[%s0 + $0x108] sm:$0xff]
    %v58 = vld [vmem:[%s0 + $0x110] sm:$0xff]
    %v59 = vld [vmem:[%s0 + $0x118] sm:$0xff]
    %v60 = vld [vmem:[%s0 + $0x120] sm:$0xff]
    %v61 = vld [vmem:[%s0 + $0x128] sm:$0xff]
    %v62 = vld [vmem:[%s0 + $0x130] sm:$0xff]
    %v63 = vld [vmem:[%s0 + $0x138] sm:$0xff]
    %v64 = vld [vmem:[%s0 + $0x140] sm:$0xff]
    %v65 = vld [vmem:[%s0 + $0x148] sm:$0xff]
    %v66 = vld [vmem:[%s0 + $0x150] sm:$0xff]
    %v67 = vld [vmem:[%s0 + $0x158] sm:$0xff]
    %v68 = vld [vmem:[%s0 + $0x160] sm:$0xff]
    %v69 = vld [vmem:[%s0 + $0x168] sm:$0xff]
    %v70 = vld [vmem:[%s0 + $0x170] sm:$0xff]
    %v71 = vld [vmem:[%s0 + $0x178] sm:$0xff]
    %v72 = vld [vmem:[%s0 + $0x180] sm:$0xff]
    %v73 = vld [vmem:[%s0 + $0x188] sm:$0xff]
    %v74 = vld [vmem:[%s0 + $0x190] sm:$0xff]
    %v75 = vld [vmem:[%s0 + $0x198] sm:$0xff]
    %v76 = vld [vmem:[%s0 + $0x1a0] sm:$0xff]
    %v77 = vld [vmem:[%s0 + $0x1a8] sm:$0xff]
    %v78 = vld [vmem:[%s0 + $0x1b0] sm:$0xff]
    %v79 = vld [vmem:[%s0 + $0x1b8] sm:$0xff]
    %v80 = vld [vmem:[%s0 + $0x1c0] sm:$0xff]
    %v81 = vld [vmem:[%s0 + $0x1c8] sm:$0xff]
    %v82 = vld [vmem:[%s0 + $0x1d0] sm:$0xff]
    %v83 = vld [vmem:[%s0 + $0x1d8] sm:$0xff]
    %v84 = vld [vmem:[%s0 + $0x1e0] sm:$0xff]
    %v85 = vld [vmem:[%s0 + $0x1e8] sm:$0xff]
    %v86 = vld [vmem:[%s0 + $0x1f0] sm:$0xff]
    %v87 = vld [vmem:[%s0 + $0x1f8] sm:$0xff]
    %v88 = vld [vmem:[%s1] sm:$0xff]
    %v89 = vld [vmem:[%s1 + $0x8] sm:$0x3]
    %vm90 = vcmask 80896
    %v92 = vsel %vm90, %v24, 0
    %v95 = vsel %vm90, %v25, 0
    %v98 = vsel %vm90, %v26, 0
    %v101 = vsel %vm90, %v27, 0
    %v104 = vsel %vm90, %v28, 0
    %v107 = vsel %vm90, %v29, 0
    %v110 = vsel %vm90, %v30, 0
    %v113 = vsel %vm90, %v31, 0
    %v116 = vsel %vm90, %v32, 0
    %v119 = vsel %vm90, %v33, 0
    %v122 = vsel %vm90, %v34, 0
    %v125 = vsel %vm90, %v35, 0
    %v128 = vsel %vm90, %v36, 0
    %v131 = vsel %vm90, %v37, 0
    %v134 = vsel %vm90, %v38, 0
    %v137 = vsel %vm90, %v39, 0
    %v140 = vsel %vm90, %v40, 0
    %v143 = vsel %vm90, %v41, 0
    %v146 = vsel %vm90, %v42, 0
    %v149 = vsel %vm90, %v43, 0
    %v152 = vsel %vm90, %v44, 0
    %v155 = vsel %vm90, %v45, 0
    %v158 = vsel %vm90, %v46, 0
    %v161 = vsel %vm90, %v47, 0
    %v164 = vsel %vm90, %v48, 0
    %v167 = vsel %vm90, %v49, 0
    %v170 = vsel %vm90, %v50, 0
    %v173 = vsel %vm90, %v51, 0
    %v176 = vsel %vm90, %v52, 0
    %v179 = vsel %vm90, %v53, 0
    %v182 = vsel %vm90, %v54, 0
    %v185 = vsel %vm90, %v55, 0
    %v188 = vsel %vm90, %v56, 0
    %v191 = vsel %vm90, %v57, 0
    %v194 = vsel %vm90, %v58, 0
    %v197 = vsel %vm90, %v59, 0
    %v200 = vsel %vm90, %v60, 0
    %v203 = vsel %vm90, %v61, 0
    %v206 = vsel %vm90, %v62, 0
    %v209 = vsel %vm90, %v63, 0
    %v212 = vsel %vm90, %v64, 0
    %v215 = vsel %vm90, %v65, 0
    %v218 = vsel %vm90, %v66, 0
    %v221 = vsel %vm90, %v67, 0
    %v224 = vsel %vm90, %v68, 0
    %v227 = vsel %vm90, %v69, 0
    %v230 = vsel %vm90, %v70, 0
    %v233 = vsel %vm90, %v71, 0
    %v236 = vsel %vm90, %v72, 0
    %v239 = vsel %vm90, %v73, 0
    %v242 = vsel %vm90, %v74, 0
    %v245 = vsel %vm90, %v75, 0
    %v248 = vsel %vm90, %v76, 0
    %v251 = vsel %vm90, %v77, 0
    %v254 = vsel %vm90, %v78, 0
    %v257 = vsel %vm90, %v79, 0
    %v260 = vsel %vm90, %v80, 0
    %v263 = vsel %vm90, %v81, 0
    %v266 = vsel %vm90, %v82, 0
    %v269 = vsel %vm90, %v83, 0
    %v272 = vsel %vm90, %v84, 0
    %v275 = vsel %vm90, %v85, 0
    %v278 = vsel %vm90, %v86, 0
    %v281 = vsel %vm90, %v87, 0
    %vm283 = vcmask 1041408
    %v285 = vsel %vm283, %v89, 0
    %287 = vmatpush.msra.mxu0 0.0
    %288 = vmatpush.msra.mxu0 0.0
    %289 = vmatpush.msra.mxu0 0.0
    %290 = vmatpush.msra.mxu0 0.0
    %291 = vmatpush.msra.mxu0 0.0
    %292 = vmatpush.msra.mxu0 0.0
    %293 = vmatpush.msra.mxu0 0.0
    %294 = vmatpush.msra.mxu0 0.0
    %295 = vmatpush.msra.mxu0 0.0
    %296 = vmatpush.msra.mxu0 0.0
    %297 = vmatpush.msra.mxu0 0.0
    %298 = vmatpush.msra.mxu0 0.0
    %299 = vmatpush.msra.mxu0 0.0
    %300 = vmatpush.msra.mxu0 0.0
    %301 = vmatpush.msra.mxu0 %v285
    %302 = vmatpush.msra.mxu0 %v88
    %303 = vmatmul.f32.gmra.mxu0 %v92
    %v304 = vpop.f32.mrf.mxu0
    %v305 = vadd.f32 0.0, %v304
    %306 = vmatmul.f32.gmra.mxu0 %v95
    %v307 = vpop.f32.mrf.mxu0
    %v308 = vadd.f32 0.0, %v307
    %309 = vmatmul.f32.gmra.mxu0 %v98
    %v310 = vpop.f32.mrf.mxu0
    %v311 = vadd.f32 0.0, %v310
    %312 = vmatmul.f32.gmra.mxu0 %v101
    %v313 = vpop.f32.mrf.mxu0
    %v314 = vadd.f32 0.0, %v313
    %315 = vmatmul.f32.gmra.mxu0 %v104
    %v316 = vpop.f32.mrf.mxu0
    %v317 = vadd.f32 0.0, %v316
    %318 = vmatmul.f32.gmra.mxu0 %v107
    %v319 = vpop.f32.mrf.mxu0
    %v320 = vadd.f32 0.0, %v319
    %321 = vmatmul.f32.gmra.mxu0 %v110
    %v322 = vpop.f32.mrf.mxu0
    %v323 = vadd.f32 0.0, %v322
    %324 = vmatmul.f32.gmra.mxu0 %v113
    %v325 = vpop.f32.mrf.mxu0
    %v326 = vadd.f32 0.0, %v325
    %327 = vmatmul.f32.gmra.mxu0 %v116
    %v328 = vpop.f32.mrf.mxu0
    %v329 = vadd.f32 0.0, %v328
    %330 = vmatmul.f32.gmra.mxu0 %v119
    %v331 = vpop.f32.mrf.mxu0
    %v332 = vadd.f32 0.0, %v331
    %333 = vmatmul.f32.gmra.mxu0 %v122
    %v334 = vpop.f32.mrf.mxu0
    %v335 = vadd.f32 0.0, %v334
    %336 = vmatmul.f32.gmra.mxu0 %v125
    %v337 = vpop.f32.mrf.mxu0
    %v338 = vadd.f32 0.0, %v337
    %339 = vmatmul.f32.gmra.mxu0 %v128
    %v340 = vpop.f32.mrf.mxu0
    %v341 = vadd.f32 0.0, %v340
    %342 = vmatmul.f32.gmra.mxu0 %v131
    %v343 = vpop.f32.mrf.mxu0
    %v344 = vadd.f32 0.0, %v343
    %345 = vmatmul.f32.gmra.mxu0 %v134
    %v346 = vpop.f32.mrf.mxu0
    %v347 = vadd.f32 0.0, %v346
    %348 = vmatmul.f32.gmra.mxu0 %v137
    %v349 = vpop.f32.mrf.mxu0
    %v350 = vadd.f32 0.0, %v349
    %351 = vmatmul.f32.gmra.mxu0 %v140
    %v352 = vpop.f32.mrf.mxu0
    %v353 = vadd.f32 0.0, %v352
    %354 = vmatmul.f32.gmra.mxu0 %v143
    %v355 = vpop.f32.mrf.mxu0
    %v356 = vadd.f32 0.0, %v355
    %357 = vmatmul.f32.gmra.mxu0 %v146
    %v358 = vpop.f32.mrf.mxu0
    %v359 = vadd.f32 0.0, %v358
    %360 = vmatmul.f32.gmra.mxu0 %v149
    %v361 = vpop.f32.mrf.mxu0
    %v362 = vadd.f32 0.0, %v361
    %363 = vmatmul.f32.gmra.mxu0 %v152
    %v364 = vpop.f32.mrf.mxu0
    %v365 = vadd.f32 0.0, %v364
    %366 = vmatmul.f32.gmra.mxu0 %v155
    %v367 = vpop.f32.mrf.mxu0
    %v368 = vadd.f32 0.0, %v367
    %369 = vmatmul.f32.gmra.mxu0 %v158
    %v370 = vpop.f32.mrf.mxu0
    %v371 = vadd.f32 0.0, %v370
    %372 = vmatmul.f32.gmra.mxu0 %v161
    %v373 = vpop.f32.mrf.mxu0
    %v374 = vadd.f32 0.0, %v373
    %375 = vmatmul.f32.gmra.mxu0 %v164
    %v376 = vpop.f32.mrf.mxu0
    %v377 = vadd.f32 0.0, %v376
    %378 = vmatmul.f32.gmra.mxu0 %v167
    %v379 = vpop.f32.mrf.mxu0
    %v380 = vadd.f32 0.0, %v379
    %381 = vmatmul.f32.gmra.mxu0 %v170
    %v382 = vpop.f32.mrf.mxu0
    %v383 = vadd.f32 0.0, %v382
    %384 = vmatmul.f32.gmra.mxu0 %v173
    %v385 = vpop.f32.mrf.mxu0
    %v386 = vadd.f32 0.0, %v385
    %387 = vmatmul.f32.gmra.mxu0 %v176
    %v388 = vpop.f32.mrf.mxu0
    %v389 = vadd.f32 0.0, %v388
    %390 = vmatmul.f32.gmra.mxu0 %v179
    %v391 = vpop.f32.mrf.mxu0
    %v392 = vadd.f32 0.0, %v391
    %393 = vmatmul.f32.gmra.mxu0 %v182
    %v394 = vpop.f32.mrf.mxu0
    %v395 = vadd.f32 0.0, %v394
    %396 = vmatmul.f32.gmra.mxu0 %v185
    %v397 = vpop.f32.mrf.mxu0
    %v398 = vadd.f32 0.0, %v397
    %399 = vmatmul.f32.gmra.mxu0 %v188
    %v400 = vpop.f32.mrf.mxu0
    %v401 = vadd.f32 0.0, %v400
    %402 = vmatmul.f32.gmra.mxu0 %v191
    %v403 = vpop.f32.mrf.mxu0
    %v404 = vadd.f32 0.0, %v403
    %405 = vmatmul.f32.gmra.mxu0 %v194
    %v406 = vpop.f32.mrf.mxu0
    %v407 = vadd.f32 0.0, %v406
    %408 = vmatmul.f32.gmra.mxu0 %v197
    %v409 = vpop.f32.mrf.mxu0
    %v410 = vadd.f32 0.0, %v409
    %411 = vmatmul.f32.gmra.mxu0 %v200
    %v412 = vpop.f32.mrf.mxu0
    %v413 = vadd.f32 0.0, %v412
    %414 = vmatmul.f32.gmra.mxu0 %v203
    %v415 = vpop.f32.mrf.mxu0
    %v416 = vadd.f32 0.0, %v415
    %417 = vmatmul.f32.gmra.mxu0 %v206
    %v418 = vpop.f32.mrf.mxu0
    %v419 = vadd.f32 0.0, %v418
    %420 = vmatmul.f32.gmra.mxu0 %v209
    %v421 = vpop.f32.mrf.mxu0
    %v422 = vadd.f32 0.0, %v421
    %423 = vmatmul.f32.gmra.mxu0 %v212
    %v424 = vpop.f32.mrf.mxu0
    %v425 = vadd.f32 0.0, %v424
    %426 = vmatmul.f32.gmra.mxu0 %v215
    %v427 = vpop.f32.mrf.mxu0
    %v428 = vadd.f32 0.0, %v427
    %429 = vmatmul.f32.gmra.mxu0 %v218
    %v430 = vpop.f32.mrf.mxu0
    %v431 = vadd.f32 0.0, %v430
    %432 = vmatmul.f32.gmra.mxu0 %v221
    %v433 = vpop.f32.mrf.mxu0
    %v434 = vadd.f32 0.0, %v433
    %435 = vmatmul.f32.gmra.mxu0 %v224
    %v436 = vpop.f32.mrf.mxu0
    %v437 = vadd.f32 0.0, %v436
    %438 = vmatmul.f32.gmra.mxu0 %v227
    %v439 = vpop.f32.mrf.mxu0
    %v440 = vadd.f32 0.0, %v439
    %441 = vmatmul.f32.gmra.mxu0 %v230
    %v442 = vpop.f32.mrf.mxu0
    %v443 = vadd.f32 0.0, %v442
    %444 = vmatmul.f32.gmra.mxu0 %v233
    %v445 = vpop.f32.mrf.mxu0
    %v446 = vadd.f32 0.0, %v445
    %447 = vmatmul.f32.gmra.mxu0 %v236
    %v448 = vpop.f32.mrf.mxu0
    %v449 = vadd.f32 0.0, %v448
    %450 = vmatmul.f32.gmra.mxu0 %v239
    %v451 = vpop.f32.mrf.mxu0
    %v452 = vadd.f32 0.0, %v451
    %453 = vmatmul.f32.gmra.mxu0 %v242
    %v454 = vpop.f32.mrf.mxu0
    %v455 = vadd.f32 0.0, %v454
    %456 = vmatmul.f32.gmra.mxu0 %v245
    %v457 = vpop.f32.mrf.mxu0
    %v458 = vadd.f32 0.0, %v457
    %459 = vmatmul.f32.gmra.mxu0 %v248
    %v460 = vpop.f32.mrf.mxu0
    %v461 = vadd.f32 0.0, %v460
    %462 = vmatmul.f32.gmra.mxu0 %v251
    %v463 = vpop.f32.mrf.mxu0
    %v464 = vadd.f32 0.0, %v463
    %465 = vmatmul.f32.gmra.mxu0 %v254
    %v466 = vpop.f32.mrf.mxu0
    %v467 = vadd.f32 0.0, %v466
    %468 = vmatmul.f32.gmra.mxu0 %v257
    %v469 = vpop.f32.mrf.mxu0
    %v470 = vadd.f32 0.0, %v469
    %471 = vmatmul.f32.gmra.mxu0 %v260
    %v472 = vpop.f32.mrf.mxu0
    %v473 = vadd.f32 0.0, %v472
    %474 = vmatmul.f32.gmra.mxu0 %v263
    %v475 = vpop.f32.mrf.mxu0
    %v476 = vadd.f32 0.0, %v475
    %477 = vmatmul.f32.gmra.mxu0 %v266
    %v478 = vpop.f32.mrf.mxu0
    %v479 = vadd.f32 0.0, %v478
    %480 = vmatmul.f32.gmra.mxu0 %v269
    %v481 = vpop.f32.mrf.mxu0
    %v482 = vadd.f32 0.0, %v481
    %483 = vmatmul.f32.gmra.mxu0 %v272
    %v484 = vpop.f32.mrf.mxu0
    %v485 = vadd.f32 0.0, %v484
    %486 = vmatmul.f32.gmra.mxu0 %v275
    %v487 = vpop.f32.mrf.mxu0
    %v488 = vadd.f32 0.0, %v487
    %489 = vmatmul.f32.gmra.mxu0 %v278
    %v490 = vpop.f32.mrf.mxu0
    %v491 = vadd.f32 0.0, %v490
    %492 = vmatmul.f32.gmra.mxu0 %v281
    %v493 = vpop.f32.mrf.mxu0
    %v494 = vadd.f32 0.0, %v493
    %495 = vdwg.mxu0
    %v496 = vmax.f32 %v305, 0.0
    %v497 = vmax.f32 %v308, 0.0
    %v498 = vmax.f32 %v311, 0.0
    %v499 = vmax.f32 %v314, 0.0
    %v500 = vmax.f32 %v317, 0.0
    %v501 = vmax.f32 %v320, 0.0
    %v502 = vmax.f32 %v323, 0.0
    %v503 = vmax.f32 %v326, 0.0
    %v504 = vmax.f32 %v329, 0.0
    %v505 = vmax.f32 %v332, 0.0
    %v506 = vmax.f32 %v335, 0.0
    %v507 = vmax.f32 %v338, 0.0
    %v508 = vmax.f32 %v341, 0.0
    %v509 = vmax.f32 %v344, 0.0
    %v510 = vmax.f32 %v347, 0.0
    %v511 = vmax.f32 %v350, 0.0
    %v512 = vmax.f32 %v353, 0.0
    %v513 = vmax.f32 %v356, 0.0
    %v514 = vmax.f32 %v359, 0.0
    %v515 = vmax.f32 %v362, 0.0
    %v516 = vmax.f32 %v365, 0.0
    %v517 = vmax.f32 %v368, 0.0
    %v518 = vmax.f32 %v371, 0.0
    %v519 = vmax.f32 %v374, 0.0
    %v520 = vmax.f32 %v377, 0.0
    %v521 = vmax.f32 %v380, 0.0
    %v522 = vmax.f32 %v383, 0.0
    %v523 = vmax.f32 %v386, 0.0
    %v524 = vmax.f32 %v389, 0.0
    %v525 = vmax.f32 %v392, 0.0
    %v526 = vmax.f32 %v395, 0.0
    %v527 = vmax.f32 %v398, 0.0
    %v528 = vmax.f32 %v401, 0.0
    %v529 = vmax.f32 %v404, 0.0
    %v530 = vmax.f32 %v407, 0.0
    %v531 = vmax.f32 %v410, 0.0
    %v532 = vmax.f32 %v413, 0.0
    %v533 = vmax.f32 %v416, 0.0
    %v534 = vmax.f32 %v419, 0.0
    %v535 = vmax.f32 %v422, 0.0
    %v536 = vmax.f32 %v425, 0.0
    %v537 = vmax.f32 %v428, 0.0
    %v538 = vmax.f32 %v431, 0.0
    %v539 = vmax.f32 %v434, 0.0
    %v540 = vmax.f32 %v437, 0.0
    %v541 = vmax.f32 %v440, 0.0
    %v542 = vmax.f32 %v443, 0.0
    %v543 = vmax.f32 %v446, 0.0
    %v544 = vmax.f32 %v449, 0.0
    %v545 = vmax.f32 %v452, 0.0
    %v546 = vmax.f32 %v455, 0.0
    %v547 = vmax.f32 %v458, 0.0
    %v548 = vmax.f32 %v461, 0.0
    %v549 = vmax.f32 %v464, 0.0
    %v550 = vmax.f32 %v467, 0.0
    %v551 = vmax.f32 %v470, 0.0
    %v552 = vmax.f32 %v473, 0.0
    %v553 = vmax.f32 %v476, 0.0
    %v554 = vmax.f32 %v479, 0.0
    %v555 = vmax.f32 %v482, 0.0
    %v556 = vmax.f32 %v485, 0.0
    %v557 = vmax.f32 %v488, 0.0
    %v558 = vmax.f32 %v491, 0.0
    %v559 = vmax.f32 %v494, 0.0
    %vm560 = vcmask 130048
    %561 = vst.msk [vmem:[#allocation2] sm:$0xff] %vm560, %v496
    %562 = vst.msk [vmem:[#allocation2 + $0x8] sm:$0xff] %vm560, %v497
    %s563 = scalar_lea.vmem [#allocation2], 16
    %564 = vst.msk [vmem:[%s563] sm:$0xff] %vm560, %v498
    %565 = vst.msk [vmem:[%s563 + $0x8] sm:$0xff] %vm560, %v499
    %s566 = scalar_lea.vmem [#allocation2], 32
    %567 = vst.msk [vmem:[%s566] sm:$0xff] %vm560, %v500
    %568 = vst.msk [vmem:[%s566 + $0x8] sm:$0xff] %vm560, %v501
    %s569 = scalar_lea.vmem [#allocation2], 48
    %570 = vst.msk [vmem:[%s569] sm:$0xff] %vm560, %v502
    %571 = vst.msk [vmem:[%s569 + $0x8] sm:$0xff] %vm560, %v503
    %s572 = scalar_lea.vmem [#allocation2], 64
    %573 = vst.msk [vmem:[%s572] sm:$0xff] %vm560, %v504
    %574 = vst.msk [vmem:[%s572 + $0x8] sm:$0xff] %vm560, %v505
    %s575 = scalar_lea.vmem [#allocation2], 80
    %576 = vst.msk [vmem:[%s575] sm:$0xff] %vm560, %v506
    %577 = vst.msk [vmem:[%s575 + $0x8] sm:$0xff] %vm560, %v507
    %s578 = scalar_lea.vmem [#allocation2], 96
    %579 = vst.msk [vmem:[%s578] sm:$0xff] %vm560, %v508
    %580 = vst.msk [vmem:[%s578 + $0x8] sm:$0xff] %vm560, %v509
    %s581 = scalar_lea.vmem [#allocation2], 112
    %582 = vst.msk [vmem:[%s581] sm:$0xff] %vm560, %v510
    %583 = vst.msk [vmem:[%s581 + $0x8] sm:$0xff] %vm560, %v511
    %s584 = scalar_lea.vmem [#allocation2], 128
    %585 = vst.msk [vmem:[%s584] sm:$0xff] %vm560, %v512
    %586 = vst.msk [vmem:[%s584 + $0x8] sm:$0xff] %vm560, %v513
    %s587 = scalar_lea.vmem [#allocation2], 144
    %588 = vst.msk [vmem:[%s587] sm:$0xff] %vm560, %v514
    %589 = vst.msk [vmem:[%s587 + $0x8] sm:$0xff] %vm560, %v515
    %s590 = scalar_lea.vmem [#allocation2], 160
    %591 = vst.msk [vmem:[%s590] sm:$0xff] %vm560, %v516
    %592 = vst.msk [vmem:[%s590 + $0x8] sm:$0xff] %vm560, %v517
    %s593 = scalar_lea.vmem [#allocation2], 176
    %594 = vst.msk [vmem:[%s593] sm:$0xff] %vm560, %v518
    %595 = vst.msk [vmem:[%s593 + $0x8] sm:$0xff] %vm560, %v519
    %s596 = scalar_lea.vmem [#allocation2], 192
    %597 = vst.msk [vmem:[%s596] sm:$0xff] %vm560, %v520
    %598 = vst.msk [vmem:[%s596 + $0x8] sm:$0xff] %vm560, %v521
    %s599 = scalar_lea.vmem [#allocation2], 208
    %600 = vst.msk [vmem:[%s599] sm:$0xff] %vm560, %v522
    %601 = vst.msk [vmem:[%s599 + $0x8] sm:$0xff] %vm560, %v523
    %s602 = scalar_lea.vmem [#allocation2], 224
    %603 = vst.msk [vmem:[%s602] sm:$0xff] %vm560, %v524
    %604 = vst.msk [vmem:[%s602 + $0x8] sm:$0xff] %vm560, %v525
    %s605 = scalar_lea.vmem [#allocation2], 240
    %606 = vst.msk [vmem:[%s605] sm:$0xff] %vm560, %v526
    %607 = vst.msk [vmem:[%s605 + $0x8] sm:$0xff] %vm560, %v527
    %s608 = scalar_lea.vmem [#allocation2], 256
    %609 = vst.msk [vmem:[%s608] sm:$0xff] %vm560, %v528
    %610 = vst.msk [vmem:[%s608 + $0x8] sm:$0xff] %vm560, %v529
    %s611 = scalar_lea.vmem [#allocation2], 272
    %612 = vst.msk [vmem:[%s611] sm:$0xff] %vm560, %v530
    %613 = vst.msk [vmem:[%s611 + $0x8] sm:$0xff] %vm560, %v531
    %s614 = scalar_lea.vmem [#allocation2], 288
    %615 = vst.msk [vmem:[%s614] sm:$0xff] %vm560, %v532
    %616 = vst.msk [vmem:[%s614 + $0x8] sm:$0xff] %vm560, %v533
    %s617 = scalar_lea.vmem [#allocation2], 304
    %618 = vst.msk [vmem:[%s617] sm:$0xff] %vm560, %v534
    %619 = vst.msk [vmem:[%s617 + $0x8] sm:$0xff] %vm560, %v535
    %s620 = scalar_lea.vmem [#allocation2], 320
    %621 = vst.msk [vmem:[%s620] sm:$0xff] %vm560, %v536
    %622 = vst.msk [vmem:[%s620 + $0x8] sm:$0xff] %vm560, %v537
    %s623 = scalar_lea.vmem [#allocation2], 336
    %624 = vst.msk [vmem:[%s623] sm:$0xff] %vm560, %v538
    %625 = vst.msk [vmem:[%s623 + $0x8] sm:$0xff] %vm560, %v539
    %s626 = scalar_lea.vmem [#allocation2], 352
    %627 = vst.msk [vmem:[%s626] sm:$0xff] %vm560, %v540
    %628 = vst.msk [vmem:[%s626 + $0x8] sm:$0xff] %vm560, %v541
    %s629 = scalar_lea.vmem [#allocation2], 368
    %630 = vst.msk [vmem:[%s629] sm:$0xff] %vm560, %v542
    %631 = vst.msk [vmem:[%s629 + $0x8] sm:$0xff] %vm560, %v543
    %s632 = scalar_lea.vmem [#allocation2], 384
    %633 = vst.msk [vmem:[%s632] sm:$0xff] %vm560, %v544
    %634 = vst.msk [vmem:[%s632 + $0x8] sm:$0xff] %vm560, %v545
    %s635 = scalar_lea.vmem [#allocation2], 400
    %636 = vst.msk [vmem:[%s635] sm:$0xff] %vm560, %v546
    %637 = vst.msk [vmem:[%s635 + $0x8] sm:$0xff] %vm560, %v547
    %s638 = scalar_lea.vmem [#allocation2], 416
    %639 = vst.msk [vmem:[%s638] sm:$0xff] %vm560, %v548
    %640 = vst.msk [vmem:[%s638 + $0x8] sm:$0xff] %vm560, %v549
    %s641 = scalar_lea.vmem [#allocation2], 432
    %642 = vst.msk [vmem:[%s641] sm:$0xff] %vm560, %v550
    %643 = vst.msk [vmem:[%s641 + $0x8] sm:$0xff] %vm560, %v551
    %s644 = scalar_lea.vmem [#allocation2], 448
    %645 = vst.msk [vmem:[%s644] sm:$0xff] %vm560, %v552
    %646 = vst.msk [vmem:[%s644 + $0x8] sm:$0xff] %vm560, %v553
    %s647 = scalar_lea.vmem [#allocation2], 464
    %648 = vst.msk [vmem:[%s647] sm:$0xff] %vm560, %v554
    %649 = vst.msk [vmem:[%s647 + $0x8] sm:$0xff] %vm560, %v555
    %s650 = scalar_lea.vmem [#allocation2], 480
    %651 = vst.msk [vmem:[%s650] sm:$0xff] %vm560, %v556
    %652 = vst.msk [vmem:[%s650 + $0x8] sm:$0xff] %vm560, %v557
    %s653 = scalar_lea.vmem [#allocation2], 496
    %654 = vst.msk [vmem:[%s653] sm:$0xff] %vm560, %v558
    %655 = vst.msk [vmem:[%s653 + $0x8] sm:$0xff] %vm560, %v559
    %v656 = vld [vmem:[%s3] sm:$0x1]
    %v657 = vld [vmem:[#allocation2] sm:$0xff]
    %v658 = vld [vmem:[#allocation2 + $0x8] sm:$0x3f]
    %v659 = vld [vmem:[%s584] sm:$0xff]
    %v660 = vld [vmem:[%s584 + $0x8] sm:$0x3f]
    %v661 = vld [vmem:[#allocation2 + $0x2] sm:$0xff]
    %v662 = vld [vmem:[#allocation2 + $0xa] sm:$0x3f]
    %v663 = vld [vmem:[%s608] sm:$0xff]
    %v664 = vld [vmem:[%s608 + $0x8] sm:$0x3f]
    %v665 = vld [vmem:[%s632] sm:$0xff]
    %v666 = vld [vmem:[%s632 + $0x8] sm:$0x3f]
    %v667 = vld [vmem:[%s608 + $0x2] sm:$0xff]
    %v668 = vld [vmem:[%s608 + $0xa] sm:$0x3f]
    %v669 = vld [vmem:[%s563] sm:$0xff]
    %v670 = vld [vmem:[%s563 + $0x8] sm:$0x3f]
    %v671 = vld [vmem:[%s587] sm:$0xff]
    %v672 = vld [vmem:[%s587 + $0x8] sm:$0x3f]
    %v673 = vld [vmem:[%s563 + $0x2] sm:$0xff]
    %v674 = vld [vmem:[%s563 + $0xa] sm:$0x3f]
    %677 = vrot.lane.b32.xlu0 %v659, 16
    %v678 = vpop.permute.xlu0 %677
    %679 = vrot.lane.b32.xlu0 %v660, 16
    %v680 = vpop.permute.xlu0 %679
    %685 = vrot.lane.b32.xlu0 %v661, 32
    %v686 = vpop.permute.xlu0 %685
    %687 = vrot.lane.b32.xlu0 %v662, 32
    %v688 = vpop.permute.xlu0 %687
    %693 = vrot.lane.b32.xlu0 %v663, 48
    %v694 = vpop.permute.xlu0 %693
    %695 = vrot.lane.b32.xlu0 %v664, 48
    %v696 = vpop.permute.xlu0 %695
    %701 = vrot.lane.b32.xlu0 %v665, 64
    %v702 = vpop.permute.xlu0 %701
    %703 = vrot.lane.b32.xlu0 %v666, 64
    %v704 = vpop.permute.xlu0 %703
    %709 = vrot.lane.b32.xlu0 %v667, 80
    %v710 = vpop.permute.xlu0 %709
    %711 = vrot.lane.b32.xlu0 %v668, 80
    %v712 = vpop.permute.xlu0 %711
    %717 = vrot.lane.b32.xlu0 %v669, 96
    %v718 = vpop.permute.xlu0 %717
    %719 = vrot.lane.b32.xlu0 %v670, 96
    %v720 = vpop.permute.xlu0 %719
    %725 = vrot.lane.b32.xlu0 %v671, 112
    %v726 = vpop.permute.xlu0 %725
    %727 = vrot.lane.b32.xlu0 %v672, 112
    %v728 = vpop.permute.xlu0 %727
    %v731 = vsel %vm560, %v657, %v678
    %v732 = vsel %vm560, %v658, %v680
    %vm733 = vcmask 261120
    %v734 = vsel %vm733, %v731, %v686
    %v735 = vsel %vm733, %v732, %v688
    %vm736 = vcmask 392192
    %v737 = vsel %vm736, %v734, %v694
    %v738 = vsel %vm736, %v735, %v696
    %vm739 = vcmask 523264
    %v740 = vsel %vm739, %v737, %v702
    %v741 = vsel %vm739, %v738, %v704
    %vm742 = vcmask 654336
    %v743 = vsel %vm742, %v740, %v710
    %v744 = vsel %vm742, %v741, %v712
    %vm745 = vcmask 785408
    %v746 = vsel %vm745, %v743, %v718
    %v747 = vsel %vm745, %v744, %v720
    %vm748 = vcmask 916480
    %v749 = vsel %vm748, %v746, %v726
    %v750 = vsel %vm748, %v747, %v728
    %v751 = vld [vmem:[%s2] sm:$0xff]
    %v752 = vld [vmem:[%s2 + $0x8] sm:$0xff]
    %v753 = vld [vmem:[%s2 + $0x10] sm:$0xff]
    %v754 = vld [vmem:[%s2 + $0x18] sm:$0xff]
    %v755 = vld [vmem:[%s2 + $0x20] sm:$0xff]
    %v756 = vld [vmem:[%s2 + $0x28] sm:$0xff]
    %v757 = vld [vmem:[%s2 + $0x30] sm:$0xff]
    %v758 = vld [vmem:[%s2 + $0x38] sm:$0xff]
    %v759 = vld [vmem:[%s2 + $0x40] sm:$0xff]
    %v760 = vld [vmem:[%s2 + $0x48] sm:$0xff]
    %v761 = vld [vmem:[%s2 + $0x50] sm:$0xff]
    %v762 = vld [vmem:[%s2 + $0x58] sm:$0xff]
    %v763 = vld [vmem:[%s2 + $0x60] sm:$0xff]
    %v764 = vld [vmem:[%s2 + $0x68] sm:$0xff]
    %v765 = vld [vmem:[%s2 + $0x70] sm:$0xff]
    %v766 = vld [vmem:[%s2 + $0x78] sm:$0xff]
    %v767 = vld [vmem:[%s2 + $0x80] sm:$0xff]
    %v768 = vld [vmem:[%s2 + $0x88] sm:$0xff]
    %v770 = vperm.slane %v656, 0
    %v773 = vsel %vm560, %v673, 0
    %v776 = vsel %vm560, %v674, 0
    %778 = vmatpush.msra.mxu0 %v766
    %779 = vmatpush.msra.mxu0 %v765
    %780 = vmatpush.msra.mxu0 %v764
    %781 = vmatpush.msra.mxu0 %v763
    %782 = vmatpush.msra.mxu0 %v762
    %783 = vmatpush.msra.mxu0 %v761
    %784 = vmatpush.msra.mxu0 %v760
    %785 = vmatpush.msra.mxu0 %v759
    %786 = vmatpush.msra.mxu0 %v758
    %787 = vmatpush.msra.mxu0 %v757
    %788 = vmatpush.msra.mxu0 %v756
    %789 = vmatpush.msra.mxu0 %v755
    %790 = vmatpush.msra.mxu0 %v754
    %791 = vmatpush.msra.mxu0 %v753
    %792 = vmatpush.msra.mxu0 %v752
    %793 = vmatpush.msra.mxu0 %v751
    %794 = vmatmul.f32.gmra.mxu0 %v749
    %v795 = vpop.f32.mrf.mxu0
    %v796 = vadd.f32 %v770, %v795
    %797 = vmatmul.f32.gmra.mxu0 %v750
    %v798 = vpop.f32.mrf.mxu0
    %v799 = vadd.f32 %v770, %v798
    %800 = vdwg.mxu0
    %801 = vmatpush.msra.mxu0 0.0
    %802 = vmatpush.msra.mxu0 0.0
    %803 = vmatpush.msra.mxu0 0.0
    %804 = vmatpush.msra.mxu0 0.0
    %805 = vmatpush.msra.mxu0 0.0
    %806 = vmatpush.msra.mxu0 0.0
    %807 = vmatpush.msra.mxu0 0.0
    %808 = vmatpush.msra.mxu0 0.0
    %809 = vmatpush.msra.mxu0 0.0
    %810 = vmatpush.msra.mxu0 0.0
    %811 = vmatpush.msra.mxu0 0.0
    %812 = vmatpush.msra.mxu0 0.0
    %813 = vmatpush.msra.mxu0 0.0
    %814 = vmatpush.msra.mxu0 0.0
    %815 = vmatpush.msra.mxu0 %v768
    %816 = vmatpush.msra.mxu0 %v767
    %817 = vmatmul.f32.gmra.mxu0 %v773
    %v818 = vpop.f32.mrf.mxu0
    %v819 = vadd.f32 %v796, %v818
    %820 = vmatmul.f32.gmra.mxu0 %v776
    %v821 = vpop.f32.mrf.mxu0
    %v822 = vadd.f32 %v799, %v821
    %823 = vdwg.mxu0
    %v824 = vmax.f32 %v819, 0.0
    %v825 = vmax.f32 %v822, 0.0
    %v826 = vld [vmem:[%s4] sm:$0xff]
    %s827 = scalar_lea.vmem %s4, 8
    %v828 = vld [vmem:[%s827] sm:$0xff]
    %v830 = vrot.slane %v824, 2
    %vm831 = vcmask 64512
    %v832 = vsel %vm831, %v830, 0
    %834 = vmatpush.msra.mxu0 0.0
    %835 = vmatpush.msra.mxu0 0.0
    %836 = vmatpush.msra.mxu0 0.0
    %837 = vmatpush.msra.mxu0 0.0
    %838 = vmatpush.msra.mxu0 0.0
    %839 = vmatpush.msra.mxu0 0.0
    %840 = vmatpush.msra.mxu0 0.0
    %841 = vmatpush.msra.mxu0 0.0
    %842 = vmatpush.msra.mxu0 0.0
    %843 = vmatpush.msra.mxu0 0.0
    %844 = vmatpush.msra.mxu0 0.0
    %845 = vmatpush.msra.mxu0 0.0
    %846 = vmatpush.msra.mxu0 0.0
    %847 = vmatpush.msra.mxu0 0.0
    %848 = vmatpush.msra.mxu0 0.0
    %849 = vmatpush.msra.mxu0 %v828
    %850 = vmatmul.f32.gmra.mxu0 %v832
    %v851 = vpop.f32.mrf.mxu0
    %v852 = vadd.f32 0.0, %v851
    %853 = vdwg.mxu0
    %v854 = vsel %vm831, %v824, 0
    %856 = vmatpush.msra.mxu0 0.0
    %857 = vmatpush.msra.mxu0 0.0
    %858 = vmatpush.msra.mxu0 0.0
    %859 = vmatpush.msra.mxu0 0.0
    %860 = vmatpush.msra.mxu0 0.0
    %861 = vmatpush.msra.mxu0 0.0
    %862 = vmatpush.msra.mxu0 0.0
    %863 = vmatpush.msra.mxu0 0.0
    %864 = vmatpush.msra.mxu0 0.0
    %865 = vmatpush.msra.mxu0 0.0
    %866 = vmatpush.msra.mxu0 0.0
    %867 = vmatpush.msra.mxu0 0.0
    %868 = vmatpush.msra.mxu0 0.0
    %869 = vmatpush.msra.mxu0 0.0
    %870 = vmatpush.msra.mxu0 0.0
    %871 = vmatpush.msra.mxu0 %v826
    %872 = vmatmul.f32.gmra.mxu0 %v854
    %v873 = vpop.f32.mrf.mxu0
    %v874 = vadd.f32 %v852, %v873
    %875 = vdwg.mxu0
    %s876 = scalar_lea.vmem %s4, 16
    %v877 = vld [vmem:[%s876] sm:$0xff]
    %v878 = vrot.slane %v824, 4
    %v879 = vsel %vm831, %v878, 0
    %881 = vmatpush.msra.mxu0 0.0
    %882 = vmatpush.msra.mxu0 0.0
    %883 = vmatpush.msra.mxu0 0.0
    %884 = vmatpush.msra.mxu0 0.0
    %885 = vmatpush.msra.mxu0 0.0
    %886 = vmatpush.msra.mxu0 0.0
    %887 = vmatpush.msra.mxu0 0.0
    %888 = vmatpush.msra.mxu0 0.0
    %889 = vmatpush.msra.mxu0 0.0
    %890 = vmatpush.msra.mxu0 0.0
    %891 = vmatpush.msra.mxu0 0.0
    %892 = vmatpush.msra.mxu0 0.0
    %893 = vmatpush.msra.mxu0 0.0
    %894 = vmatpush.msra.mxu0 0.0
    %895 = vmatpush.msra.mxu0 0.0
    %896 = vmatpush.msra.mxu0 %v877
    %897 = vmatmul.f32.gmra.mxu0 %v879
    %v898 = vpop.f32.mrf.mxu0
    %v899 = vadd.f32 0.0, %v898
    %900 = vdwg.mxu0
    %v901 = vadd.f32 %v874, %v899
    %s902 = scalar_lea.vmem %s4, 24
    %v903 = vld [vmem:[%s902] sm:$0xff]
    %v904 = vrot.slane %v824, 6
    %v905 = vsel %vm831, %v904, 0
    %907 = vmatpush.msra.mxu0 0.0
    %908 = vmatpush.msra.mxu0 0.0
    %909 = vmatpush.msra.mxu0 0.0
    %910 = vmatpush.msra.mxu0 0.0
    %911 = vmatpush.msra.mxu0 0.0
    %912 = vmatpush.msra.mxu0 0.0
    %913 = vmatpush.msra.mxu0 0.0
    %914 = vmatpush.msra.mxu0 0.0
    %915 = vmatpush.msra.mxu0 0.0
    %916 = vmatpush.msra.mxu0 0.0
    %917 = vmatpush.msra.mxu0 0.0
    %918 = vmatpush.msra.mxu0 0.0
    %919 = vmatpush.msra.mxu0 0.0
    %920 = vmatpush.msra.mxu0 0.0
    %921 = vmatpush.msra.mxu0 0.0
    %922 = vmatpush.msra.mxu0 %v903
    %923 = vmatmul.f32.gmra.mxu0 %v905
    %v924 = vpop.f32.mrf.mxu0
    %v925 = vadd.f32 0.0, %v924
    %926 = vdwg.mxu0
    %v927 = vadd.f32 %v901, %v925
    %s928 = scalar_lea.vmem %s4, 32
    %v929 = vld [vmem:[%s928] sm:$0xff]
    %v931 = vsel %vm831, %v825, 0
    %933 = vmatpush.msra.mxu0 0.0
    %934 = vmatpush.msra.mxu0 0.0
    %935 = vmatpush.msra.mxu0 0.0
    %936 = vmatpush.msra.mxu0 0.0
    %937 = vmatpush.msra.mxu0 0.0
    %938 = vmatpush.msra.mxu0 0.0
    %939 = vmatpush.msra.mxu0 0.0
    %940 = vmatpush.msra.mxu0 0.0
    %941 = vmatpush.msra.mxu0 0.0
    %942 = vmatpush.msra.mxu0 0.0
    %943 = vmatpush.msra.mxu0 0.0
    %944 = vmatpush.msra.mxu0 0.0
    %945 = vmatpush.msra.mxu0 0.0
    %946 = vmatpush.msra.mxu0 0.0
    %947 = vmatpush.msra.mxu0 0.0
    %948 = vmatpush.msra.mxu0 %v929
    %949 = vmatmul.f32.gmra.mxu0 %v931
    %v950 = vpop.f32.mrf.mxu0
    %v951 = vadd.f32 0.0, %v950
    %952 = vdwg.mxu0
    %v953 = vadd.f32 %v927, %v951
    %s954 = scalar_lea.vmem %s4, 40
    %v955 = vld [vmem:[%s954] sm:$0xff]
    %v956 = vrot.slane %v825, 2
    %v957 = vsel %vm831, %v956, 0
    %959 = vmatpush.msra.mxu0 0.0
    %960 = vmatpush.msra.mxu0 0.0
    %961 = vmatpush.msra.mxu0 0.0
    %962 = vmatpush.msra.mxu0 0.0
    %963 = vmatpush.msra.mxu0 0.0
    %964 = vmatpush.msra.mxu0 0.0
    %965 = vmatpush.msra.mxu0 0.0
    %966 = vmatpush.msra.mxu0 0.0
    %967 = vmatpush.msra.mxu0 0.0
    %968 = vmatpush.msra.mxu0 0.0
    %969 = vmatpush.msra.mxu0 0.0
    %970 = vmatpush.msra.mxu0 0.0
    %971 = vmatpush.msra.mxu0 0.0
    %972 = vmatpush.msra.mxu0 0.0
    %973 = vmatpush.msra.mxu0 0.0
    %974 = vmatpush.msra.mxu0 %v955
    %975 = vmatmul.f32.gmra.mxu0 %v957
    %v976 = vpop.f32.mrf.mxu0
    %v977 = vadd.f32 0.0, %v976
    %978 = vdwg.mxu0
    %v979 = vadd.f32 %v953, %v977
    %s980 = scalar_lea.vmem %s4, 48
    %v981 = vld [vmem:[%s980] sm:$0xff]
    %v982 = vrot.slane %v825, 4
    %v983 = vsel %vm831, %v982, 0
    %985 = vmatpush.msra.mxu0 0.0
    %986 = vmatpush.msra.mxu0 0.0
    %987 = vmatpush.msra.mxu0 0.0
    %988 = vmatpush.msra.mxu0 0.0
    %989 = vmatpush.msra.mxu0 0.0
    %990 = vmatpush.msra.mxu0 0.0
    %991 = vmatpush.msra.mxu0 0.0
    %992 = vmatpush.msra.mxu0 0.0
    %993 = vmatpush.msra.mxu0 0.0
    %994 = vmatpush.msra.mxu0 0.0
    %995 = vmatpush.msra.mxu0 0.0
    %996 = vmatpush.msra.mxu0 0.0
    %997 = vmatpush.msra.mxu0 0.0
    %998 = vmatpush.msra.mxu0 0.0
    %999 = vmatpush.msra.mxu0 0.0
    %1000 = vmatpush.msra.mxu0 %v981
    %1001 = vmatmul.f32.gmra.mxu0 %v983
    %v1002 = vpop.f32.mrf.mxu0
    %v1003 = vadd.f32 0.0, %v1002
    %1004 = vdwg.mxu0
    %v1005 = vadd.f32 %v979, %v1003
    %v1006 = vld [vmem:[%s611] sm:$0xff]
    %v1007 = vld [vmem:[%s611 + $0x8] sm:$0x3f]
    %v1008 = vld [vmem:[%s635] sm:$0xff]
    %v1009 = vld [vmem:[%s635 + $0x8] sm:$0x3f]
    %v1010 = vld [vmem:[%s611 + $0x2] sm:$0xff]
    %v1011 = vld [vmem:[%s611 + $0xa] sm:$0x3f]
    %v1012 = vld [vmem:[%s566] sm:$0xff]
    %v1013 = vld [vmem:[%s566 + $0x8] sm:$0x3f]
    %v1014 = vld [vmem:[%s590] sm:$0xff]
    %v1015 = vld [vmem:[%s590 + $0x8] sm:$0x3f]
    %v1016 = vld [vmem:[%s566 + $0x2] sm:$0xff]
    %v1017 = vld [vmem:[%s566 + $0xa] sm:$0x3f]
    %1018 = vrot.lane.b32.xlu0 %v671, 16
    %v1019 = vpop.permute.xlu0 %1018
    %1020 = vrot.lane.b32.xlu0 %v672, 16
    %v1021 = vpop.permute.xlu0 %1020
    %1024 = vrot.lane.b32.xlu0 %v673, 32
    %v1025 = vpop.permute.xlu0 %1024
    %1026 = vrot.lane.b32.xlu0 %v674, 32
    %v1027 = vpop.permute.xlu0 %1026
    %1032 = vrot.lane.b32.xlu0 %v1006, 48
    %v1033 = vpop.permute.xlu0 %1032
    %1034 = vrot.lane.b32.xlu0 %v1007, 48
    %v1035 = vpop.permute.xlu0 %1034
    %1040 = vrot.lane.b32.xlu0 %v1008, 64
    %v1041 = vpop.permute.xlu0 %1040
    %1042 = vrot.lane.b32.xlu0 %v1009, 64
    %v1043 = vpop.permute.xlu0 %1042
    %1048 = vrot.lane.b32.xlu0 %v1010, 80
    %v1049 = vpop.permute.xlu0 %1048
    %1050 = vrot.lane.b32.xlu0 %v1011, 80
    %v1051 = vpop.permute.xlu0 %1050
    %1056 = vrot.lane.b32.xlu0 %v1012, 96
    %v1057 = vpop.permute.xlu0 %1056
    %1058 = vrot.lane.b32.xlu0 %v1013, 96
    %v1059 = vpop.permute.xlu0 %1058
    %1064 = vrot.lane.b32.xlu0 %v1014, 112
    %v1065 = vpop.permute.xlu0 %1064
    %1066 = vrot.lane.b32.xlu0 %v1015, 112
    %v1067 = vpop.permute.xlu0 %1066
    %v1070 = vsel %vm560, %v669, %v1019
    %v1071 = vsel %vm560, %v670, %v1021
    %v1072 = vsel %vm733, %v1070, %v1025
    %v1073 = vsel %vm733, %v1071, %v1027
    %v1074 = vsel %vm736, %v1072, %v1033
    %v1075 = vsel %vm736, %v1073, %v1035
    %v1076 = vsel %vm739, %v1074, %v1041
    %v1077 = vsel %vm739, %v1075, %v1043
    %v1078 = vsel %vm742, %v1076, %v1049
    %v1079 = vsel %vm742, %v1077, %v1051
    %v1080 = vsel %vm745, %v1078, %v1057
    %v1081 = vsel %vm745, %v1079, %v1059
    %v1082 = vsel %vm748, %v1080, %v1065
    %v1083 = vsel %vm748, %v1081, %v1067
    %v1085 = vsel %vm560, %v1016, 0
    %v1088 = vsel %vm560, %v1017, 0
    %1090 = vmatpush.msra.mxu0 %v766
    %1091 = vmatpush.msra.mxu0 %v765
    %1092 = vmatpush.msra.mxu0 %v764
    %1093 = vmatpush.msra.mxu0 %v763
    %1094 = vmatpush.msra.mxu0 %v762
    %1095 = vmatpush.msra.mxu0 %v761
    %1096 = vmatpush.msra.mxu0 %v760
    %1097 = vmatpush.msra.mxu0 %v759
    %1098 = vmatpush.msra.mxu0 %v758
    %1099 = vmatpush.msra.mxu0 %v757
    %1100 = vmatpush.msra.mxu0 %v756
    %1101 = vmatpush.msra.mxu0 %v755
    %1102 = vmatpush.msra.mxu0 %v754
    %1103 = vmatpush.msra.mxu0 %v753
    %1104 = vmatpush.msra.mxu0 %v752
    %1105 = vmatpush.msra.mxu0 %v751
    %1106 = vmatmul.f32.gmra.mxu0 %v1082
    %v1107 = vpop.f32.mrf.mxu0
    %v1108 = vadd.f32 %v770, %v1107
    %1109 = vmatmul.f32.gmra.mxu0 %v1083
    %v1110 = vpop.f32.mrf.mxu0
    %v1111 = vadd.f32 %v770, %v1110
    %1112 = vdwg.mxu0
    %1113 = vmatpush.msra.mxu0 0.0
    %1114 = vmatpush.msra.mxu0 0.0
    %1115 = vmatpush.msra.mxu0 0.0
    %1116 = vmatpush.msra.mxu0 0.0
    %1117 = vmatpush.msra.mxu0 0.0
    %1118 = vmatpush.msra.mxu0 0.0
    %1119 = vmatpush.msra.mxu0 0.0
    %1120 = vmatpush.msra.mxu0 0.0
    %1121 = vmatpush.msra.mxu0 0.0
    %1122 = vmatpush.msra.mxu0 0.0
    %1123 = vmatpush.msra.mxu0 0.0
    %1124 = vmatpush.msra.mxu0 0.0
    %1125 = vmatpush.msra.mxu0 0.0
    %1126 = vmatpush.msra.mxu0 0.0
    %1127 = vmatpush.msra.mxu0 %v768
    %1128 = vmatpush.msra.mxu0 %v767
    %1129 = vmatmul.f32.gmra.mxu0 %v1085
    %v1130 = vpop.f32.mrf.mxu0
    %v1131 = vadd.f32 %v1108, %v1130
    %1132 = vmatmul.f32.gmra.mxu0 %v1088
    %v1133 = vpop.f32.mrf.mxu0
    %v1134 = vadd.f32 %v1111, %v1133
    %1135 = vdwg.mxu0
    %v1136 = vmax.f32 %v1131, 0.0
    %v1137 = vmax.f32 %v1134, 0.0
    %s1138 = scalar_lea.vmem %s4, 56
    %v1139 = vld [vmem:[%s1138] sm:$0xff]
    %v1141 = vsel %vm831, %v1136, 0
    %1143 = vmatpush.msra.mxu0 0.0
    %1144 = vmatpush.msra.mxu0 0.0
    %1145 = vmatpush.msra.mxu0 0.0
    %1146 = vmatpush.msra.mxu0 0.0
    %1147 = vmatpush.msra.mxu0 0.0
    %1148 = vmatpush.msra.mxu0 0.0
    %1149 = vmatpush.msra.mxu0 0.0
    %1150 = vmatpush.msra.mxu0 0.0
    %1151 = vmatpush.msra.mxu0 0.0
    %1152 = vmatpush.msra.mxu0 0.0
    %1153 = vmatpush.msra.mxu0 0.0
    %1154 = vmatpush.msra.mxu0 0.0
    %1155 = vmatpush.msra.mxu0 0.0
    %1156 = vmatpush.msra.mxu0 0.0
    %1157 = vmatpush.msra.mxu0 0.0
    %1158 = vmatpush.msra.mxu0 %v1139
    %1159 = vmatmul.f32.gmra.mxu0 %v1141
    %v1160 = vpop.f32.mrf.mxu0
    %v1161 = vadd.f32 0.0, %v1160
    %1162 = vdwg.mxu0
    %v1163 = vadd.f32 %v1005, %v1161
    %s1164 = scalar_lea.vmem %s4, 64
    %v1165 = vld [vmem:[%s1164] sm:$0xff]
    %v1166 = vrot.slane %v1136, 2
    %v1167 = vsel %vm831, %v1166, 0
    %1169 = vmatpush.msra.mxu0 0.0
    %1170 = vmatpush.msra.mxu0 0.0
    %1171 = vmatpush.msra.mxu0 0.0
    %1172 = vmatpush.msra.mxu0 0.0
    %1173 = vmatpush.msra.mxu0 0.0
    %1174 = vmatpush.msra.mxu0 0.0
    %1175 = vmatpush.msra.mxu0 0.0
    %1176 = vmatpush.msra.mxu0 0.0
    %1177 = vmatpush.msra.mxu0 0.0
    %1178 = vmatpush.msra.mxu0 0.0
    %1179 = vmatpush.msra.mxu0 0.0
    %1180 = vmatpush.msra.mxu0 0.0
    %1181 = vmatpush.msra.mxu0 0.0
    %1182 = vmatpush.msra.mxu0 0.0
    %1183 = vmatpush.msra.mxu0 0.0
    %1184 = vmatpush.msra.mxu0 %v1165
    %1185 = vmatmul.f32.gmra.mxu0 %v1167
    %v1186 = vpop.f32.mrf.mxu0
    %v1187 = vadd.f32 0.0, %v1186
    %1188 = vdwg.mxu0
    %v1189 = vadd.f32 %v1163, %v1187
    %s1190 = scalar_lea.vmem %s4, 72
    %v1191 = vld [vmem:[%s1190] sm:$0xff]
    %v1192 = vrot.slane %v1136, 4
    %v1193 = vsel %vm831, %v1192, 0
    %1195 = vmatpush.msra.mxu0 0.0
    %1196 = vmatpush.msra.mxu0 0.0
    %1197 = vmatpush.msra.mxu0 0.0
    %1198 = vmatpush.msra.mxu0 0.0
    %1199 = vmatpush.msra.mxu0 0.0
    %1200 = vmatpush.msra.mxu0 0.0
    %1201 = vmatpush.msra.mxu0 0.0
    %1202 = vmatpush.msra.mxu0 0.0
    %1203 = vmatpush.msra.mxu0 0.0
    %1204 = vmatpush.msra.mxu0 0.0
    %1205 = vmatpush.msra.mxu0 0.0
    %1206 = vmatpush.msra.mxu0 0.0
    %1207 = vmatpush.msra.mxu0 0.0
    %1208 = vmatpush.msra.mxu0 0.0
    %1209 = vmatpush.msra.mxu0 0.0
    %1210 = vmatpush.msra.mxu0 %v1191
    %1211 = vmatmul.f32.gmra.mxu0 %v1193
    %v1212 = vpop.f32.mrf.mxu0
    %v1213 = vadd.f32 0.0, %v1212
    %1214 = vdwg.mxu0
    %v1215 = vadd.f32 %v1189, %v1213
    %s1216 = scalar_lea.vmem %s4, 80
    %v1217 = vld [vmem:[%s1216] sm:$0xff]
    %v1218 = vrot.slane %v1136, 6
    %v1219 = vsel %vm831, %v1218, 0
    %1221 = vmatpush.msra.mxu0 0.0
    %1222 = vmatpush.msra.mxu0 0.0
    %1223 = vmatpush.msra.mxu0 0.0
    %1224 = vmatpush.msra.mxu0 0.0
    %1225 = vmatpush.msra.mxu0 0.0
    %1226 = vmatpush.msra.mxu0 0.0
    %1227 = vmatpush.msra.mxu0 0.0
    %1228 = vmatpush.msra.mxu0 0.0
    %1229 = vmatpush.msra.mxu0 0.0
    %1230 = vmatpush.msra.mxu0 0.0
    %1231 = vmatpush.msra.mxu0 0.0
    %1232 = vmatpush.msra.mxu0 0.0
    %1233 = vmatpush.msra.mxu0 0.0
    %1234 = vmatpush.msra.mxu0 0.0
    %1235 = vmatpush.msra.mxu0 0.0
    %1236 = vmatpush.msra.mxu0 %v1217
    %1237 = vmatmul.f32.gmra.mxu0 %v1219
    %v1238 = vpop.f32.mrf.mxu0
    %v1239 = vadd.f32 0.0, %v1238
    %1240 = vdwg.mxu0
    %v1241 = vadd.f32 %v1215, %v1239
    %s1242 = scalar_lea.vmem %s4, 88
    %v1243 = vld [vmem:[%s1242] sm:$0xff]
    %v1245 = vsel %vm831, %v1137, 0
    %1247 = vmatpush.msra.mxu0 0.0
    %1248 = vmatpush.msra.mxu0 0.0
    %1249 = vmatpush.msra.mxu0 0.0
    %1250 = vmatpush.msra.mxu0 0.0
    %1251 = vmatpush.msra.mxu0 0.0
    %1252 = vmatpush.msra.mxu0 0.0
    %1253 = vmatpush.msra.mxu0 0.0
    %1254 = vmatpush.msra.mxu0 0.0
    %1255 = vmatpush.msra.mxu0 0.0
    %1256 = vmatpush.msra.mxu0 0.0
    %1257 = vmatpush.msra.mxu0 0.0
    %1258 = vmatpush.msra.mxu0 0.0
    %1259 = vmatpush.msra.mxu0 0.0
    %1260 = vmatpush.msra.mxu0 0.0
    %1261 = vmatpush.msra.mxu0 0.0
    %1262 = vmatpush.msra.mxu0 %v1243
    %1263 = vmatmul.f32.gmra.mxu0 %v1245
    %v1264 = vpop.f32.mrf.mxu0
    %v1265 = vadd.f32 0.0, %v1264
    %1266 = vdwg.mxu0
    %v1267 = vadd.f32 %v1241, %v1265
    %s1268 = scalar_lea.vmem %s4, 96
    %v1269 = vld [vmem:[%s1268] sm:$0xff]
    %v1270 = vrot.slane %v1137, 2
    %v1271 = vsel %vm831, %v1270, 0
    %1273 = vmatpush.msra.mxu0 0.0
    %1274 = vmatpush.msra.mxu0 0.0
    %1275 = vmatpush.msra.mxu0 0.0
    %1276 = vmatpush.msra.mxu0 0.0
    %1277 = vmatpush.msra.mxu0 0.0
    %1278 = vmatpush.msra.mxu0 0.0
    %1279 = vmatpush.msra.mxu0 0.0
    %1280 = vmatpush.msra.mxu0 0.0
    %1281 = vmatpush.msra.mxu0 0.0
    %1282 = vmatpush.msra.mxu0 0.0
    %1283 = vmatpush.msra.mxu0 0.0
    %1284 = vmatpush.msra.mxu0 0.0
    %1285 = vmatpush.msra.mxu0 0.0
    %1286 = vmatpush.msra.mxu0 0.0
    %1287 = vmatpush.msra.mxu0 0.0
    %1288 = vmatpush.msra.mxu0 %v1269
    %1289 = vmatmul.f32.gmra.mxu0 %v1271
    %v1290 = vpop.f32.mrf.mxu0
    %v1291 = vadd.f32 0.0, %v1290
    %1292 = vdwg.mxu0
    %v1293 = vadd.f32 %v1267, %v1291
    %s1294 = scalar_lea.vmem %s4, 104
    %v1295 = vld [vmem:[%s1294] sm:$0xff]
    %v1296 = vrot.slane %v1137, 4
    %v1297 = vsel %vm831, %v1296, 0
    %1299 = vmatpush.msra.mxu0 0.0
    %1300 = vmatpush.msra.mxu0 0.0
    %1301 = vmatpush.msra.mxu0 0.0
    %1302 = vmatpush.msra.mxu0 0.0
    %1303 = vmatpush.msra.mxu0 0.0
    %1304 = vmatpush.msra.mxu0 0.0
    %1305 = vmatpush.msra.mxu0 0.0
    %1306 = vmatpush.msra.mxu0 0.0
    %1307 = vmatpush.msra.mxu0 0.0
    %1308 = vmatpush.msra.mxu0 0.0
    %1309 = vmatpush.msra.mxu0 0.0
    %1310 = vmatpush.msra.mxu0 0.0
    %1311 = vmatpush.msra.mxu0 0.0
    %1312 = vmatpush.msra.mxu0 0.0
    %1313 = vmatpush.msra.mxu0 0.0
    %1314 = vmatpush.msra.mxu0 %v1295
    %1315 = vmatmul.f32.gmra.mxu0 %v1297
    %v1316 = vpop.f32.mrf.mxu0
    %v1317 = vadd.f32 0.0, %v1316
    %1318 = vdwg.mxu0
    %v1319 = vadd.f32 %v1293, %v1317
    %v1320 = vld [vmem:[%s614] sm:$0xff]
    %v1321 = vld [vmem:[%s614 + $0x8] sm:$0x3f]
    %v1322 = vld [vmem:[%s638] sm:$0xff]
    %v1323 = vld [vmem:[%s638 + $0x8] sm:$0x3f]
    %v1324 = vld [vmem:[%s614 + $0x2] sm:$0xff]
    %v1325 = vld [vmem:[%s614 + $0xa] sm:$0x3f]
    %v1326 = vld [vmem:[%s569] sm:$0xff]
    %v1327 = vld [vmem:[%s569 + $0x8] sm:$0x3f]
    %v1328 = vld [vmem:[%s593] sm:$0xff]
    %v1329 = vld [vmem:[%s593 + $0x8] sm:$0x3f]
    %v1330 = vld [vmem:[%s569 + $0x2] sm:$0xff]
    %v1331 = vld [vmem:[%s569 + $0xa] sm:$0x3f]
    %1332 = vrot.lane.b32.xlu0 %v1014, 16
    %v1333 = vpop.permute.xlu0 %1332
    %1334 = vrot.lane.b32.xlu0 %v1015, 16
    %v1335 = vpop.permute.xlu0 %1334
    %1338 = vrot.lane.b32.xlu0 %v1016, 32
    %v1339 = vpop.permute.xlu0 %1338
    %1340 = vrot.lane.b32.xlu0 %v1017, 32
    %v1341 = vpop.permute.xlu0 %1340
    %1346 = vrot.lane.b32.xlu0 %v1320, 48
    %v1347 = vpop.permute.xlu0 %1346
    %1348 = vrot.lane.b32.xlu0 %v1321, 48
    %v1349 = vpop.permute.xlu0 %1348
    %1354 = vrot.lane.b32.xlu0 %v1322, 64
    %v1355 = vpop.permute.xlu0 %1354
    %1356 = vrot.lane.b32.xlu0 %v1323, 64
    %v1357 = vpop.permute.xlu0 %1356
    %1362 = vrot.lane.b32.xlu0 %v1324, 80
    %v1363 = vpop.permute.xlu0 %1362
    %1364 = vrot.lane.b32.xlu0 %v1325, 80
    %v1365 = vpop.permute.xlu0 %1364
    %1370 = vrot.lane.b32.xlu0 %v1326, 96
    %v1371 = vpop.permute.xlu0 %1370
    %1372 = vrot.lane.b32.xlu0 %v1327, 96
    %v1373 = vpop.permute.xlu0 %1372
    %1378 = vrot.lane.b32.xlu0 %v1328, 112
    %v1379 = vpop.permute.xlu0 %1378
    %1380 = vrot.lane.b32.xlu0 %v1329, 112
    %v1381 = vpop.permute.xlu0 %1380
    %v1384 = vsel %vm560, %v1012, %v1333
    %v1385 = vsel %vm560, %v1013, %v1335
    %v1386 = vsel %vm733, %v1384, %v1339
    %v1387 = vsel %vm733, %v1385, %v1341
    %v1388 = vsel %vm736, %v1386, %v1347
    %v1389 = vsel %vm736, %v1387, %v1349
    %v1390 = vsel %vm739, %v1388, %v1355
    %v1391 = vsel %vm739, %v1389, %v1357
    %v1392 = vsel %vm742, %v1390, %v1363
    %v1393 = vsel %vm742, %v1391, %v1365
    %v1394 = vsel %vm745, %v1392, %v1371
    %v1395 = vsel %vm745, %v1393, %v1373
    %v1396 = vsel %vm748, %v1394, %v1379
    %v1397 = vsel %vm748, %v1395, %v1381
    %v1399 = vsel %vm560, %v1330, 0
    %v1402 = vsel %vm560, %v1331, 0
    %1404 = vmatpush.msra.mxu0 %v766
    %1405 = vmatpush.msra.mxu0 %v765
    %1406 = vmatpush.msra.mxu0 %v764
    %1407 = vmatpush.msra.mxu0 %v763
    %1408 = vmatpush.msra.mxu0 %v762
    %1409 = vmatpush.msra.mxu0 %v761
    %1410 = vmatpush.msra.mxu0 %v760
    %1411 = vmatpush.msra.mxu0 %v759
    %1412 = vmatpush.msra.mxu0 %v758
    %1413 = vmatpush.msra.mxu0 %v757
    %1414 = vmatpush.msra.mxu0 %v756
    %1415 = vmatpush.msra.mxu0 %v755
    %1416 = vmatpush.msra.mxu0 %v754
    %1417 = vmatpush.msra.mxu0 %v753
    %1418 = vmatpush.msra.mxu0 %v752
    %1419 = vmatpush.msra.mxu0 %v751
    %1420 = vmatmul.f32.gmra.mxu0 %v1396
    %v1421 = vpop.f32.mrf.mxu0
    %v1422 = vadd.f32 %v770, %v1421
    %1423 = vmatmul.f32.gmra.mxu0 %v1397
    %v1424 = vpop.f32.mrf.mxu0
    %v1425 = vadd.f32 %v770, %v1424
    %1426 = vdwg.mxu0
    %1427 = vmatpush.msra.mxu0 0.0
    %1428 = vmatpush.msra.mxu0 0.0
    %1429 = vmatpush.msra.mxu0 0.0
    %1430 = vmatpush.msra.mxu0 0.0
    %1431 = vmatpush.msra.mxu0 0.0
    %1432 = vmatpush.msra.mxu0 0.0
    %1433 = vmatpush.msra.mxu0 0.0
    %1434 = vmatpush.msra.mxu0 0.0
    %1435 = vmatpush.msra.mxu0 0.0
    %1436 = vmatpush.msra.mxu0 0.0
    %1437 = vmatpush.msra.mxu0 0.0
    %1438 = vmatpush.msra.mxu0 0.0
    %1439 = vmatpush.msra.mxu0 0.0
    %1440 = vmatpush.msra.mxu0 0.0
    %1441 = vmatpush.msra.mxu0 %v768
    %1442 = vmatpush.msra.mxu0 %v767
    %1443 = vmatmul.f32.gmra.mxu0 %v1399
    %v1444 = vpop.f32.mrf.mxu0
    %v1445 = vadd.f32 %v1422, %v1444
    %1446 = vmatmul.f32.gmra.mxu0 %v1402
    %v1447 = vpop.f32.mrf.mxu0
    %v1448 = vadd.f32 %v1425, %v1447
    %1449 = vdwg.mxu0
    %v1450 = vmax.f32 %v1445, 0.0
    %v1451 = vmax.f32 %v1448, 0.0
    %s1452 = scalar_lea.vmem %s4, 112
    %v1453 = vld [vmem:[%s1452] sm:$0xff]
    %v1455 = vsel %vm831, %v1450, 0
    %1457 = vmatpush.msra.mxu0 0.0
    %1458 = vmatpush.msra.mxu0 0.0
    %1459 = vmatpush.msra.mxu0 0.0
    %1460 = vmatpush.msra.mxu0 0.0
    %1461 = vmatpush.msra.mxu0 0.0
    %1462 = vmatpush.msra.mxu0 0.0
    %1463 = vmatpush.msra.mxu0 0.0
    %1464 = vmatpush.msra.mxu0 0.0
    %1465 = vmatpush.msra.mxu0 0.0
    %1466 = vmatpush.msra.mxu0 0.0
    %1467 = vmatpush.msra.mxu0 0.0
    %1468 = vmatpush.msra.mxu0 0.0
    %1469 = vmatpush.msra.mxu0 0.0
    %1470 = vmatpush.msra.mxu0 0.0
    %1471 = vmatpush.msra.mxu0 0.0
    %1472 = vmatpush.msra.mxu0 %v1453
    %1473 = vmatmul.f32.gmra.mxu0 %v1455
    %v1474 = vpop.f32.mrf.mxu0
    %v1475 = vadd.f32 0.0, %v1474
    %1476 = vdwg.mxu0
    %v1477 = vadd.f32 %v1319, %v1475
    %s1478 = scalar_lea.vmem %s4, 120
    %v1479 = vld [vmem:[%s1478] sm:$0xff]
    %v1480 = vrot.slane %v1450, 2
    %v1481 = vsel %vm831, %v1480, 0
    %1483 = vmatpush.msra.mxu0 0.0
    %1484 = vmatpush.msra.mxu0 0.0
    %1485 = vmatpush.msra.mxu0 0.0
    %1486 = vmatpush.msra.mxu0 0.0
    %1487 = vmatpush.msra.mxu0 0.0
    %1488 = vmatpush.msra.mxu0 0.0
    %1489 = vmatpush.msra.mxu0 0.0
    %1490 = vmatpush.msra.mxu0 0.0
    %1491 = vmatpush.msra.mxu0 0.0
    %1492 = vmatpush.msra.mxu0 0.0
    %1493 = vmatpush.msra.mxu0 0.0
    %1494 = vmatpush.msra.mxu0 0.0
    %1495 = vmatpush.msra.mxu0 0.0
    %1496 = vmatpush.msra.mxu0 0.0
    %1497 = vmatpush.msra.mxu0 0.0
    %1498 = vmatpush.msra.mxu0 %v1479
    %1499 = vmatmul.f32.gmra.mxu0 %v1481
    %v1500 = vpop.f32.mrf.mxu0
    %v1501 = vadd.f32 0.0, %v1500
    %1502 = vdwg.mxu0
    %v1503 = vadd.f32 %v1477, %v1501
    %s1504 = scalar_lea.vmem %s4, 128
    %v1505 = vld [vmem:[%s1504] sm:$0xff]
    %v1506 = vrot.slane %v1450, 4
    %v1507 = vsel %vm831, %v1506, 0
    %1509 = vmatpush.msra.mxu0 0.0
    %1510 = vmatpush.msra.mxu0 0.0
    %1511 = vmatpush.msra.mxu0 0.0
    %1512 = vmatpush.msra.mxu0 0.0
    %1513 = vmatpush.msra.mxu0 0.0
    %1514 = vmatpush.msra.mxu0 0.0
    %1515 = vmatpush.msra.mxu0 0.0
    %1516 = vmatpush.msra.mxu0 0.0
    %1517 = vmatpush.msra.mxu0 0.0
    %1518 = vmatpush.msra.mxu0 0.0
    %1519 = vmatpush.msra.mxu0 0.0
    %1520 = vmatpush.msra.mxu0 0.0
    %1521 = vmatpush.msra.mxu0 0.0
    %1522 = vmatpush.msra.mxu0 0.0
    %1523 = vmatpush.msra.mxu0 0.0
    %1524 = vmatpush.msra.mxu0 %v1505
    %1525 = vmatmul.f32.gmra.mxu0 %v1507
    %v1526 = vpop.f32.mrf.mxu0
    %v1527 = vadd.f32 0.0, %v1526
    %1528 = vdwg.mxu0
    %v1529 = vadd.f32 %v1503, %v1527
    %s1530 = scalar_lea.vmem %s4, 136
    %v1531 = vld [vmem:[%s1530] sm:$0xff]
    %v1532 = vrot.slane %v1450, 6
    %v1533 = vsel %vm831, %v1532, 0
    %1535 = vmatpush.msra.mxu0 0.0
    %1536 = vmatpush.msra.mxu0 0.0
    %1537 = vmatpush.msra.mxu0 0.0
    %1538 = vmatpush.msra.mxu0 0.0
    %1539 = vmatpush.msra.mxu0 0.0
    %1540 = vmatpush.msra.mxu0 0.0
    %1541 = vmatpush.msra.mxu0 0.0
    %1542 = vmatpush.msra.mxu0 0.0
    %1543 = vmatpush.msra.mxu0 0.0
    %1544 = vmatpush.msra.mxu0 0.0
    %1545 = vmatpush.msra.mxu0 0.0
    %1546 = vmatpush.msra.mxu0 0.0
    %1547 = vmatpush.msra.mxu0 0.0
    %1548 = vmatpush.msra.mxu0 0.0
    %1549 = vmatpush.msra.mxu0 0.0
    %1550 = vmatpush.msra.mxu0 %v1531
    %1551 = vmatmul.f32.gmra.mxu0 %v1533
    %v1552 = vpop.f32.mrf.mxu0
    %v1553 = vadd.f32 0.0, %v1552
    %1554 = vdwg.mxu0
    %v1555 = vadd.f32 %v1529, %v1553
    %s1556 = scalar_lea.vmem %s4, 144
    %v1557 = vld [vmem:[%s1556] sm:$0xff]
    %v1559 = vsel %vm831, %v1451, 0
    %1561 = vmatpush.msra.mxu0 0.0
    %1562 = vmatpush.msra.mxu0 0.0
    %1563 = vmatpush.msra.mxu0 0.0
    %1564 = vmatpush.msra.mxu0 0.0
    %1565 = vmatpush.msra.mxu0 0.0
    %1566 = vmatpush.msra.mxu0 0.0
    %1567 = vmatpush.msra.mxu0 0.0
    %1568 = vmatpush.msra.mxu0 0.0
    %1569 = vmatpush.msra.mxu0 0.0
    %1570 = vmatpush.msra.mxu0 0.0
    %1571 = vmatpush.msra.mxu0 0.0
    %1572 = vmatpush.msra.mxu0 0.0
    %1573 = vmatpush.msra.mxu0 0.0
    %1574 = vmatpush.msra.mxu0 0.0
    %1575 = vmatpush.msra.mxu0 0.0
    %1576 = vmatpush.msra.mxu0 %v1557
    %1577 = vmatmul.f32.gmra.mxu0 %v1559
    %v1578 = vpop.f32.mrf.mxu0
    %v1579 = vadd.f32 0.0, %v1578
    %1580 = vdwg.mxu0
    %v1581 = vadd.f32 %v1555, %v1579
    %s1582 = scalar_lea.vmem %s4, 152
    %v1583 = vld [vmem:[%s1582] sm:$0xff]
    %v1584 = vrot.slane %v1451, 2
    %v1585 = vsel %vm831, %v1584, 0
    %1587 = vmatpush.msra.mxu0 0.0
    %1588 = vmatpush.msra.mxu0 0.0
    %1589 = vmatpush.msra.mxu0 0.0
    %1590 = vmatpush.msra.mxu0 0.0
    %1591 = vmatpush.msra.mxu0 0.0
    %1592 = vmatpush.msra.mxu0 0.0
    %1593 = vmatpush.msra.mxu0 0.0
    %1594 = vmatpush.msra.mxu0 0.0
    %1595 = vmatpush.msra.mxu0 0.0
    %1596 = vmatpush.msra.mxu0 0.0
    %1597 = vmatpush.msra.mxu0 0.0
    %1598 = vmatpush.msra.mxu0 0.0
    %1599 = vmatpush.msra.mxu0 0.0
    %1600 = vmatpush.msra.mxu0 0.0
    %1601 = vmatpush.msra.mxu0 0.0
    %1602 = vmatpush.msra.mxu0 %v1583
    %1603 = vmatmul.f32.gmra.mxu0 %v1585
    %v1604 = vpop.f32.mrf.mxu0
    %v1605 = vadd.f32 0.0, %v1604
    %1606 = vdwg.mxu0
    %v1607 = vadd.f32 %v1581, %v1605
    %s1608 = scalar_lea.vmem %s4, 160
    %v1609 = vld [vmem:[%s1608] sm:$0xff]
    %v1610 = vrot.slane %v1451, 4
    %v1611 = vsel %vm831, %v1610, 0
    %1613 = vmatpush.msra.mxu0 0.0
    %1614 = vmatpush.msra.mxu0 0.0
    %1615 = vmatpush.msra.mxu0 0.0
    %1616 = vmatpush.msra.mxu0 0.0
    %1617 = vmatpush.msra.mxu0 0.0
    %1618 = vmatpush.msra.mxu0 0.0
    %1619 = vmatpush.msra.mxu0 0.0
    %1620 = vmatpush.msra.mxu0 0.0
    %1621 = vmatpush.msra.mxu0 0.0
    %1622 = vmatpush.msra.mxu0 0.0
    %1623 = vmatpush.msra.mxu0 0.0
    %1624 = vmatpush.msra.mxu0 0.0
    %1625 = vmatpush.msra.mxu0 0.0
    %1626 = vmatpush.msra.mxu0 0.0
    %1627 = vmatpush.msra.mxu0 0.0
    %1628 = vmatpush.msra.mxu0 %v1609
    %1629 = vmatmul.f32.gmra.mxu0 %v1611
    %v1630 = vpop.f32.mrf.mxu0
    %v1631 = vadd.f32 0.0, %v1630
    %1632 = vdwg.mxu0
    %v1633 = vadd.f32 %v1607, %v1631
    %v1634 = vld [vmem:[%s617] sm:$0xff]
    %v1635 = vld [vmem:[%s617 + $0x8] sm:$0x3f]
    %v1636 = vld [vmem:[%s641] sm:$0xff]
    %v1637 = vld [vmem:[%s641 + $0x8] sm:$0x3f]
    %v1638 = vld [vmem:[%s617 + $0x2] sm:$0xff]
    %v1639 = vld [vmem:[%s617 + $0xa] sm:$0x3f]
    %v1640 = vld [vmem:[%s572] sm:$0xff]
    %v1641 = vld [vmem:[%s572 + $0x8] sm:$0x3f]
    %v1642 = vld [vmem:[%s596] sm:$0xff]
    %v1643 = vld [vmem:[%s596 + $0x8] sm:$0x3f]
    %v1644 = vld [vmem:[%s572 + $0x2] sm:$0xff]
    %v1645 = vld [vmem:[%s572 + $0xa] sm:$0x3f]
    %1646 = vrot.lane.b32.xlu0 %v1328, 16
    %v1647 = vpop.permute.xlu0 %1646
    %1648 = vrot.lane.b32.xlu0 %v1329, 16
    %v1649 = vpop.permute.xlu0 %1648
    %1652 = vrot.lane.b32.xlu0 %v1330, 32
    %v1653 = vpop.permute.xlu0 %1652
    %1654 = vrot.lane.b32.xlu0 %v1331, 32
    %v1655 = vpop.permute.xlu0 %1654
    %1660 = vrot.lane.b32.xlu0 %v1634, 48
    %v1661 = vpop.permute.xlu0 %1660
    %1662 = vrot.lane.b32.xlu0 %v1635, 48
    %v1663 = vpop.permute.xlu0 %1662
    %1668 = vrot.lane.b32.xlu0 %v1636, 64
    %v1669 = vpop.permute.xlu0 %1668
    %1670 = vrot.lane.b32.xlu0 %v1637, 64
    %v1671 = vpop.permute.xlu0 %1670
    %1676 = vrot.lane.b32.xlu0 %v1638, 80
    %v1677 = vpop.permute.xlu0 %1676
    %1678 = vrot.lane.b32.xlu0 %v1639, 80
    %v1679 = vpop.permute.xlu0 %1678
    %1684 = vrot.lane.b32.xlu0 %v1640, 96
    %v1685 = vpop.permute.xlu0 %1684
    %1686 = vrot.lane.b32.xlu0 %v1641, 96
    %v1687 = vpop.permute.xlu0 %1686
    %1692 = vrot.lane.b32.xlu0 %v1642, 112
    %v1693 = vpop.permute.xlu0 %1692
    %1694 = vrot.lane.b32.xlu0 %v1643, 112
    %v1695 = vpop.permute.xlu0 %1694
    %v1698 = vsel %vm560, %v1326, %v1647
    %v1699 = vsel %vm560, %v1327, %v1649
    %v1700 = vsel %vm733, %v1698, %v1653
    %v1701 = vsel %vm733, %v1699, %v1655
    %v1702 = vsel %vm736, %v1700, %v1661
    %v1703 = vsel %vm736, %v1701, %v1663
    %v1704 = vsel %vm739, %v1702, %v1669
    %v1705 = vsel %vm739, %v1703, %v1671
    %v1706 = vsel %vm742, %v1704, %v1677
    %v1707 = vsel %vm742, %v1705, %v1679
    %v1708 = vsel %vm745, %v1706, %v1685
    %v1709 = vsel %vm745, %v1707, %v1687
    %v1710 = vsel %vm748, %v1708, %v1693
    %v1711 = vsel %vm748, %v1709, %v1695
    %v1713 = vsel %vm560, %v1644, 0
    %v1716 = vsel %vm560, %v1645, 0
    %1718 = vmatpush.msra.mxu0 %v766
    %1719 = vmatpush.msra.mxu0 %v765
    %1720 = vmatpush.msra.mxu0 %v764
    %1721 = vmatpush.msra.mxu0 %v763
    %1722 = vmatpush.msra.mxu0 %v762
    %1723 = vmatpush.msra.mxu0 %v761
    %1724 = vmatpush.msra.mxu0 %v760
    %1725 = vmatpush.msra.mxu0 %v759
    %1726 = vmatpush.msra.mxu0 %v758
    %1727 = vmatpush.msra.mxu0 %v757
    %1728 = vmatpush.msra.mxu0 %v756
    %1729 = vmatpush.msra.mxu0 %v755
    %1730 = vmatpush.msra.mxu0 %v754
    %1731 = vmatpush.msra.mxu0 %v753
    %1732 = vmatpush.msra.mxu0 %v752
    %1733 = vmatpush.msra.mxu0 %v751
    %1734 = vmatmul.f32.gmra.mxu0 %v1710
    %v1735 = vpop.f32.mrf.mxu0
    %v1736 = vadd.f32 %v770, %v1735
    %1737 = vmatmul.f32.gmra.mxu0 %v1711
    %v1738 = vpop.f32.mrf.mxu0
    %v1739 = vadd.f32 %v770, %v1738
    %1740 = vdwg.mxu0
    %1741 = vmatpush.msra.mxu0 0.0
    %1742 = vmatpush.msra.mxu0 0.0
    %1743 = vmatpush.msra.mxu0 0.0
    %1744 = vmatpush.msra.mxu0 0.0
    %1745 = vmatpush.msra.mxu0 0.0
    %1746 = vmatpush.msra.mxu0 0.0
    %1747 = vmatpush.msra.mxu0 0.0
    %1748 = vmatpush.msra.mxu0 0.0
    %1749 = vmatpush.msra.mxu0 0.0
    %1750 = vmatpush.msra.mxu0 0.0
    %1751 = vmatpush.msra.mxu0 0.0
    %1752 = vmatpush.msra.mxu0 0.0
    %1753 = vmatpush.msra.mxu0 0.0
    %1754 = vmatpush.msra.mxu0 0.0
    %1755 = vmatpush.msra.mxu0 %v768
    %1756 = vmatpush.msra.mxu0 %v767
    %1757 = vmatmul.f32.gmra.mxu0 %v1713
    %v1758 = vpop.f32.mrf.mxu0
    %v1759 = vadd.f32 %v1736, %v1758
    %1760 = vmatmul.f32.gmra.mxu0 %v1716
    %v1761 = vpop.f32.mrf.mxu0
    %v1762 = vadd.f32 %v1739, %v1761
    %1763 = vdwg.mxu0
    %v1764 = vmax.f32 %v1759, 0.0
    %v1765 = vmax.f32 %v1762, 0.0
    %s1766 = scalar_lea.vmem %s4, 168
    %v1767 = vld [vmem:[%s1766] sm:$0xff]
    %v1769 = vsel %vm831, %v1764, 0
    %1771 = vmatpush.msra.mxu0 0.0
    %1772 = vmatpush.msra.mxu0 0.0
    %1773 = vmatpush.msra.mxu0 0.0
    %1774 = vmatpush.msra.mxu0 0.0
    %1775 = vmatpush.msra.mxu0 0.0
    %1776 = vmatpush.msra.mxu0 0.0
    %1777 = vmatpush.msra.mxu0 0.0
    %1778 = vmatpush.msra.mxu0 0.0
    %1779 = vmatpush.msra.mxu0 0.0
    %1780 = vmatpush.msra.mxu0 0.0
    %1781 = vmatpush.msra.mxu0 0.0
    %1782 = vmatpush.msra.mxu0 0.0
    %1783 = vmatpush.msra.mxu0 0.0
    %1784 = vmatpush.msra.mxu0 0.0
    %1785 = vmatpush.msra.mxu0 0.0
    %1786 = vmatpush.msra.mxu0 %v1767
    %1787 = vmatmul.f32.gmra.mxu0 %v1769
    %v1788 = vpop.f32.mrf.mxu0
    %v1789 = vadd.f32 0.0, %v1788
    %1790 = vdwg.mxu0
    %v1791 = vadd.f32 %v1633, %v1789
    %s1792 = scalar_lea.vmem %s4, 176
    %v1793 = vld [vmem:[%s1792] sm:$0xff]
    %v1794 = vrot.slane %v1764, 2
    %v1795 = vsel %vm831, %v1794, 0
    %1797 = vmatpush.msra.mxu0 0.0
    %1798 = vmatpush.msra.mxu0 0.0
    %1799 = vmatpush.msra.mxu0 0.0
    %1800 = vmatpush.msra.mxu0 0.0
    %1801 = vmatpush.msra.mxu0 0.0
    %1802 = vmatpush.msra.mxu0 0.0
    %1803 = vmatpush.msra.mxu0 0.0
    %1804 = vmatpush.msra.mxu0 0.0
    %1805 = vmatpush.msra.mxu0 0.0
    %1806 = vmatpush.msra.mxu0 0.0
    %1807 = vmatpush.msra.mxu0 0.0
    %1808 = vmatpush.msra.mxu0 0.0
    %1809 = vmatpush.msra.mxu0 0.0
    %1810 = vmatpush.msra.mxu0 0.0
    %1811 = vmatpush.msra.mxu0 0.0
    %1812 = vmatpush.msra.mxu0 %v1793
    %1813 = vmatmul.f32.gmra.mxu0 %v1795
    %v1814 = vpop.f32.mrf.mxu0
    %v1815 = vadd.f32 0.0, %v1814
    %1816 = vdwg.mxu0
    %v1817 = vadd.f32 %v1791, %v1815
    %s1818 = scalar_lea.vmem %s4, 184
    %v1819 = vld [vmem:[%s1818] sm:$0xff]
    %v1820 = vrot.slane %v1764, 4
    %v1821 = vsel %vm831, %v1820, 0
    %1823 = vmatpush.msra.mxu0 0.0
    %1824 = vmatpush.msra.mxu0 0.0
    %1825 = vmatpush.msra.mxu0 0.0
    %1826 = vmatpush.msra.mxu0 0.0
    %1827 = vmatpush.msra.mxu0 0.0
    %1828 = vmatpush.msra.mxu0 0.0
    %1829 = vmatpush.msra.mxu0 0.0
    %1830 = vmatpush.msra.mxu0 0.0
    %1831 = vmatpush.msra.mxu0 0.0
    %1832 = vmatpush.msra.mxu0 0.0
    %1833 = vmatpush.msra.mxu0 0.0
    %1834 = vmatpush.msra.mxu0 0.0
    %1835 = vmatpush.msra.mxu0 0.0
    %1836 = vmatpush.msra.mxu0 0.0
    %1837 = vmatpush.msra.mxu0 0.0
    %1838 = vmatpush.msra.mxu0 %v1819
    %1839 = vmatmul.f32.gmra.mxu0 %v1821
    %v1840 = vpop.f32.mrf.mxu0
    %v1841 = vadd.f32 0.0, %v1840
    %1842 = vdwg.mxu0
    %v1843 = vadd.f32 %v1817, %v1841
    %s1844 = scalar_lea.vmem %s4, 192
    %v1845 = vld [vmem:[%s1844] sm:$0xff]
    %v1846 = vrot.slane %v1764, 6
    %v1847 = vsel %vm831, %v1846, 0
    %1849 = vmatpush.msra.mxu0 0.0
    %1850 = vmatpush.msra.mxu0 0.0
    %1851 = vmatpush.msra.mxu0 0.0
    %1852 = vmatpush.msra.mxu0 0.0
    %1853 = vmatpush.msra.mxu0 0.0
    %1854 = vmatpush.msra.mxu0 0.0
    %1855 = vmatpush.msra.mxu0 0.0
    %1856 = vmatpush.msra.mxu0 0.0
    %1857 = vmatpush.msra.mxu0 0.0
    %1858 = vmatpush.msra.mxu0 0.0
    %1859 = vmatpush.msra.mxu0 0.0
    %1860 = vmatpush.msra.mxu0 0.0
    %1861 = vmatpush.msra.mxu0 0.0
    %1862 = vmatpush.msra.mxu0 0.0
    %1863 = vmatpush.msra.mxu0 0.0
    %1864 = vmatpush.msra.mxu0 %v1845
    %1865 = vmatmul.f32.gmra.mxu0 %v1847
    %v1866 = vpop.f32.mrf.mxu0
    %v1867 = vadd.f32 0.0, %v1866
    %1868 = vdwg.mxu0
    %v1869 = vadd.f32 %v1843, %v1867
    %s1870 = scalar_lea.vmem %s4, 200
    %v1871 = vld [vmem:[%s1870] sm:$0xff]
    %v1873 = vsel %vm831, %v1765, 0
    %1875 = vmatpush.msra.mxu0 0.0
    %1876 = vmatpush.msra.mxu0 0.0
    %1877 = vmatpush.msra.mxu0 0.0
    %1878 = vmatpush.msra.mxu0 0.0
    %1879 = vmatpush.msra.mxu0 0.0
    %1880 = vmatpush.msra.mxu0 0.0
    %1881 = vmatpush.msra.mxu0 0.0
    %1882 = vmatpush.msra.mxu0 0.0
    %1883 = vmatpush.msra.mxu0 0.0
    %1884 = vmatpush.msra.mxu0 0.0
    %1885 = vmatpush.msra.mxu0 0.0
    %1886 = vmatpush.msra.mxu0 0.0
    %1887 = vmatpush.msra.mxu0 0.0
    %1888 = vmatpush.msra.mxu0 0.0
    %1889 = vmatpush.msra.mxu0 0.0
    %1890 = vmatpush.msra.mxu0 %v1871
    %1891 = vmatmul.f32.gmra.mxu0 %v1873
    %v1892 = vpop.f32.mrf.mxu0
    %v1893 = vadd.f32 0.0, %v1892
    %1894 = vdwg.mxu0
    %v1895 = vadd.f32 %v1869, %v1893
    %s1896 = scalar_lea.vmem %s4, 208
    %v1897 = vld [vmem:[%s1896] sm:$0xff]
    %v1898 = vrot.slane %v1765, 2
    %v1899 = vsel %vm831, %v1898, 0
    %1901 = vmatpush.msra.mxu0 0.0
    %1902 = vmatpush.msra.mxu0 0.0
    %1903 = vmatpush.msra.mxu0 0.0
    %1904 = vmatpush.msra.mxu0 0.0
    %1905 = vmatpush.msra.mxu0 0.0
    %1906 = vmatpush.msra.mxu0 0.0
    %1907 = vmatpush.msra.mxu0 0.0
    %1908 = vmatpush.msra.mxu0 0.0
    %1909 = vmatpush.msra.mxu0 0.0
    %1910 = vmatpush.msra.mxu0 0.0
    %1911 = vmatpush.msra.mxu0 0.0
    %1912 = vmatpush.msra.mxu0 0.0
    %1913 = vmatpush.msra.mxu0 0.0
    %1914 = vmatpush.msra.mxu0 0.0
    %1915 = vmatpush.msra.mxu0 0.0
    %1916 = vmatpush.msra.mxu0 %v1897
    %1917 = vmatmul.f32.gmra.mxu0 %v1899
    %v1918 = vpop.f32.mrf.mxu0
    %v1919 = vadd.f32 0.0, %v1918
    %1920 = vdwg.mxu0
    %v1921 = vadd.f32 %v1895, %v1919
    %s1922 = scalar_lea.vmem %s4, 216
    %v1923 = vld [vmem:[%s1922] sm:$0xff]
    %v1924 = vrot.slane %v1765, 4
    %v1925 = vsel %vm831, %v1924, 0
    %1927 = vmatpush.msra.mxu0 0.0
    %1928 = vmatpush.msra.mxu0 0.0
    %1929 = vmatpush.msra.mxu0 0.0
    %1930 = vmatpush.msra.mxu0 0.0
    %1931 = vmatpush.msra.mxu0 0.0
    %1932 = vmatpush.msra.mxu0 0.0
    %1933 = vmatpush.msra.mxu0 0.0
    %1934 = vmatpush.msra.mxu0 0.0
    %1935 = vmatpush.msra.mxu0 0.0
    %1936 = vmatpush.msra.mxu0 0.0
    %1937 = vmatpush.msra.mxu0 0.0
    %1938 = vmatpush.msra.mxu0 0.0
    %1939 = vmatpush.msra.mxu0 0.0
    %1940 = vmatpush.msra.mxu0 0.0
    %1941 = vmatpush.msra.mxu0 0.0
    %1942 = vmatpush.msra.mxu0 %v1923
    %1943 = vmatmul.f32.gmra.mxu0 %v1925
    %v1944 = vpop.f32.mrf.mxu0
    %v1945 = vadd.f32 0.0, %v1944
    %1946 = vdwg.mxu0
    %v1947 = vadd.f32 %v1921, %v1945
    %v1948 = vld [vmem:[%s620] sm:$0xff]
    %v1949 = vld [vmem:[%s620 + $0x8] sm:$0x3f]
    %v1950 = vld [vmem:[%s644] sm:$0xff]
    %v1951 = vld [vmem:[%s644 + $0x8] sm:$0x3f]
    %v1952 = vld [vmem:[%s620 + $0x2] sm:$0xff]
    %v1953 = vld [vmem:[%s620 + $0xa] sm:$0x3f]
    %v1954 = vld [vmem:[%s575] sm:$0xff]
    %v1955 = vld [vmem:[%s575 + $0x8] sm:$0x3f]
    %v1956 = vld [vmem:[%s599] sm:$0xff]
    %v1957 = vld [vmem:[%s599 + $0x8] sm:$0x3f]
    %v1958 = vld [vmem:[%s575 + $0x2] sm:$0xff]
    %v1959 = vld [vmem:[%s575 + $0xa] sm:$0x3f]
    %1960 = vrot.lane.b32.xlu0 %v1642, 16
    %v1961 = vpop.permute.xlu0 %1960
    %1962 = vrot.lane.b32.xlu0 %v1643, 16
    %v1963 = vpop.permute.xlu0 %1962
    %1966 = vrot.lane.b32.xlu0 %v1644, 32
    %v1967 = vpop.permute.xlu0 %1966
    %1968 = vrot.lane.b32.xlu0 %v1645, 32
    %v1969 = vpop.permute.xlu0 %1968
    %1974 = vrot.lane.b32.xlu0 %v1948, 48
    %v1975 = vpop.permute.xlu0 %1974
    %1976 = vrot.lane.b32.xlu0 %v1949, 48
    %v1977 = vpop.permute.xlu0 %1976
    %1982 = vrot.lane.b32.xlu0 %v1950, 64
    %v1983 = vpop.permute.xlu0 %1982
    %1984 = vrot.lane.b32.xlu0 %v1951, 64
    %v1985 = vpop.permute.xlu0 %1984
    %1990 = vrot.lane.b32.xlu0 %v1952, 80
    %v1991 = vpop.permute.xlu0 %1990
    %1992 = vrot.lane.b32.xlu0 %v1953, 80
    %v1993 = vpop.permute.xlu0 %1992
    %1998 = vrot.lane.b32.xlu0 %v1954, 96
    %v1999 = vpop.permute.xlu0 %1998
    %2000 = vrot.lane.b32.xlu0 %v1955, 96
    %v2001 = vpop.permute.xlu0 %2000
    %2006 = vrot.lane.b32.xlu0 %v1956, 112
    %v2007 = vpop.permute.xlu0 %2006
    %2008 = vrot.lane.b32.xlu0 %v1957, 112
    %v2009 = vpop.permute.xlu0 %2008
    %v2012 = vsel %vm560, %v1640, %v1961
    %v2013 = vsel %vm560, %v1641, %v1963
    %v2014 = vsel %vm733, %v2012, %v1967
    %v2015 = vsel %vm733, %v2013, %v1969
    %v2016 = vsel %vm736, %v2014, %v1975
    %v2017 = vsel %vm736, %v2015, %v1977
    %v2018 = vsel %vm739, %v2016, %v1983
    %v2019 = vsel %vm739, %v2017, %v1985
    %v2020 = vsel %vm742, %v2018, %v1991
    %v2021 = vsel %vm742, %v2019, %v1993
    %v2022 = vsel %vm745, %v2020, %v1999
    %v2023 = vsel %vm745, %v2021, %v2001
    %v2024 = vsel %vm748, %v2022, %v2007
    %v2025 = vsel %vm748, %v2023, %v2009
    %v2027 = vsel %vm560, %v1958, 0
    %v2030 = vsel %vm560, %v1959, 0
    %2032 = vmatpush.msra.mxu0 %v766
    %2033 = vmatpush.msra.mxu0 %v765
    %2034 = vmatpush.msra.mxu0 %v764
    %2035 = vmatpush.msra.mxu0 %v763
    %2036 = vmatpush.msra.mxu0 %v762
    %2037 = vmatpush.msra.mxu0 %v761
    %2038 = vmatpush.msra.mxu0 %v760
    %2039 = vmatpush.msra.mxu0 %v759
    %2040 = vmatpush.msra.mxu0 %v758
    %2041 = vmatpush.msra.mxu0 %v757
    %2042 = vmatpush.msra.mxu0 %v756
    %2043 = vmatpush.msra.mxu0 %v755
    %2044 = vmatpush.msra.mxu0 %v754
    %2045 = vmatpush.msra.mxu0 %v753
    %2046 = vmatpush.msra.mxu0 %v752
    %2047 = vmatpush.msra.mxu0 %v751
    %2048 = vmatmul.f32.gmra.mxu0 %v2024
    %v2049 = vpop.f32.mrf.mxu0
    %v2050 = vadd.f32 %v770, %v2049
    %2051 = vmatmul.f32.gmra.mxu0 %v2025
    %v2052 = vpop.f32.mrf.mxu0
    %v2053 = vadd.f32 %v770, %v2052
    %2054 = vdwg.mxu0
    %2055 = vmatpush.msra.mxu0 0.0
    %2056 = vmatpush.msra.mxu0 0.0
    %2057 = vmatpush.msra.mxu0 0.0
    %2058 = vmatpush.msra.mxu0 0.0
    %2059 = vmatpush.msra.mxu0 0.0
    %2060 = vmatpush.msra.mxu0 0.0
    %2061 = vmatpush.msra.mxu0 0.0
    %2062 = vmatpush.msra.mxu0 0.0
    %2063 = vmatpush.msra.mxu0 0.0
    %2064 = vmatpush.msra.mxu0 0.0
    %2065 = vmatpush.msra.mxu0 0.0
    %2066 = vmatpush.msra.mxu0 0.0
    %2067 = vmatpush.msra.mxu0 0.0
    %2068 = vmatpush.msra.mxu0 0.0
    %2069 = vmatpush.msra.mxu0 %v768
    %2070 = vmatpush.msra.mxu0 %v767
    %2071 = vmatmul.f32.gmra.mxu0 %v2027
    %v2072 = vpop.f32.mrf.mxu0
    %v2073 = vadd.f32 %v2050, %v2072
    %2074 = vmatmul.f32.gmra.mxu0 %v2030
    %v2075 = vpop.f32.mrf.mxu0
    %v2076 = vadd.f32 %v2053, %v2075
    %2077 = vdwg.mxu0
    %v2078 = vmax.f32 %v2073, 0.0
    %v2079 = vmax.f32 %v2076, 0.0
    %s2080 = scalar_lea.vmem %s4, 224
    %v2081 = vld [vmem:[%s2080] sm:$0xff]
    %v2083 = vsel %vm831, %v2078, 0
    %2085 = vmatpush.msra.mxu0 0.0
    %2086 = vmatpush.msra.mxu0 0.0
    %2087 = vmatpush.msra.mxu0 0.0
    %2088 = vmatpush.msra.mxu0 0.0
    %2089 = vmatpush.msra.mxu0 0.0
    %2090 = vmatpush.msra.mxu0 0.0
    %2091 = vmatpush.msra.mxu0 0.0
    %2092 = vmatpush.msra.mxu0 0.0
    %2093 = vmatpush.msra.mxu0 0.0
    %2094 = vmatpush.msra.mxu0 0.0
    %2095 = vmatpush.msra.mxu0 0.0
    %2096 = vmatpush.msra.mxu0 0.0
    %2097 = vmatpush.msra.mxu0 0.0
    %2098 = vmatpush.msra.mxu0 0.0
    %2099 = vmatpush.msra.mxu0 0.0
    %2100 = vmatpush.msra.mxu0 %v2081
    %2101 = vmatmul.f32.gmra.mxu0 %v2083
    %v2102 = vpop.f32.mrf.mxu0
    %v2103 = vadd.f32 0.0, %v2102
    %2104 = vdwg.mxu0
    %v2105 = vadd.f32 %v1947, %v2103
    %s2106 = scalar_lea.vmem %s4, 232
    %v2107 = vld [vmem:[%s2106] sm:$0xff]
    %v2108 = vrot.slane %v2078, 2
    %v2109 = vsel %vm831, %v2108, 0
    %2111 = vmatpush.msra.mxu0 0.0
    %2112 = vmatpush.msra.mxu0 0.0
    %2113 = vmatpush.msra.mxu0 0.0
    %2114 = vmatpush.msra.mxu0 0.0
    %2115 = vmatpush.msra.mxu0 0.0
    %2116 = vmatpush.msra.mxu0 0.0
    %2117 = vmatpush.msra.mxu0 0.0
    %2118 = vmatpush.msra.mxu0 0.0
    %2119 = vmatpush.msra.mxu0 0.0
    %2120 = vmatpush.msra.mxu0 0.0
    %2121 = vmatpush.msra.mxu0 0.0
    %2122 = vmatpush.msra.mxu0 0.0
    %2123 = vmatpush.msra.mxu0 0.0
    %2124 = vmatpush.msra.mxu0 0.0
    %2125 = vmatpush.msra.mxu0 0.0
    %2126 = vmatpush.msra.mxu0 %v2107
    %2127 = vmatmul.f32.gmra.mxu0 %v2109
    %v2128 = vpop.f32.mrf.mxu0
    %v2129 = vadd.f32 0.0, %v2128
    %2130 = vdwg.mxu0
    %v2131 = vadd.f32 %v2105, %v2129
    %s2132 = scalar_lea.vmem %s4, 240
    %v2133 = vld [vmem:[%s2132] sm:$0xff]
    %v2134 = vrot.slane %v2078, 4
    %v2135 = vsel %vm831, %v2134, 0
    %2137 = vmatpush.msra.mxu0 0.0
    %2138 = vmatpush.msra.mxu0 0.0
    %2139 = vmatpush.msra.mxu0 0.0
    %2140 = vmatpush.msra.mxu0 0.0
    %2141 = vmatpush.msra.mxu0 0.0
    %2142 = vmatpush.msra.mxu0 0.0
    %2143 = vmatpush.msra.mxu0 0.0
    %2144 = vmatpush.msra.mxu0 0.0
    %2145 = vmatpush.msra.mxu0 0.0
    %2146 = vmatpush.msra.mxu0 0.0
    %2147 = vmatpush.msra.mxu0 0.0
    %2148 = vmatpush.msra.mxu0 0.0
    %2149 = vmatpush.msra.mxu0 0.0
    %2150 = vmatpush.msra.mxu0 0.0
    %2151 = vmatpush.msra.mxu0 0.0
    %2152 = vmatpush.msra.mxu0 %v2133
    %2153 = vmatmul.f32.gmra.mxu0 %v2135
    %v2154 = vpop.f32.mrf.mxu0
    %v2155 = vadd.f32 0.0, %v2154
    %2156 = vdwg.mxu0
    %v2157 = vadd.f32 %v2131, %v2155
    %s2158 = scalar_lea.vmem %s4, 248
    %v2159 = vld [vmem:[%s2158] sm:$0xff]
    %v2160 = vrot.slane %v2078, 6
    %v2161 = vsel %vm831, %v2160, 0
    %2163 = vmatpush.msra.mxu0 0.0
    %2164 = vmatpush.msra.mxu0 0.0
    %2165 = vmatpush.msra.mxu0 0.0
    %2166 = vmatpush.msra.mxu0 0.0
    %2167 = vmatpush.msra.mxu0 0.0
    %2168 = vmatpush.msra.mxu0 0.0
    %2169 = vmatpush.msra.mxu0 0.0
    %2170 = vmatpush.msra.mxu0 0.0
    %2171 = vmatpush.msra.mxu0 0.0
    %2172 = vmatpush.msra.mxu0 0.0
    %2173 = vmatpush.msra.mxu0 0.0
    %2174 = vmatpush.msra.mxu0 0.0
    %2175 = vmatpush.msra.mxu0 0.0
    %2176 = vmatpush.msra.mxu0 0.0
    %2177 = vmatpush.msra.mxu0 0.0
    %2178 = vmatpush.msra.mxu0 %v2159
    %2179 = vmatmul.f32.gmra.mxu0 %v2161
    %v2180 = vpop.f32.mrf.mxu0
    %v2181 = vadd.f32 0.0, %v2180
    %2182 = vdwg.mxu0
    %v2183 = vadd.f32 %v2157, %v2181
    %s2184 = scalar_lea.vmem %s4, 256
    %v2185 = vld [vmem:[%s2184] sm:$0xff]
    %v2187 = vsel %vm831, %v2079, 0
    %2189 = vmatpush.msra.mxu0 0.0
    %2190 = vmatpush.msra.mxu0 0.0
    %2191 = vmatpush.msra.mxu0 0.0
    %2192 = vmatpush.msra.mxu0 0.0
    %2193 = vmatpush.msra.mxu0 0.0
    %2194 = vmatpush.msra.mxu0 0.0
    %2195 = vmatpush.msra.mxu0 0.0
    %2196 = vmatpush.msra.mxu0 0.0
    %2197 = vmatpush.msra.mxu0 0.0
    %2198 = vmatpush.msra.mxu0 0.0
    %2199 = vmatpush.msra.mxu0 0.0
    %2200 = vmatpush.msra.mxu0 0.0
    %2201 = vmatpush.msra.mxu0 0.0
    %2202 = vmatpush.msra.mxu0 0.0
    %2203 = vmatpush.msra.mxu0 0.0
    %2204 = vmatpush.msra.mxu0 %v2185
    %2205 = vmatmul.f32.gmra.mxu0 %v2187
    %v2206 = vpop.f32.mrf.mxu0
    %v2207 = vadd.f32 0.0, %v2206
    %2208 = vdwg.mxu0
    %v2209 = vadd.f32 %v2183, %v2207
    %s2210 = scalar_lea.vmem %s4, 264
    %v2211 = vld [vmem:[%s2210] sm:$0xff]
    %v2212 = vrot.slane %v2079, 2
    %v2213 = vsel %vm831, %v2212, 0
    %2215 = vmatpush.msra.mxu0 0.0
    %2216 = vmatpush.msra.mxu0 0.0
    %2217 = vmatpush.msra.mxu0 0.0
    %2218 = vmatpush.msra.mxu0 0.0
    %2219 = vmatpush.msra.mxu0 0.0
    %2220 = vmatpush.msra.mxu0 0.0
    %2221 = vmatpush.msra.mxu0 0.0
    %2222 = vmatpush.msra.mxu0 0.0
    %2223 = vmatpush.msra.mxu0 0.0
    %2224 = vmatpush.msra.mxu0 0.0
    %2225 = vmatpush.msra.mxu0 0.0
    %2226 = vmatpush.msra.mxu0 0.0
    %2227 = vmatpush.msra.mxu0 0.0
    %2228 = vmatpush.msra.mxu0 0.0
    %2229 = vmatpush.msra.mxu0 0.0
    %2230 = vmatpush.msra.mxu0 %v2211
    %2231 = vmatmul.f32.gmra.mxu0 %v2213
    %v2232 = vpop.f32.mrf.mxu0
    %v2233 = vadd.f32 0.0, %v2232
    %2234 = vdwg.mxu0
    %v2235 = vadd.f32 %v2209, %v2233
    %s2236 = scalar_lea.vmem %s4, 272
    %v2237 = vld [vmem:[%s2236] sm:$0xff]
    %v2238 = vrot.slane %v2079, 4
    %v2239 = vsel %vm831, %v2238, 0
    %2241 = vmatpush.msra.mxu0 0.0
    %2242 = vmatpush.msra.mxu0 0.0
    %2243 = vmatpush.msra.mxu0 0.0
    %2244 = vmatpush.msra.mxu0 0.0
    %2245 = vmatpush.msra.mxu0 0.0
    %2246 = vmatpush.msra.mxu0 0.0
    %2247 = vmatpush.msra.mxu0 0.0
    %2248 = vmatpush.msra.mxu0 0.0
    %2249 = vmatpush.msra.mxu0 0.0
    %2250 = vmatpush.msra.mxu0 0.0
    %2251 = vmatpush.msra.mxu0 0.0
    %2252 = vmatpush.msra.mxu0 0.0
    %2253 = vmatpush.msra.mxu0 0.0
    %2254 = vmatpush.msra.mxu0 0.0
    %2255 = vmatpush.msra.mxu0 0.0
    %2256 = vmatpush.msra.mxu0 %v2237
    %2257 = vmatmul.f32.gmra.mxu0 %v2239
    %v2258 = vpop.f32.mrf.mxu0
    %v2259 = vadd.f32 0.0, %v2258
    %2260 = vdwg.mxu0
    %v2261 = vadd.f32 %v2235, %v2259
    %v2262 = vld [vmem:[%s623] sm:$0xff]
    %v2263 = vld [vmem:[%s623 + $0x8] sm:$0x3f]
    %v2264 = vld [vmem:[%s647] sm:$0xff]
    %v2265 = vld [vmem:[%s647 + $0x8] sm:$0x3f]
    %v2266 = vld [vmem:[%s623 + $0x2] sm:$0xff]
    %v2267 = vld [vmem:[%s623 + $0xa] sm:$0x3f]
    %v2268 = vld [vmem:[%s578] sm:$0xff]
    %v2269 = vld [vmem:[%s578 + $0x8] sm:$0x3f]
    %v2270 = vld [vmem:[%s602] sm:$0xff]
    %v2271 = vld [vmem:[%s602 + $0x8] sm:$0x3f]
    %v2272 = vld [vmem:[%s578 + $0x2] sm:$0xff]
    %v2273 = vld [vmem:[%s578 + $0xa] sm:$0x3f]
    %2274 = vrot.lane.b32.xlu0 %v1956, 16
    %v2275 = vpop.permute.xlu0 %2274
    %2276 = vrot.lane.b32.xlu0 %v1957, 16
    %v2277 = vpop.permute.xlu0 %2276
    %2280 = vrot.lane.b32.xlu0 %v1958, 32
    %v2281 = vpop.permute.xlu0 %2280
    %2282 = vrot.lane.b32.xlu0 %v1959, 32
    %v2283 = vpop.permute.xlu0 %2282
    %2288 = vrot.lane.b32.xlu0 %v2262, 48
    %v2289 = vpop.permute.xlu0 %2288
    %2290 = vrot.lane.b32.xlu0 %v2263, 48
    %v2291 = vpop.permute.xlu0 %2290
    %2296 = vrot.lane.b32.xlu0 %v2264, 64
    %v2297 = vpop.permute.xlu0 %2296
    %2298 = vrot.lane.b32.xlu0 %v2265, 64
    %v2299 = vpop.permute.xlu0 %2298
    %2304 = vrot.lane.b32.xlu0 %v2266, 80
    %v2305 = vpop.permute.xlu0 %2304
    %2306 = vrot.lane.b32.xlu0 %v2267, 80
    %v2307 = vpop.permute.xlu0 %2306
    %2312 = vrot.lane.b32.xlu0 %v2268, 96
    %v2313 = vpop.permute.xlu0 %2312
    %2314 = vrot.lane.b32.xlu0 %v2269, 96
    %v2315 = vpop.permute.xlu0 %2314
    %2320 = vrot.lane.b32.xlu0 %v2270, 112
    %v2321 = vpop.permute.xlu0 %2320
    %2322 = vrot.lane.b32.xlu0 %v2271, 112
    %v2323 = vpop.permute.xlu0 %2322
    %v2326 = vsel %vm560, %v1954, %v2275
    %v2327 = vsel %vm560, %v1955, %v2277
    %v2328 = vsel %vm733, %v2326, %v2281
    %v2329 = vsel %vm733, %v2327, %v2283
    %v2330 = vsel %vm736, %v2328, %v2289
    %v2331 = vsel %vm736, %v2329, %v2291
    %v2332 = vsel %vm739, %v2330, %v2297
    %v2333 = vsel %vm739, %v2331, %v2299
    %v2334 = vsel %vm742, %v2332, %v2305
    %v2335 = vsel %vm742, %v2333, %v2307
    %v2336 = vsel %vm745, %v2334, %v2313
    %v2337 = vsel %vm745, %v2335, %v2315
    %v2338 = vsel %vm748, %v2336, %v2321
    %v2339 = vsel %vm748, %v2337, %v2323
    %v2341 = vsel %vm560, %v2272, 0
    %v2344 = vsel %vm560, %v2273, 0
    %2346 = vmatpush.msra.mxu0 %v766
    %2347 = vmatpush.msra.mxu0 %v765
    %2348 = vmatpush.msra.mxu0 %v764
    %2349 = vmatpush.msra.mxu0 %v763
    %2350 = vmatpush.msra.mxu0 %v762
    %2351 = vmatpush.msra.mxu0 %v761
    %2352 = vmatpush.msra.mxu0 %v760
    %2353 = vmatpush.msra.mxu0 %v759
    %2354 = vmatpush.msra.mxu0 %v758
    %2355 = vmatpush.msra.mxu0 %v757
    %2356 = vmatpush.msra.mxu0 %v756
    %2357 = vmatpush.msra.mxu0 %v755
    %2358 = vmatpush.msra.mxu0 %v754
    %2359 = vmatpush.msra.mxu0 %v753
    %2360 = vmatpush.msra.mxu0 %v752
    %2361 = vmatpush.msra.mxu0 %v751
    %2362 = vmatmul.f32.gmra.mxu0 %v2338
    %v2363 = vpop.f32.mrf.mxu0
    %v2364 = vadd.f32 %v770, %v2363
    %2365 = vmatmul.f32.gmra.mxu0 %v2339
    %v2366 = vpop.f32.mrf.mxu0
    %v2367 = vadd.f32 %v770, %v2366
    %2368 = vdwg.mxu0
    %2369 = vmatpush.msra.mxu0 0.0
    %2370 = vmatpush.msra.mxu0 0.0
    %2371 = vmatpush.msra.mxu0 0.0
    %2372 = vmatpush.msra.mxu0 0.0
    %2373 = vmatpush.msra.mxu0 0.0
    %2374 = vmatpush.msra.mxu0 0.0
    %2375 = vmatpush.msra.mxu0 0.0
    %2376 = vmatpush.msra.mxu0 0.0
    %2377 = vmatpush.msra.mxu0 0.0
    %2378 = vmatpush.msra.mxu0 0.0
    %2379 = vmatpush.msra.mxu0 0.0
    %2380 = vmatpush.msra.mxu0 0.0
    %2381 = vmatpush.msra.mxu0 0.0
    %2382 = vmatpush.msra.mxu0 0.0
    %2383 = vmatpush.msra.mxu0 %v768
    %2384 = vmatpush.msra.mxu0 %v767
    %2385 = vmatmul.f32.gmra.mxu0 %v2341
    %v2386 = vpop.f32.mrf.mxu0
    %v2387 = vadd.f32 %v2364, %v2386
    %2388 = vmatmul.f32.gmra.mxu0 %v2344
    %v2389 = vpop.f32.mrf.mxu0
    %v2390 = vadd.f32 %v2367, %v2389
    %2391 = vdwg.mxu0
    %v2392 = vmax.f32 %v2387, 0.0
    %v2393 = vmax.f32 %v2390, 0.0
    %s2394 = scalar_lea.vmem %s4, 280
    %v2395 = vld [vmem:[%s2394] sm:$0xff]
    %v2397 = vsel %vm831, %v2392, 0
    %2399 = vmatpush.msra.mxu0 0.0
    %2400 = vmatpush.msra.mxu0 0.0
    %2401 = vmatpush.msra.mxu0 0.0
    %2402 = vmatpush.msra.mxu0 0.0
    %2403 = vmatpush.msra.mxu0 0.0
    %2404 = vmatpush.msra.mxu0 0.0
    %2405 = vmatpush.msra.mxu0 0.0
    %2406 = vmatpush.msra.mxu0 0.0
    %2407 = vmatpush.msra.mxu0 0.0
    %2408 = vmatpush.msra.mxu0 0.0
    %2409 = vmatpush.msra.mxu0 0.0
    %2410 = vmatpush.msra.mxu0 0.0
    %2411 = vmatpush.msra.mxu0 0.0
    %2412 = vmatpush.msra.mxu0 0.0
    %2413 = vmatpush.msra.mxu0 0.0
    %2414 = vmatpush.msra.mxu0 %v2395
    %2415 = vmatmul.f32.gmra.mxu0 %v2397
    %v2416 = vpop.f32.mrf.mxu0
    %v2417 = vadd.f32 0.0, %v2416
    %2418 = vdwg.mxu0
    %v2419 = vadd.f32 %v2261, %v2417
    %s2420 = scalar_lea.vmem %s4, 288
    %v2421 = vld [vmem:[%s2420] sm:$0xff]
    %v2422 = vrot.slane %v2392, 2
    %v2423 = vsel %vm831, %v2422, 0
    %2425 = vmatpush.msra.mxu0 0.0
    %2426 = vmatpush.msra.mxu0 0.0
    %2427 = vmatpush.msra.mxu0 0.0
    %2428 = vmatpush.msra.mxu0 0.0
    %2429 = vmatpush.msra.mxu0 0.0
    %2430 = vmatpush.msra.mxu0 0.0
    %2431 = vmatpush.msra.mxu0 0.0
    %2432 = vmatpush.msra.mxu0 0.0
    %2433 = vmatpush.msra.mxu0 0.0
    %2434 = vmatpush.msra.mxu0 0.0
    %2435 = vmatpush.msra.mxu0 0.0
    %2436 = vmatpush.msra.mxu0 0.0
    %2437 = vmatpush.msra.mxu0 0.0
    %2438 = vmatpush.msra.mxu0 0.0
    %2439 = vmatpush.msra.mxu0 0.0
    %2440 = vmatpush.msra.mxu0 %v2421
    %2441 = vmatmul.f32.gmra.mxu0 %v2423
    %v2442 = vpop.f32.mrf.mxu0
    %v2443 = vadd.f32 0.0, %v2442
    %2444 = vdwg.mxu0
    %v2445 = vadd.f32 %v2419, %v2443
    %s2446 = scalar_lea.vmem %s4, 296
    %v2447 = vld [vmem:[%s2446] sm:$0xff]
    %v2448 = vrot.slane %v2392, 4
    %v2449 = vsel %vm831, %v2448, 0
    %2451 = vmatpush.msra.mxu0 0.0
    %2452 = vmatpush.msra.mxu0 0.0
    %2453 = vmatpush.msra.mxu0 0.0
    %2454 = vmatpush.msra.mxu0 0.0
    %2455 = vmatpush.msra.mxu0 0.0
    %2456 = vmatpush.msra.mxu0 0.0
    %2457 = vmatpush.msra.mxu0 0.0
    %2458 = vmatpush.msra.mxu0 0.0
    %2459 = vmatpush.msra.mxu0 0.0
    %2460 = vmatpush.msra.mxu0 0.0
    %2461 = vmatpush.msra.mxu0 0.0
    %2462 = vmatpush.msra.mxu0 0.0
    %2463 = vmatpush.msra.mxu0 0.0
    %2464 = vmatpush.msra.mxu0 0.0
    %2465 = vmatpush.msra.mxu0 0.0
    %2466 = vmatpush.msra.mxu0 %v2447
    %2467 = vmatmul.f32.gmra.mxu0 %v2449
    %v2468 = vpop.f32.mrf.mxu0
    %v2469 = vadd.f32 0.0, %v2468
    %2470 = vdwg.mxu0
    %v2471 = vadd.f32 %v2445, %v2469
    %s2472 = scalar_lea.vmem %s4, 304
    %v2473 = vld [vmem:[%s2472] sm:$0xff]
    %v2474 = vrot.slane %v2392, 6
    %v2475 = vsel %vm831, %v2474, 0
    %2477 = vmatpush.msra.mxu0 0.0
    %2478 = vmatpush.msra.mxu0 0.0
    %2479 = vmatpush.msra.mxu0 0.0
    %2480 = vmatpush.msra.mxu0 0.0
    %2481 = vmatpush.msra.mxu0 0.0
    %2482 = vmatpush.msra.mxu0 0.0
    %2483 = vmatpush.msra.mxu0 0.0
    %2484 = vmatpush.msra.mxu0 0.0
    %2485 = vmatpush.msra.mxu0 0.0
    %2486 = vmatpush.msra.mxu0 0.0
    %2487 = vmatpush.msra.mxu0 0.0
    %2488 = vmatpush.msra.mxu0 0.0
    %2489 = vmatpush.msra.mxu0 0.0
    %2490 = vmatpush.msra.mxu0 0.0
    %2491 = vmatpush.msra.mxu0 0.0
    %2492 = vmatpush.msra.mxu0 %v2473
    %2493 = vmatmul.f32.gmra.mxu0 %v2475
    %v2494 = vpop.f32.mrf.mxu0
    %v2495 = vadd.f32 0.0, %v2494
    %2496 = vdwg.mxu0
    %v2497 = vadd.f32 %v2471, %v2495
    %s2498 = scalar_lea.vmem %s4, 312
    %v2499 = vld [vmem:[%s2498] sm:$0xff]
    %v2501 = vsel %vm831, %v2393, 0
    %2503 = vmatpush.msra.mxu0 0.0
    %2504 = vmatpush.msra.mxu0 0.0
    %2505 = vmatpush.msra.mxu0 0.0
    %2506 = vmatpush.msra.mxu0 0.0
    %2507 = vmatpush.msra.mxu0 0.0
    %2508 = vmatpush.msra.mxu0 0.0
    %2509 = vmatpush.msra.mxu0 0.0
    %2510 = vmatpush.msra.mxu0 0.0
    %2511 = vmatpush.msra.mxu0 0.0
    %2512 = vmatpush.msra.mxu0 0.0
    %2513 = vmatpush.msra.mxu0 0.0
    %2514 = vmatpush.msra.mxu0 0.0
    %2515 = vmatpush.msra.mxu0 0.0
    %2516 = vmatpush.msra.mxu0 0.0
    %2517 = vmatpush.msra.mxu0 0.0
    %2518 = vmatpush.msra.mxu0 %v2499
    %2519 = vmatmul.f32.gmra.mxu0 %v2501
    %v2520 = vpop.f32.mrf.mxu0
    %v2521 = vadd.f32 0.0, %v2520
    %2522 = vdwg.mxu0
    %v2523 = vadd.f32 %v2497, %v2521
    %s2524 = scalar_lea.vmem %s4, 320
    %v2525 = vld [vmem:[%s2524] sm:$0xff]
    %v2526 = vrot.slane %v2393, 2
    %v2527 = vsel %vm831, %v2526, 0
    %2529 = vmatpush.msra.mxu0 0.0
    %2530 = vmatpush.msra.mxu0 0.0
    %2531 = vmatpush.msra.mxu0 0.0
    %2532 = vmatpush.msra.mxu0 0.0
    %2533 = vmatpush.msra.mxu0 0.0
    %2534 = vmatpush.msra.mxu0 0.0
    %2535 = vmatpush.msra.mxu0 0.0
    %2536 = vmatpush.msra.mxu0 0.0
    %2537 = vmatpush.msra.mxu0 0.0
    %2538 = vmatpush.msra.mxu0 0.0
    %2539 = vmatpush.msra.mxu0 0.0
    %2540 = vmatpush.msra.mxu0 0.0
    %2541 = vmatpush.msra.mxu0 0.0
    %2542 = vmatpush.msra.mxu0 0.0
    %2543 = vmatpush.msra.mxu0 0.0
    %2544 = vmatpush.msra.mxu0 %v2525
    %2545 = vmatmul.f32.gmra.mxu0 %v2527
    %v2546 = vpop.f32.mrf.mxu0
    %v2547 = vadd.f32 0.0, %v2546
    %2548 = vdwg.mxu0
    %v2549 = vadd.f32 %v2523, %v2547
    %s2550 = scalar_lea.vmem %s4, 328
    %v2551 = vld [vmem:[%s2550] sm:$0xff]
    %v2552 = vrot.slane %v2393, 4
    %v2553 = vsel %vm831, %v2552, 0
    %2555 = vmatpush.msra.mxu0 0.0
    %2556 = vmatpush.msra.mxu0 0.0
    %2557 = vmatpush.msra.mxu0 0.0
    %2558 = vmatpush.msra.mxu0 0.0
    %2559 = vmatpush.msra.mxu0 0.0
    %2560 = vmatpush.msra.mxu0 0.0
    %2561 = vmatpush.msra.mxu0 0.0
    %2562 = vmatpush.msra.mxu0 0.0
    %2563 = vmatpush.msra.mxu0 0.0
    %2564 = vmatpush.msra.mxu0 0.0
    %2565 = vmatpush.msra.mxu0 0.0
    %2566 = vmatpush.msra.mxu0 0.0
    %2567 = vmatpush.msra.mxu0 0.0
    %2568 = vmatpush.msra.mxu0 0.0
    %2569 = vmatpush.msra.mxu0 0.0
    %2570 = vmatpush.msra.mxu0 %v2551
    %2571 = vmatmul.f32.gmra.mxu0 %v2553
    %v2572 = vpop.f32.mrf.mxu0
    %v2573 = vadd.f32 0.0, %v2572
    %2574 = vdwg.mxu0
    %v2575 = vadd.f32 %v2549, %v2573
    %v2576 = vld [vmem:[%s626] sm:$0xff]
    %v2577 = vld [vmem:[%s626 + $0x8] sm:$0x3f]
    %v2578 = vld [vmem:[%s650] sm:$0xff]
    %v2579 = vld [vmem:[%s650 + $0x8] sm:$0x3f]
    %v2580 = vld [vmem:[%s626 + $0x2] sm:$0xff]
    %v2581 = vld [vmem:[%s626 + $0xa] sm:$0x3f]
    %v2582 = vld [vmem:[%s581] sm:$0xff]
    %v2583 = vld [vmem:[%s581 + $0x8] sm:$0x3f]
    %v2584 = vld [vmem:[%s605] sm:$0xff]
    %v2585 = vld [vmem:[%s605 + $0x8] sm:$0x3f]
    %v2586 = vld [vmem:[%s581 + $0x2] sm:$0xff]
    %v2587 = vld [vmem:[%s581 + $0xa] sm:$0x3f]
    %2588 = vrot.lane.b32.xlu0 %v2270, 16
    %v2589 = vpop.permute.xlu0 %2588
    %2590 = vrot.lane.b32.xlu0 %v2271, 16
    %v2591 = vpop.permute.xlu0 %2590
    %2594 = vrot.lane.b32.xlu0 %v2272, 32
    %v2595 = vpop.permute.xlu0 %2594
    %2596 = vrot.lane.b32.xlu0 %v2273, 32
    %v2597 = vpop.permute.xlu0 %2596
    %2602 = vrot.lane.b32.xlu0 %v2576, 48
    %v2603 = vpop.permute.xlu0 %2602
    %2604 = vrot.lane.b32.xlu0 %v2577, 48
    %v2605 = vpop.permute.xlu0 %2604
    %2610 = vrot.lane.b32.xlu0 %v2578, 64
    %v2611 = vpop.permute.xlu0 %2610
    %2612 = vrot.lane.b32.xlu0 %v2579, 64
    %v2613 = vpop.permute.xlu0 %2612
    %2618 = vrot.lane.b32.xlu0 %v2580, 80
    %v2619 = vpop.permute.xlu0 %2618
    %2620 = vrot.lane.b32.xlu0 %v2581, 80
    %v2621 = vpop.permute.xlu0 %2620
    %2626 = vrot.lane.b32.xlu0 %v2582, 96
    %v2627 = vpop.permute.xlu0 %2626
    %2628 = vrot.lane.b32.xlu0 %v2583, 96
    %v2629 = vpop.permute.xlu0 %2628
    %2634 = vrot.lane.b32.xlu0 %v2584, 112
    %v2635 = vpop.permute.xlu0 %2634
    %2636 = vrot.lane.b32.xlu0 %v2585, 112
    %v2637 = vpop.permute.xlu0 %2636
    %v2640 = vsel %vm560, %v2268, %v2589
    %v2641 = vsel %vm560, %v2269, %v2591
    %v2642 = vsel %vm733, %v2640, %v2595
    %v2643 = vsel %vm733, %v2641, %v2597
    %v2644 = vsel %vm736, %v2642, %v2603
    %v2645 = vsel %vm736, %v2643, %v2605
    %v2646 = vsel %vm739, %v2644, %v2611
    %v2647 = vsel %vm739, %v2645, %v2613
    %v2648 = vsel %vm742, %v2646, %v2619
    %v2649 = vsel %vm742, %v2647, %v2621
    %v2650 = vsel %vm745, %v2648, %v2627
    %v2651 = vsel %vm745, %v2649, %v2629
    %v2652 = vsel %vm748, %v2650, %v2635
    %v2653 = vsel %vm748, %v2651, %v2637
    %v2655 = vsel %vm560, %v2586, 0
    %v2658 = vsel %vm560, %v2587, 0
    %2660 = vmatpush.msra.mxu0 %v766
    %2661 = vmatpush.msra.mxu0 %v765
    %2662 = vmatpush.msra.mxu0 %v764
    %2663 = vmatpush.msra.mxu0 %v763
    %2664 = vmatpush.msra.mxu0 %v762
    %2665 = vmatpush.msra.mxu0 %v761
    %2666 = vmatpush.msra.mxu0 %v760
    %2667 = vmatpush.msra.mxu0 %v759
    %2668 = vmatpush.msra.mxu0 %v758
    %2669 = vmatpush.msra.mxu0 %v757
    %2670 = vmatpush.msra.mxu0 %v756
    %2671 = vmatpush.msra.mxu0 %v755
    %2672 = vmatpush.msra.mxu0 %v754
    %2673 = vmatpush.msra.mxu0 %v753
    %2674 = vmatpush.msra.mxu0 %v752
    %2675 = vmatpush.msra.mxu0 %v751
    %2676 = vmatmul.f32.gmra.mxu0 %v2652
    %v2677 = vpop.f32.mrf.mxu0
    %v2678 = vadd.f32 %v770, %v2677
    %2679 = vmatmul.f32.gmra.mxu0 %v2653
    %v2680 = vpop.f32.mrf.mxu0
    %v2681 = vadd.f32 %v770, %v2680
    %2682 = vdwg.mxu0
    %2683 = vmatpush.msra.mxu0 0.0
    %2684 = vmatpush.msra.mxu0 0.0
    %2685 = vmatpush.msra.mxu0 0.0
    %2686 = vmatpush.msra.mxu0 0.0
    %2687 = vmatpush.msra.mxu0 0.0
    %2688 = vmatpush.msra.mxu0 0.0
    %2689 = vmatpush.msra.mxu0 0.0
    %2690 = vmatpush.msra.mxu0 0.0
    %2691 = vmatpush.msra.mxu0 0.0
    %2692 = vmatpush.msra.mxu0 0.0
    %2693 = vmatpush.msra.mxu0 0.0
    %2694 = vmatpush.msra.mxu0 0.0
    %2695 = vmatpush.msra.mxu0 0.0
    %2696 = vmatpush.msra.mxu0 0.0
    %2697 = vmatpush.msra.mxu0 %v768
    %2698 = vmatpush.msra.mxu0 %v767
    %2699 = vmatmul.f32.gmra.mxu0 %v2655
    %v2700 = vpop.f32.mrf.mxu0
    %v2701 = vadd.f32 %v2678, %v2700
    %2702 = vmatmul.f32.gmra.mxu0 %v2658
    %v2703 = vpop.f32.mrf.mxu0
    %v2704 = vadd.f32 %v2681, %v2703
    %2705 = vdwg.mxu0
    %v2706 = vmax.f32 %v2701, 0.0
    %v2707 = vmax.f32 %v2704, 0.0
    %s2708 = scalar_lea.vmem %s4, 336
    %v2709 = vld [vmem:[%s2708] sm:$0xff]
    %v2711 = vsel %vm831, %v2706, 0
    %2713 = vmatpush.msra.mxu0 0.0
    %2714 = vmatpush.msra.mxu0 0.0
    %2715 = vmatpush.msra.mxu0 0.0
    %2716 = vmatpush.msra.mxu0 0.0
    %2717 = vmatpush.msra.mxu0 0.0
    %2718 = vmatpush.msra.mxu0 0.0
    %2719 = vmatpush.msra.mxu0 0.0
    %2720 = vmatpush.msra.mxu0 0.0
    %2721 = vmatpush.msra.mxu0 0.0
    %2722 = vmatpush.msra.mxu0 0.0
    %2723 = vmatpush.msra.mxu0 0.0
    %2724 = vmatpush.msra.mxu0 0.0
    %2725 = vmatpush.msra.mxu0 0.0
    %2726 = vmatpush.msra.mxu0 0.0
    %2727 = vmatpush.msra.mxu0 0.0
    %2728 = vmatpush.msra.mxu0 %v2709
    %2729 = vmatmul.f32.gmra.mxu0 %v2711
    %v2730 = vpop.f32.mrf.mxu0
    %v2731 = vadd.f32 0.0, %v2730
    %2732 = vdwg.mxu0
    %v2733 = vadd.f32 %v2575, %v2731
    %s2734 = scalar_lea.vmem %s4, 344
    %v2735 = vld [vmem:[%s2734] sm:$0xff]
    %v2736 = vrot.slane %v2706, 2
    %v2737 = vsel %vm831, %v2736, 0
    %2739 = vmatpush.msra.mxu0 0.0
    %2740 = vmatpush.msra.mxu0 0.0
    %2741 = vmatpush.msra.mxu0 0.0
    %2742 = vmatpush.msra.mxu0 0.0
    %2743 = vmatpush.msra.mxu0 0.0
    %2744 = vmatpush.msra.mxu0 0.0
    %2745 = vmatpush.msra.mxu0 0.0
    %2746 = vmatpush.msra.mxu0 0.0
    %2747 = vmatpush.msra.mxu0 0.0
    %2748 = vmatpush.msra.mxu0 0.0
    %2749 = vmatpush.msra.mxu0 0.0
    %2750 = vmatpush.msra.mxu0 0.0
    %2751 = vmatpush.msra.mxu0 0.0
    %2752 = vmatpush.msra.mxu0 0.0
    %2753 = vmatpush.msra.mxu0 0.0
    %2754 = vmatpush.msra.mxu0 %v2735
    %2755 = vmatmul.f32.gmra.mxu0 %v2737
    %v2756 = vpop.f32.mrf.mxu0
    %v2757 = vadd.f32 0.0, %v2756
    %2758 = vdwg.mxu0
    %v2759 = vadd.f32 %v2733, %v2757
    %s2760 = scalar_lea.vmem %s4, 352
    %v2761 = vld [vmem:[%s2760] sm:$0xff]
    %v2762 = vrot.slane %v2706, 4
    %v2763 = vsel %vm831, %v2762, 0
    %2765 = vmatpush.msra.mxu0 0.0
    %2766 = vmatpush.msra.mxu0 0.0
    %2767 = vmatpush.msra.mxu0 0.0
    %2768 = vmatpush.msra.mxu0 0.0
    %2769 = vmatpush.msra.mxu0 0.0
    %2770 = vmatpush.msra.mxu0 0.0
    %2771 = vmatpush.msra.mxu0 0.0
    %2772 = vmatpush.msra.mxu0 0.0
    %2773 = vmatpush.msra.mxu0 0.0
    %2774 = vmatpush.msra.mxu0 0.0
    %2775 = vmatpush.msra.mxu0 0.0
    %2776 = vmatpush.msra.mxu0 0.0
    %2777 = vmatpush.msra.mxu0 0.0
    %2778 = vmatpush.msra.mxu0 0.0
    %2779 = vmatpush.msra.mxu0 0.0
    %2780 = vmatpush.msra.mxu0 %v2761
    %2781 = vmatmul.f32.gmra.mxu0 %v2763
    %v2782 = vpop.f32.mrf.mxu0
    %v2783 = vadd.f32 0.0, %v2782
    %2784 = vdwg.mxu0
    %v2785 = vadd.f32 %v2759, %v2783
    %s2786 = scalar_lea.vmem %s4, 360
    %v2787 = vld [vmem:[%s2786] sm:$0xff]
    %v2788 = vrot.slane %v2706, 6
    %v2789 = vsel %vm831, %v2788, 0
    %2791 = vmatpush.msra.mxu0 0.0
    %2792 = vmatpush.msra.mxu0 0.0
    %2793 = vmatpush.msra.mxu0 0.0
    %2794 = vmatpush.msra.mxu0 0.0
    %2795 = vmatpush.msra.mxu0 0.0
    %2796 = vmatpush.msra.mxu0 0.0
    %2797 = vmatpush.msra.mxu0 0.0
    %2798 = vmatpush.msra.mxu0 0.0
    %2799 = vmatpush.msra.mxu0 0.0
    %2800 = vmatpush.msra.mxu0 0.0
    %2801 = vmatpush.msra.mxu0 0.0
    %2802 = vmatpush.msra.mxu0 0.0
    %2803 = vmatpush.msra.mxu0 0.0
    %2804 = vmatpush.msra.mxu0 0.0
    %2805 = vmatpush.msra.mxu0 0.0
    %2806 = vmatpush.msra.mxu0 %v2787
    %2807 = vmatmul.f32.gmra.mxu0 %v2789
    %v2808 = vpop.f32.mrf.mxu0
    %v2809 = vadd.f32 0.0, %v2808
    %2810 = vdwg.mxu0
    %v2811 = vadd.f32 %v2785, %v2809
    %s2812 = scalar_lea.vmem %s4, 368
    %v2813 = vld [vmem:[%s2812] sm:$0xff]
    %v2815 = vsel %vm831, %v2707, 0
    %2817 = vmatpush.msra.mxu0 0.0
    %2818 = vmatpush.msra.mxu0 0.0
    %2819 = vmatpush.msra.mxu0 0.0
    %2820 = vmatpush.msra.mxu0 0.0
    %2821 = vmatpush.msra.mxu0 0.0
    %2822 = vmatpush.msra.mxu0 0.0
    %2823 = vmatpush.msra.mxu0 0.0
    %2824 = vmatpush.msra.mxu0 0.0
    %2825 = vmatpush.msra.mxu0 0.0
    %2826 = vmatpush.msra.mxu0 0.0
    %2827 = vmatpush.msra.mxu0 0.0
    %2828 = vmatpush.msra.mxu0 0.0
    %2829 = vmatpush.msra.mxu0 0.0
    %2830 = vmatpush.msra.mxu0 0.0
    %2831 = vmatpush.msra.mxu0 0.0
    %2832 = vmatpush.msra.mxu0 %v2813
    %2833 = vmatmul.f32.gmra.mxu0 %v2815
    %v2834 = vpop.f32.mrf.mxu0
    %v2835 = vadd.f32 0.0, %v2834
    %2836 = vdwg.mxu0
    %v2837 = vadd.f32 %v2811, %v2835
    %s2838 = scalar_lea.vmem %s4, 376
    %v2839 = vld [vmem:[%s2838] sm:$0xff]
    %v2840 = vrot.slane %v2707, 2
    %v2841 = vsel %vm831, %v2840, 0
    %2843 = vmatpush.msra.mxu0 0.0
    %2844 = vmatpush.msra.mxu0 0.0
    %2845 = vmatpush.msra.mxu0 0.0
    %2846 = vmatpush.msra.mxu0 0.0
    %2847 = vmatpush.msra.mxu0 0.0
    %2848 = vmatpush.msra.mxu0 0.0
    %2849 = vmatpush.msra.mxu0 0.0
    %2850 = vmatpush.msra.mxu0 0.0
    %2851 = vmatpush.msra.mxu0 0.0
    %2852 = vmatpush.msra.mxu0 0.0
    %2853 = vmatpush.msra.mxu0 0.0
    %2854 = vmatpush.msra.mxu0 0.0
    %2855 = vmatpush.msra.mxu0 0.0
    %2856 = vmatpush.msra.mxu0 0.0
    %2857 = vmatpush.msra.mxu0 0.0
    %2858 = vmatpush.msra.mxu0 %v2839
    %2859 = vmatmul.f32.gmra.mxu0 %v2841
    %v2860 = vpop.f32.mrf.mxu0
    %v2861 = vadd.f32 0.0, %v2860
    %2862 = vdwg.mxu0
    %v2863 = vadd.f32 %v2837, %v2861
    %s2864 = scalar_lea.vmem %s4, 384
    %v2865 = vld [vmem:[%s2864] sm:$0xff]
    %v2866 = vrot.slane %v2707, 4
    %v2867 = vsel %vm831, %v2866, 0
    %2869 = vmatpush.msra.mxu0 0.0
    %2870 = vmatpush.msra.mxu0 0.0
    %2871 = vmatpush.msra.mxu0 0.0
    %2872 = vmatpush.msra.mxu0 0.0
    %2873 = vmatpush.msra.mxu0 0.0
    %2874 = vmatpush.msra.mxu0 0.0
    %2875 = vmatpush.msra.mxu0 0.0
    %2876 = vmatpush.msra.mxu0 0.0
    %2877 = vmatpush.msra.mxu0 0.0
    %2878 = vmatpush.msra.mxu0 0.0
    %2879 = vmatpush.msra.mxu0 0.0
    %2880 = vmatpush.msra.mxu0 0.0
    %2881 = vmatpush.msra.mxu0 0.0
    %2882 = vmatpush.msra.mxu0 0.0
    %2883 = vmatpush.msra.mxu0 0.0
    %2884 = vmatpush.msra.mxu0 %v2865
    %2885 = vmatmul.f32.gmra.mxu0 %v2867
    %v2886 = vpop.f32.mrf.mxu0
    %v2887 = vadd.f32 0.0, %v2886
    %2888 = vdwg.mxu0
    %v2889 = vadd.f32 %v2863, %v2887
    %v2890 = vld [vmem:[%s5] sm:$0x1]
    %v2892 = vperm.slane %v2890, 0
    %v2894 = vadd.f32 %v2889, %v2892
    %2895 = vst [vmem:[#allocation3] sm:$0x3] %v2894
    // Predicated region
    $region26: #{encoder_forward.1} parent=1 // pred_check
      _
    $region27: #{encoder_forward.1} parent=1 // pred_check_branch
      %2897 = sbr.rel (0) target = $region29
    $region28: #{encoder_forward.1} parent=1 // pred_region
      %2899 = vsyncadd [#allocation4], 0
      %s2901 = sshll.u32 [#allocation3], 4
      %s2902 = int_to_ptr.vmem [resolvable:$true] %s2901
      %s2903 = sshll.u32 %s6, 4
      %s2904 = int_to_ptr.hbm [resolvable:$true] %s2903
      %2906 = dma.vmem_to_hbm [thread:$0]  %s2902, 32, %s2904, [#allocation4]
    $region29: #{encoder_forward.1} parent=1 // pred_fallthru
      _
    // Predicated region
    $region30: #{encoder_forward.1} parent=1 // pred_check
      _
    $region31: #{encoder_forward.1} parent=1 // pred_check_branch
      %2908 = sbr.rel (0) target = $region33
    $region32: #{encoder_forward.1} parent=1 // pred_region
      %2910 = dma.done [#allocation4], 32
    $region33: #{encoder_forward.1} parent=1 // pred_fallthru
      _
    %2911 = vsyncpa [#allocation4], 1

</llo_original>
